<compile_context>
chip_gen: v7x
topology: tpu7x:2x2x1
jax: 0.10.0
libtpu: 0.0.40
codegen_flags: <defaults>
</compile_context>

<pallas_src>
import functools

import jax
import jax.numpy as jnp
from jax.experimental import pallas as pl
from jax.experimental.pallas import tpu as pltpu

# Set False for exact numerical parity checks against the PyTorch reference
# (pl.reciprocal(approx=True) has ~1e-3 relative error).
_APPROX_SOFTMAX_RECIP = True


def _recip(x):
    if _APPROX_SOFTMAX_RECIP:
        return pl.reciprocal(x, approx=True)
    return 1.0 / x


# --------------------------------------------------------------------------
# Generation-aware configuration (v5e/v6e: 128 MiB VMEM, v7x: 64 MiB).
# --------------------------------------------------------------------------
def _vmem_capacity_bytes():
    try:
        info = pltpu.get_tpu_info()
        cap = getattr(info, "vmem_capacity_bytes", None)
        if cap:
            return int(cap)
    except Exception:
        pass
    return 128 * 1024 * 1024


def _hw_config():
    cap = _vmem_capacity_bytes()
    vmem_limit = min(int(cap * 3 // 4), 100 * 1024 * 1024)
    if cap >= 100 * 1024 * 1024:      # v5e / v6e: 128 MiB physical VMEM
        bt_cap, tv_cap = 16, 2048
    else:                             # v7x: 64 MiB physical VMEM
        bt_cap, tv_cap = 8, 1024
    return vmem_limit, bt_cap, tv_cap


def _choose_bt(B, cap):
    """Batch tile BT and (possibly padded) batch Bp with Bp % BT == 0.

    Prefers an exact divisor of B; pads the batch up when the best divisor
    would leave the MXU M-dim (BT*L) too small (prime / awkward B).  For
    larger batches BT is capped at ~B//2 so the 'parallel' batch grid axis
    has >= 2 steps and can shard across v7x's two TensorCores."""
    cap = max(1, cap)
    if B >= 4 * cap:
        cap_eff = cap
    elif B >= 16:
        cap_eff = max(1, min(cap, B // 2))
    else:
        cap_eff = min(cap, B)
    best = max(c for c in range(1, cap_eff + 1) if B % c == 0)
    if best * 2 > cap_eff or B <= cap_eff:
        return best, B
    bt = cap_eff
    return bt, ((B + bt - 1) // bt) * bt


def _choose_vocab_tile(V1, tv_cap):
    """Vocab tile TV and padded vocab Vp (multiple of TV).

    Small vocabularies use one full-width tile (no padding, no post-slice);
    large ones are padded to a multiple of the generation-aware tile."""
    if V1 <= max(tv_cap, 2048):
        return V1, V1
    TV = tv_cap
    return TV, ((V1 + TV - 1) // TV) * TV


def _layer_norm(x, gamma, beta, eps=1e-8):
    mu = jnp.mean(x, axis=-1, keepdims=True)
    var = jnp.mean((x - mu) ** 2, axis=-1, keepdims=True)
    return (x - mu) * jax.lax.rsqrt(var + eps) * gamma + beta


# --------------------------------------------------------------------------
# Fused transformer-blocks kernel:
#   repeat num_blocks times: LN -> causal MHA (residual on LN'd Q) -> LN -> FFN
# Activations for the batch tile stay in VMEM across all blocks.
# --------------------------------------------------------------------------
def fused_blocks_kernel(num_blocks, num_heads,
                        seqs_ref, tlmask_ref,
                        ln1_g_ref, ln1_b_ref,
                        in_w_t_ref, in_b_ref,
                        out_w_t_ref, out_b_ref,
                        ln2_g_ref, ln2_b_ref,
                        w1_t_ref, b1_ref, w2_t_ref, b2_ref,
                        out_ref):
    BT, L, H = seqs_ref.shape
    M = BT * L
    hd = H // num_heads
    scale = 1.0 / (hd ** 0.5)

    # Hoisted once per batch tile: timeline mask + causal predicate.
    mask3 = tlmask_ref[...].astype(jnp.float32).reshape(BT, L, 1)  # (BT, L, 1)
    row = jax.lax.broadcasted_iota(jnp.int32, (L, L), 0)
    col = jax.lax.broadcasted_iota(jnp.int32, (L, L), 1)
    causal = (col <= row)[None]                                    # (1, L, L)

    x = seqs_ref[...].astype(jnp.float32).reshape(M, H)

    for blk in range(num_blocks):          # static loop: weights live in VMEM
        # --- attention layernorm (applied to Q only, as in the reference) ---
        q_in = _layer_norm(x, ln1_g_ref[blk], ln1_b_ref[blk])     # (M, H) f32

        # --- projections: Q from LN'd input; fused K|V from raw input ---
        in_w_t = in_w_t_ref[blk]                                  # (H, 3H) bf16
        in_b = in_b_ref[blk]                                      # (1, 3H) f32
        q = jnp.dot(q_in.astype(jnp.bfloat16), in_w_t[:, :H],
                    preferred_element_type=jnp.float32) + in_b[:, :H]
        kv = jnp.dot(x.astype(jnp.bfloat16), in_w_t[:, H:],
                     preferred_element_type=jnp.float32) + in_b[:, H:]
        q3 = q.reshape(BT, L, H)
        k3 = kv[:, :H].reshape(BT, L, H)
        v3 = kv[:, H:].reshape(BT, L, H)

        # --- per-head attention, accumulated through the output projection ---
        out_w_t = out_w_t_ref[blk]                                # (H, H) bf16
        attn_out = jnp.zeros((M, H), jnp.float32)
        for h in range(num_heads):                                # static
            sl = slice(h * hd, (h + 1) * hd)
            qh = (q3[:, :, sl] * scale).astype(jnp.bfloat16)
            kh = k3[:, :, sl].astype(jnp.bfloat16)
            vh = v3[:, :, sl].astype(jnp.bfloat16)
            s = jnp.einsum('bqd,bkd->bqk', qh, kh,
                           preferred_element_type=jnp.float32)
            s = jnp.where(causal, s, -1e30)
            s = s - jnp.max(s, axis=-1, keepdims=True)
            p = jnp.exp(s)
            p = p * _recip(jnp.sum(p, axis=-1, keepdims=True))
            oh = jnp.einsum('bqk,bkd->bqd', p.astype(jnp.bfloat16), vh,
                            preferred_element_type=jnp.float32)   # (BT, L, hd)
            attn_out = attn_out + jnp.dot(
                oh.reshape(M, hd).astype(jnp.bfloat16), out_w_t[sl, :],
                preferred_element_type=jnp.float32)
        attn_out = attn_out + out_b_ref[blk]                      # (1, H)

        # residual uses the layernormed Q (exactly as in the reference code)
        x2 = q_in + attn_out

        # --- forward layernorm + PointWiseFeedForward (Conv1d k=1 == Linear) ---
        y = _layer_norm(x2, ln2_g_ref[blk], ln2_b_ref[blk])
        h1 = jnp.maximum(
            jnp.dot(y.astype(jnp.bfloat16), w1_t_ref[blk],
                    preferred_element_type=jnp.float32) + b1_ref[blk], 0.0)
        h2 = jnp.dot(h1.astype(jnp.bfloat16), w2_t_ref[blk],
                     preferred_element_type=jnp.float32) + b2_ref[blk]
        z = h2 + y

        # zero out padded positions (applied after every block, per reference)
        x = (z.reshape(BT, L, H) * mask3).reshape(M, H)

    out_ref[...] = x.reshape(BT, L, H).astype(out_ref.dtype)


# --------------------------------------------------------------------------
# Head kernel: last layernorm + pos/neg logits + vocab-tiled full logits (bf16)
# --------------------------------------------------------------------------
def head_kernel(seqs_ref, ln_g_ref, ln_b_ref, pos_ref, neg_ref, emb_ref,
                pn_out_ref, logits_ref, f_bf_sc):
    v_idx = pl.program_id(1)
    BT, L, H = seqs_ref.shape

    @pl.when(v_idx == 0)
    def _():
        x = seqs_ref[...].astype(jnp.float32).reshape(BT * L, H)
        f = _layer_norm(x, ln_g_ref[...], ln_b_ref[...])          # f32
        f_bf_sc[...] = f.astype(jnp.bfloat16)
        f3 = f.reshape(BT, L, H)
        # lane-dense packed (BT, 2, L) output: row 0 = pos, row 1 = neg (f32)
        pn_out_ref[:, 0, :] = jnp.sum(f3 * pos_ref[...].astype(jnp.float32),
                                      axis=-1)
        pn_out_ref[:, 1, :] = jnp.sum(f3 * neg_ref[...].astype(jnp.float32),
                                      axis=-1)

    # full-vocab logits for this vocab tile: (M,H) . (TV,H)^T via dot_general
    lg = jax.lax.dot_general(f_bf_sc[...], emb_ref[...],
                             dimension_numbers=(((1,), (1,)), ((), ())),
                             preferred_element_type=jnp.float32)
    logits_ref[...] = lg.reshape(BT, L, logits_ref.shape[2]).astype(
        logits_ref.dtype)


# --------------------------------------------------------------------------
# pallas_call builders
# --------------------------------------------------------------------------
def make_block_call(B, L, H, num_blocks, num_heads, BT, vmem_limit):
    nb = num_blocks
    data_spec = pl.BlockSpec((BT, L, H), lambda b: (b, 0, 0))
    mask_spec = pl.BlockSpec((BT, 1, L), lambda b: (b, 0, 0))

    def shared(shape):
        return pl.BlockSpec(shape, lambda b: (0,) * len(shape))

    in_specs = [data_spec, mask_spec,
                shared((nb, 1, H)), shared((nb, 1, H)),            # ln1 g, b
                shared((nb, H, 3 * H)), shared((nb, 1, 3 * H)),    # in_proj Wt,b
                shared((nb, H, H)), shared((nb, 1, H)),            # out_proj Wt,b
                shared((nb, 1, H)), shared((nb, 1, H)),            # ln2 g, b
                shared((nb, H, H)), shared((nb, 1, H)),            # conv1 Wt, b
                shared((nb, H, H)), shared((nb, 1, H))]            # conv2 Wt, b
    return pl.pallas_call(
        functools.partial(fused_blocks_kernel, num_blocks, num_heads),
        grid=(B // BT,),
        in_specs=in_specs,
        out_specs=data_spec,
        out_shape=jax.ShapeDtypeStruct((B, L, H), jnp.bfloat16),
        compiler_params=pltpu.CompilerParams(
            dimension_semantics=("parallel",),
            vmem_limit_bytes=vmem_limit),
    )


def make_head_call(B, L, H, Vp, TV, BT, vmem_limit):
    data_spec = pl.BlockSpec((BT, L, H), lambda b, v: (b, 0, 0))
    return pl.pallas_call(
        head_kernel,
        grid=(B // BT, Vp // TV),
        in_specs=[data_spec,
                  pl.BlockSpec((1, H), lambda b, v: (0, 0)),
                  pl.BlockSpec((1, H), lambda b, v: (0, 0)),
                  data_spec, data_spec,
                  pl.BlockSpec((TV, H), lambda b, v: (v, 0))],
        out_specs=(pl.BlockSpec((BT, 2, L), lambda b, v: (b, 0, 0)),
                   pl.BlockSpec((BT, L, TV), lambda b, v: (b, 0, v))),
        out_shape=(jax.ShapeDtypeStruct((B, 2, L), jnp.float32),
                   jax.ShapeDtypeStruct((B, L, Vp), jnp.bfloat16)),
        scratch_shapes=[pltpu.VMEM((BT * L, H), jnp.bfloat16)],
        compiler_params=pltpu.CompilerParams(
            dimension_semantics=("parallel", "arbitrary"),
            vmem_limit_bytes=vmem_limit),
    )


# --------------------------------------------------------------------------
# Parameter init / wrapper
# --------------------------------------------------------------------------
def init_params(key, item_num, maxlen, H, num_blocks):
    """Deterministic synthetic init mirroring SimRec.reset_parameters:
    2-D weights get xavier-normal, 1-D params keep LayerNorm / zero defaults.
    Matmul weights are stored pre-transposed in bf16, stacked per block."""
    def xavier(k, shape):
        fan_out, fan_in = shape[0], shape[1]
        std = (2.0 / (fan_in + fan_out)) ** 0.5
        return (jax.random.normal(k, shape) * std).astype(jnp.float32)

    keys = jax.random.split(key, 2 + num_blocks)
    item_emb = xavier(keys[0], (item_num + 1, H))
    pos_emb = xavier(keys[1], (maxlen, H))

    ln1_g, ln1_b, ln2_g, ln2_b = [], [], [], []
    in_w_t, in_b, out_w_t, out_b = [], [], [], []
    w1_t, b1, w2_t, b2 = [], [], [], []
    for i in range(num_blocks):
        bk = jax.random.split(keys[2 + i], 4)
        ln1_g.append(jnp.ones((1, H), jnp.float32))
        ln1_b.append(jnp.zeros((1, H), jnp.float32))
        in_w_t.append(xavier(bk[0], (3 * H, H)).T.astype(jnp.bfloat16))
        in_b.append(jnp.zeros((1, 3 * H), jnp.float32))
        out_w_t.append(xavier(bk[1], (H, H)).T.astype(jnp.bfloat16))
        out_b.append(jnp.zeros((1, H), jnp.float32))
        ln2_g.append(jnp.ones((1, H), jnp.float32))
        ln2_b.append(jnp.zeros((1, H), jnp.float32))
        w1_t.append(xavier(bk[2], (H, H)).T.astype(jnp.bfloat16))
        b1.append(jnp.zeros((1, H), jnp.float32))
        w2_t.append(xavier(bk[3], (H, H)).T.astype(jnp.bfloat16))
        b2.append(jnp.zeros((1, H), jnp.float32))

    stack = lambda xs: jnp.stack(xs, axis=0)
    blocks = dict(ln1_g=stack(ln1_g), ln1_b=stack(ln1_b),
                  in_w_t=stack(in_w_t), in_b=stack(in_b),
                  out_w_t=stack(out_w_t), out_b=stack(out_b),
                  ln2_g=stack(ln2_g), ln2_b=stack(ln2_b),
                  w1_t=stack(w1_t), b1=stack(b1),
                  w2_t=stack(w2_t), b2=stack(b2))

    # bf16 copy of the item table (padded to the vocab tile) created ONCE.
    V1 = item_num + 1
    _, _, tv_cap = _hw_config()
    TV, Vp = _choose_vocab_tile(V1, tv_cap)
    if Vp > V1:
        emb_pad = jnp.zeros((Vp, H), jnp.float32).at[:V1].set(item_emb)
    else:
        emb_pad = item_emb
    return {'item_emb': item_emb, 'pos_emb': pos_emb,
            'blocks': blocks, 'num_blocks': num_blocks,
            'item_emb_bf': emb_pad.astype(jnp.bfloat16),
            'vocab_tile': TV,
            'last_ln_g': jnp.ones((1, H), jnp.float32),
            'last_ln_b': jnp.zeros((1, H), jnp.float32)}


def simrec_forward(params, log_seqs, pos_seqs, neg_seqs, num_heads,
                   return_padded_logits=False):
    item_emb = params['item_emb']              # (item_num+1, H) f32
    pos_emb = params['pos_emb']                # (maxlen, H)
    B, L = log_seqs.shape
    H = item_emb.shape[1]
    V1 = item_emb.shape[0]
    num_blocks = params['num_blocks']

    vmem_limit, bt_cap, _ = _hw_config()
    BT, Bp = _choose_bt(B, bt_cap)

    # --- embedding glue (gather + scale + positional add + padding mask) ---
    seqs = jnp.take(item_emb, log_seqs, axis=0) * (H ** 0.5)      # (B, L, H)
    seqs = seqs + pos_emb[None, :L, :]
    tl_mask = (log_seqs != 0).astype(jnp.float32)                 # (B, L)
    seqs = seqs * tl_mask[..., None]
    seqs_bf = seqs.astype(jnp.bfloat16)                           # bf16 activations
    mask3 = tl_mask.reshape(B, 1, L)                              # lane-dense mask

    pos_embs = jnp.take(item_emb, pos_seqs, axis=0).astype(jnp.bfloat16)
    neg_embs = jnp.take(item_emb, neg_seqs, axis=0).astype(jnp.bfloat16)

    if Bp > B:   # pad awkward batch sizes instead of shrinking BT to 1
        pad = ((0, Bp - B), (0, 0), (0, 0))
        seqs_bf = jnp.pad(seqs_bf, pad)
        mask3 = jnp.pad(mask3, pad)
        pos_embs = jnp.pad(pos_embs, pad)
        neg_embs = jnp.pad(neg_embs, pad)

    blk = params['blocks']
    block_fn = make_block_call(Bp, L, H, num_blocks, num_heads, BT, vmem_limit)
    feats = block_fn(seqs_bf, mask3,
                     blk['ln1_g'], blk['ln1_b'],
                     blk['in_w_t'], blk['in_b'],
                     blk['out_w_t'], blk['out_b'],
                     blk['ln2_g'], blk['ln2_b'],
                     blk['w1_t'], blk['b1'], blk['w2_t'], blk['b2'])

    emb_bf = params['item_emb_bf']             # (Vp, H) bf16
    Vp = emb_bf.shape[0]
    TV = params['vocab_tile']
    head_fn = make_head_call(Bp, L, H, Vp, TV, BT, vmem_limit)
    pn, logits = head_fn(feats, params['last_ln_g'], params['last_ln_b'],
                         pos_embs, neg_embs, emb_bf)

    pos_logits = pn[:B, 0, :]
    neg_logits = pn[:B, 1, :]
    # NOTE: slicing the padded logits materializes a copy of the largest
    # tensor; callers can set return_padded_logits=True to skip it and ignore
    # the padded vocab columns / batch rows themselves.
    if not return_padded_logits:
        if Bp > B or Vp > V1:
            logits = logits[:B, :, :V1]
    elif Bp > B:
        logits = logits[:B]
    return pos_logits, neg_logits, logits


if __name__ == "__main__":
    # small config consistent with the module
    B, maxlen, H = 2, 8, 32
    num_heads, num_blocks = 2, 2
    item_num = 20

    key = jax.random.PRNGKey(0)
    kp, k1, k2, k3 = jax.random.split(key, 4)
    params = init_params(kp, item_num, maxlen, H, num_blocks)

    log_seqs = jax.random.randint(k1, (B, maxlen), 0, item_num + 1, dtype=jnp.int32)
    log_seqs = log_seqs.at[:, 0].set(0)   # some padding positions
    pos_seqs = jax.random.randint(k2, (B, maxlen), 1, item_num + 1, dtype=jnp.int32)
    neg_seqs = jax.random.randint(k3, (B, maxlen), 1, item_num + 1, dtype=jnp.int32)

    pos_logits, neg_logits, logits = simrec_forward(
        params, log_seqs, pos_seqs, neg_seqs, num_heads)
    jax.block_until_ready((pos_logits, neg_logits, logits))

    assert pos_logits.shape == (B, maxlen)
    assert neg_logits.shape == (B, maxlen)
    assert logits.shape == (B, maxlen, item_num + 1)
    print("KERNEL_OK")
</pallas_src>

<mosaic_0001>
module attributes {stable_mosaic.version = 11 : i64} {
  func.func @fused_blocks_kernel(%arg0: i32, %arg1: memref<2x8x32xbf16, #tpu.memory_space<vmem>>, %arg2: memref<2x1x8xf32, #tpu.memory_space<vmem>>, %arg3: memref<2x1x32xf32, #tpu.memory_space<vmem>>, %arg4: memref<2x1x32xf32, #tpu.memory_space<vmem>>, %arg5: memref<2x32x96xbf16, #tpu.memory_space<vmem>>, %arg6: memref<2x1x96xf32, #tpu.memory_space<vmem>>, %arg7: memref<2x32x32xbf16, #tpu.memory_space<vmem>>, %arg8: memref<2x1x32xf32, #tpu.memory_space<vmem>>, %arg9: memref<2x1x32xf32, #tpu.memory_space<vmem>>, %arg10: memref<2x1x32xf32, #tpu.memory_space<vmem>>, %arg11: memref<2x32x32xbf16, #tpu.memory_space<vmem>>, %arg12: memref<2x1x32xf32, #tpu.memory_space<vmem>>, %arg13: memref<2x32x32xbf16, #tpu.memory_space<vmem>>, %arg14: memref<2x1x32xf32, #tpu.memory_space<vmem>>, %arg15: memref<2x8x32xbf16, #tpu.memory_space<vmem>>) attributes {dimension_semantics = [#tpu.dimension_semantics<parallel>], iteration_bounds = array<i64: 1>, scalar_prefetch = 0 : i64, scratch_operands = 0 : i64, tpu.core_type = #tpu.core_type<tc>, window_params = [{transform_indices = @transform_0, window_bounds = array<i64: 2, 8, 32>}, {transform_indices = @transform_1, window_bounds = array<i64: 2, 1, 8>}, {pipeline_mode = #tpu.pipeline_mode<synchronous>, transform_indices = @transform_2, window_bounds = array<i64: 2, 1, 32>}, {pipeline_mode = #tpu.pipeline_mode<synchronous>, transform_indices = @transform_3, window_bounds = array<i64: 2, 1, 32>}, {pipeline_mode = #tpu.pipeline_mode<synchronous>, transform_indices = @transform_4, window_bounds = array<i64: 2, 32, 96>}, {pipeline_mode = #tpu.pipeline_mode<synchronous>, transform_indices = @transform_5, window_bounds = array<i64: 2, 1, 96>}, {pipeline_mode = #tpu.pipeline_mode<synchronous>, transform_indices = @transform_6, window_bounds = array<i64: 2, 32, 32>}, {pipeline_mode = #tpu.pipeline_mode<synchronous>, transform_indices = @transform_7, window_bounds = array<i64: 2, 1, 32>}, {pipeline_mode = #tpu.pipeline_mode<synchronous>, transform_indices = @transform_8, window_bounds = array<i64: 2, 1, 32>}, {pipeline_mode = #tpu.pipeline_mode<synchronous>, transform_indices = @transform_9, window_bounds = array<i64: 2, 1, 32>}, {pipeline_mode = #tpu.pipeline_mode<synchronous>, transform_indices = @transform_10, window_bounds = array<i64: 2, 32, 32>}, {pipeline_mode = #tpu.pipeline_mode<synchronous>, transform_indices = @transform_11, window_bounds = array<i64: 2, 1, 32>}, {pipeline_mode = #tpu.pipeline_mode<synchronous>, transform_indices = @transform_12, window_bounds = array<i64: 2, 32, 32>}, {pipeline_mode = #tpu.pipeline_mode<synchronous>, transform_indices = @transform_13, window_bounds = array<i64: 2, 1, 32>}, {transform_indices = @transform_14, window_bounds = array<i64: 2, 8, 32>}]} {
    %c0 = arith.constant 0 : index
    %c0_0 = arith.constant 0 : index
    %c0_1 = arith.constant 0 : index
    %0 = vector.load %arg2[%c0, %c0_0, %c0_1] : memref<2x1x8xf32, #tpu.memory_space<vmem>>, vector<2x1x8xf32>
    %1 = vector.shape_cast %0 : vector<2x1x8xf32> to vector<2x8x1xf32>
    %2 = tpu.iota {dimensions = array<i32: 0>} : vector<8x8xi32>
    %3 = tpu.iota {dimensions = array<i32: 1>} : vector<8x8xi32>
    %4 = arith.cmpi sle, %3, %2 : vector<8x8xi32>
    %5 = vector.shape_cast %4 : vector<8x8xi1> to vector<1x8x8xi1>
    %c0_2 = arith.constant 0 : index
    %c0_3 = arith.constant 0 : index
    %c0_4 = arith.constant 0 : index
    %6 = vector.load %arg1[%c0_2, %c0_3, %c0_4] : memref<2x8x32xbf16, #tpu.memory_space<vmem>>, vector<2x8x32xbf16>
    %7 = arith.extf %6 : vector<2x8x32xbf16> to vector<2x8x32xf32>
    %8 = vector.shape_cast %7 : vector<2x8x32xf32> to vector<16x32xf32>
    %c0_5 = arith.constant 0 : index
    %c0_6 = arith.constant 0 : index
    %c0_7 = arith.constant 0 : index
    %9 = vector.load %arg3[%c0_5, %c0_6, %c0_7] : memref<2x1x32xf32, #tpu.memory_space<vmem>>, vector<1x1x32xf32>
    %10 = vector.shape_cast %9 : vector<1x1x32xf32> to vector<1x32xf32>
    %c0_8 = arith.constant 0 : index
    %c0_9 = arith.constant 0 : index
    %c0_10 = arith.constant 0 : index
    %11 = vector.load %arg4[%c0_8, %c0_9, %c0_10] : memref<2x1x32xf32, #tpu.memory_space<vmem>>, vector<1x1x32xf32>
    %12 = vector.shape_cast %11 : vector<1x1x32xf32> to vector<1x32xf32>
    %cst = arith.constant dense<0.000000e+00> : vector<16xf32>
    %13 = vector.multi_reduction <add>, %8, %cst [1] : vector<16x32xf32> to vector<16xf32>
    %14 = vector.shape_cast %13 : vector<16xf32> to vector<16x1xf32>
    %cst_11 = arith.constant 3.200000e+01 : f32
    %15 = vector.broadcast %cst_11 : f32 to vector<16x1xf32>
    %16 = arith.divf %14, %15 : vector<16x1xf32>
    %17 = vector.broadcast %16 : vector<16x1xf32> to vector<16x32xf32>
    %18 = arith.subf %8, %17 : vector<16x32xf32>
    %19 = arith.mulf %18, %18 : vector<16x32xf32>
    %cst_12 = arith.constant dense<0.000000e+00> : vector<16xf32>
    %20 = vector.multi_reduction <add>, %19, %cst_12 [1] : vector<16x32xf32> to vector<16xf32>
    %21 = vector.shape_cast %20 : vector<16xf32> to vector<16x1xf32>
    %cst_13 = arith.constant 3.200000e+01 : f32
    %22 = vector.broadcast %cst_13 : f32 to vector<16x1xf32>
    %23 = arith.divf %21, %22 : vector<16x1xf32>
    %24 = vector.broadcast %16 : vector<16x1xf32> to vector<16x32xf32>
    %25 = arith.subf %8, %24 : vector<16x32xf32>
    %cst_14 = arith.constant 9.99999993E-9 : f32
    %26 = vector.broadcast %cst_14 : f32 to vector<16x1xf32>
    %27 = arith.addf %23, %26 : vector<16x1xf32>
    %28 = math.rsqrt %27 : vector<16x1xf32>
    %29 = vector.broadcast %28 : vector<16x1xf32> to vector<16x32xf32>
    %30 = arith.mulf %25, %29 : vector<16x32xf32>
    %31 = vector.broadcast %10 : vector<1x32xf32> to vector<16x32xf32>
    %32 = arith.mulf %30, %31 : vector<16x32xf32>
    %33 = vector.broadcast %12 : vector<1x32xf32> to vector<16x32xf32>
    %34 = arith.addf %32, %33 : vector<16x32xf32>
    %c0_15 = arith.constant 0 : index
    %c0_16 = arith.constant 0 : index
    %c0_17 = arith.constant 0 : index
    %35 = vector.load %arg5[%c0_15, %c0_16, %c0_17] : memref<2x32x96xbf16, #tpu.memory_space<vmem>>, vector<1x32x96xbf16>
    %36 = vector.shape_cast %35 : vector<1x32x96xbf16> to vector<32x96xbf16>
    %c0_18 = arith.constant 0 : index
    %c0_19 = arith.constant 0 : index
    %c0_20 = arith.constant 0 : index
    %37 = vector.load %arg6[%c0_18, %c0_19, %c0_20] : memref<2x1x96xf32, #tpu.memory_space<vmem>>, vector<1x1x96xf32>
    %38 = vector.shape_cast %37 : vector<1x1x96xf32> to vector<1x96xf32>
    %39 = arith.truncf %34 : vector<16x32xf32> to vector<16x32xbf16>
    %40 = vector.extract_strided_slice %36 {offsets = [0, 0], sizes = [32, 32], strides = [1, 1]} : vector<32x96xbf16> to vector<32x32xbf16>
    %cst_21 = arith.constant dense<0.000000e+00> : vector<16x32xf32>
    %41 = tpu.matmul %39, %40, %cst_21 {dimension_numbers = #tpu.dot_dimension_numbers<[1], [0], [0], [1], [0, 0, 1, 1], [], []>} : vector<16x32xbf16>, vector<32x32xbf16>, vector<16x32xf32> -> vector<16x32xf32>
    %42 = vector.extract_strided_slice %38 {offsets = [0, 0], sizes = [1, 32], strides = [1, 1]} : vector<1x96xf32> to vector<1x32xf32>
    %43 = vector.broadcast %42 : vector<1x32xf32> to vector<16x32xf32>
    %44 = arith.addf %41, %43 : vector<16x32xf32>
    %45 = arith.truncf %8 : vector<16x32xf32> to vector<16x32xbf16>
    %46 = vector.extract_strided_slice %36 {offsets = [0, 32], sizes = [32, 64], strides = [1, 1]} : vector<32x96xbf16> to vector<32x64xbf16>
    %cst_22 = arith.constant dense<0.000000e+00> : vector<16x64xf32>
    %47 = tpu.matmul %45, %46, %cst_22 {dimension_numbers = #tpu.dot_dimension_numbers<[1], [0], [0], [1], [0, 0, 1, 1], [], []>} : vector<16x32xbf16>, vector<32x64xbf16>, vector<16x64xf32> -> vector<16x64xf32>
    %48 = vector.extract_strided_slice %38 {offsets = [0, 32], sizes = [1, 64], strides = [1, 1]} : vector<1x96xf32> to vector<1x64xf32>
    %49 = vector.broadcast %48 : vector<1x64xf32> to vector<16x64xf32>
    %50 = arith.addf %47, %49 : vector<16x64xf32>
    %51 = vector.shape_cast %44 : vector<16x32xf32> to vector<2x8x32xf32>
    %52 = vector.extract_strided_slice %50 {offsets = [0, 0], sizes = [16, 32], strides = [1, 1]} : vector<16x64xf32> to vector<16x32xf32>
    %53 = vector.shape_cast %52 : vector<16x32xf32> to vector<2x8x32xf32>
    %54 = vector.extract_strided_slice %50 {offsets = [0, 32], sizes = [16, 32], strides = [1, 1]} : vector<16x64xf32> to vector<16x32xf32>
    %55 = vector.shape_cast %54 : vector<16x32xf32> to vector<2x8x32xf32>
    %c0_23 = arith.constant 0 : index
    %c0_24 = arith.constant 0 : index
    %c0_25 = arith.constant 0 : index
    %56 = vector.load %arg7[%c0_23, %c0_24, %c0_25] : memref<2x32x32xbf16, #tpu.memory_space<vmem>>, vector<1x32x32xbf16>
    %57 = vector.shape_cast %56 : vector<1x32x32xbf16> to vector<32x32xbf16>
    %cst_26 = arith.constant 0.000000e+00 : f32
    %58 = vector.broadcast %cst_26 : f32 to vector<16x32xf32>
    %59 = vector.extract_strided_slice %51 {offsets = [0, 0, 0], sizes = [2, 8, 16], strides = [1, 1, 1]} : vector<2x8x32xf32> to vector<2x8x16xf32>
    %cst_27 = arith.constant 2.500000e-01 : f32
    %60 = vector.broadcast %cst_27 : f32 to vector<2x8x16xf32>
    %61 = arith.mulf %59, %60 : vector<2x8x16xf32>
    %62 = arith.truncf %61 : vector<2x8x16xf32> to vector<2x8x16xbf16>
    %63 = vector.extract_strided_slice %53 {offsets = [0, 0, 0], sizes = [2, 8, 16], strides = [1, 1, 1]} : vector<2x8x32xf32> to vector<2x8x16xf32>
    %64 = arith.truncf %63 : vector<2x8x16xf32> to vector<2x8x16xbf16>
    %65 = vector.extract_strided_slice %55 {offsets = [0, 0, 0], sizes = [2, 8, 16], strides = [1, 1, 1]} : vector<2x8x32xf32> to vector<2x8x16xf32>
    %66 = arith.truncf %65 : vector<2x8x16xf32> to vector<2x8x16xbf16>
    "tpu.trace_start"() <{level = 10 : i32, message = "bqd,bkd->bqk"}> : () -> ()
    %cst_28 = arith.constant dense<0.000000e+00> : vector<2x8x8xf32>
    %67 = tpu.matmul %62, %64, %cst_28 {dimension_numbers = #tpu.dot_dimension_numbers<[2], [2], [1], [1], [0, 0, 0, 1, 1, 1], [0], [0]>} : vector<2x8x16xbf16>, vector<2x8x16xbf16>, vector<2x8x8xf32> -> vector<2x8x8xf32>
    %cst_29 = arith.constant -1.000000e+30 : f32
    "tpu.trace_stop"() : () -> ()
    %68 = vector.shape_cast %5 : vector<1x8x8xi1> to vector<1x8x8xi1>
    %69 = vector.broadcast %68 : vector<1x8x8xi1> to vector<2x8x8xi1>
    %70 = vector.broadcast %cst_29 : f32 to vector<2x8x8xf32>
    %71 = arith.select %69, %67, %70 : vector<2x8x8xi1>, vector<2x8x8xf32>
    %cst_30 = arith.constant dense<0xFF800000> : vector<2x8xf32>
    %72 = vector.multi_reduction <maximumf>, %71, %cst_30 [2] : vector<2x8x8xf32> to vector<2x8xf32>
    %73 = vector.shape_cast %72 : vector<2x8xf32> to vector<2x8x1xf32>
    %74 = vector.broadcast %73 : vector<2x8x1xf32> to vector<2x8x8xf32>
    %75 = arith.subf %71, %74 : vector<2x8x8xf32>
    %76 = math.exp %75 : vector<2x8x8xf32>
    %cst_31 = arith.constant dense<0.000000e+00> : vector<2x8xf32>
    %77 = vector.multi_reduction <add>, %76, %cst_31 [2] : vector<2x8x8xf32> to vector<2x8xf32>
    %78 = vector.shape_cast %77 : vector<2x8xf32> to vector<2x8x1xf32>
    %79 = tpu.reciprocal %78 {approx = true} : vector<2x8x1xf32> -> vector<2x8x1xf32>
    %80 = vector.broadcast %79 : vector<2x8x1xf32> to vector<2x8x8xf32>
    %81 = arith.mulf %76, %80 : vector<2x8x8xf32>
    %82 = arith.truncf %81 : vector<2x8x8xf32> to vector<2x8x8xbf16>
    "tpu.trace_start"() <{level = 10 : i32, message = "bqk,bkd->bqd"}> : () -> ()
    %cst_32 = arith.constant dense<0.000000e+00> : vector<2x8x16xf32>
    %83 = tpu.matmul %82, %66, %cst_32 {dimension_numbers = #tpu.dot_dimension_numbers<[2], [1], [1], [2], [0, 0, 0, 1, 1, 2], [0], [0]>} : vector<2x8x8xbf16>, vector<2x8x16xbf16>, vector<2x8x16xf32> -> vector<2x8x16xf32>
    "tpu.trace_stop"() : () -> ()
    %84 = vector.shape_cast %83 : vector<2x8x16xf32> to vector<16x16xf32>
    %85 = arith.truncf %84 : vector<16x16xf32> to vector<16x16xbf16>
    %86 = vector.extract_strided_slice %57 {offsets = [0, 0], sizes = [16, 32], strides = [1, 1]} : vector<32x32xbf16> to vector<16x32xbf16>
    %cst_33 = arith.constant dense<0.000000e+00> : vector<16x32xf32>
    %87 = tpu.matmul %85, %86, %cst_33 {dimension_numbers = #tpu.dot_dimension_numbers<[1], [0], [0], [1], [0, 0, 1, 1], [], []>} : vector<16x16xbf16>, vector<16x32xbf16>, vector<16x32xf32> -> vector<16x32xf32>
    %88 = arith.addf %58, %87 : vector<16x32xf32>
    %89 = vector.extract_strided_slice %51 {offsets = [0, 0, 16], sizes = [2, 8, 16], strides = [1, 1, 1]} : vector<2x8x32xf32> to vector<2x8x16xf32>
    %cst_34 = arith.constant 2.500000e-01 : f32
    %90 = vector.broadcast %cst_34 : f32 to vector<2x8x16xf32>
    %91 = arith.mulf %89, %90 : vector<2x8x16xf32>
    %92 = arith.truncf %91 : vector<2x8x16xf32> to vector<2x8x16xbf16>
    %93 = vector.extract_strided_slice %53 {offsets = [0, 0, 16], sizes = [2, 8, 16], strides = [1, 1, 1]} : vector<2x8x32xf32> to vector<2x8x16xf32>
    %94 = arith.truncf %93 : vector<2x8x16xf32> to vector<2x8x16xbf16>
    %95 = vector.extract_strided_slice %55 {offsets = [0, 0, 16], sizes = [2, 8, 16], strides = [1, 1, 1]} : vector<2x8x32xf32> to vector<2x8x16xf32>
    %96 = arith.truncf %95 : vector<2x8x16xf32> to vector<2x8x16xbf16>
    "tpu.trace_start"() <{level = 10 : i32, message = "bqd,bkd->bqk"}> : () -> ()
    %cst_35 = arith.constant dense<0.000000e+00> : vector<2x8x8xf32>
    %97 = tpu.matmul %92, %94, %cst_35 {dimension_numbers = #tpu.dot_dimension_numbers<[2], [2], [1], [1], [0, 0, 0, 1, 1, 1], [0], [0]>} : vector<2x8x16xbf16>, vector<2x8x16xbf16>, vector<2x8x8xf32> -> vector<2x8x8xf32>
    %cst_36 = arith.constant -1.000000e+30 : f32
    "tpu.trace_stop"() : () -> ()
    %98 = vector.shape_cast %5 : vector<1x8x8xi1> to vector<1x8x8xi1>
    %99 = vector.broadcast %98 : vector<1x8x8xi1> to vector<2x8x8xi1>
    %100 = vector.broadcast %cst_36 : f32 to vector<2x8x8xf32>
    %101 = arith.select %99, %97, %100 : vector<2x8x8xi1>, vector<2x8x8xf32>
    %cst_37 = arith.constant dense<0xFF800000> : vector<2x8xf32>
    %102 = vector.multi_reduction <maximumf>, %101, %cst_37 [2] : vector<2x8x8xf32> to vector<2x8xf32>
    %103 = vector.shape_cast %102 : vector<2x8xf32> to vector<2x8x1xf32>
    %104 = vector.broadcast %103 : vector<2x8x1xf32> to vector<2x8x8xf32>
    %105 = arith.subf %101, %104 : vector<2x8x8xf32>
    %106 = math.exp %105 : vector<2x8x8xf32>
    %cst_38 = arith.constant dense<0.000000e+00> : vector<2x8xf32>
    %107 = vector.multi_reduction <add>, %106, %cst_38 [2] : vector<2x8x8xf32> to vector<2x8xf32>
    %108 = vector.shape_cast %107 : vector<2x8xf32> to vector<2x8x1xf32>
    %109 = tpu.reciprocal %108 {approx = true} : vector<2x8x1xf32> -> vector<2x8x1xf32>
    %110 = vector.broadcast %109 : vector<2x8x1xf32> to vector<2x8x8xf32>
    %111 = arith.mulf %106, %110 : vector<2x8x8xf32>
    %112 = arith.truncf %111 : vector<2x8x8xf32> to vector<2x8x8xbf16>
    "tpu.trace_start"() <{level = 10 : i32, message = "bqk,bkd->bqd"}> : () -> ()
    %cst_39 = arith.constant dense<0.000000e+00> : vector<2x8x16xf32>
    %113 = tpu.matmul %112, %96, %cst_39 {dimension_numbers = #tpu.dot_dimension_numbers<[2], [1], [1], [2], [0, 0, 0, 1, 1, 2], [0], [0]>} : vector<2x8x8xbf16>, vector<2x8x16xbf16>, vector<2x8x16xf32> -> vector<2x8x16xf32>
    "tpu.trace_stop"() : () -> ()
    %114 = vector.shape_cast %113 : vector<2x8x16xf32> to vector<16x16xf32>
    %115 = arith.truncf %114 : vector<16x16xf32> to vector<16x16xbf16>
    %116 = vector.extract_strided_slice %57 {offsets = [16, 0], sizes = [16, 32], strides = [1, 1]} : vector<32x32xbf16> to vector<16x32xbf16>
    %cst_40 = arith.constant dense<0.000000e+00> : vector<16x32xf32>
    %117 = tpu.matmul %115, %116, %cst_40 {dimension_numbers = #tpu.dot_dimension_numbers<[1], [0], [0], [1], [0, 0, 1, 1], [], []>} : vector<16x16xbf16>, vector<16x32xbf16>, vector<16x32xf32> -> vector<16x32xf32>
    %118 = arith.addf %88, %117 : vector<16x32xf32>
    %c0_41 = arith.constant 0 : index
    %c0_42 = arith.constant 0 : index
    %c0_43 = arith.constant 0 : index
    %119 = vector.load %arg8[%c0_41, %c0_42, %c0_43] : memref<2x1x32xf32, #tpu.memory_space<vmem>>, vector<1x1x32xf32>
    %120 = vector.shape_cast %119 : vector<1x1x32xf32> to vector<1x32xf32>
    %121 = vector.broadcast %120 : vector<1x32xf32> to vector<16x32xf32>
    %122 = arith.addf %118, %121 : vector<16x32xf32>
    %123 = arith.addf %34, %122 : vector<16x32xf32>
    %c0_44 = arith.constant 0 : index
    %c0_45 = arith.constant 0 : index
    %c0_46 = arith.constant 0 : index
    %124 = vector.load %arg9[%c0_44, %c0_45, %c0_46] : memref<2x1x32xf32, #tpu.memory_space<vmem>>, vector<1x1x32xf32>
    %125 = vector.shape_cast %124 : vector<1x1x32xf32> to vector<1x32xf32>
    %c0_47 = arith.constant 0 : index
    %c0_48 = arith.constant 0 : index
    %c0_49 = arith.constant 0 : index
    %126 = vector.load %arg10[%c0_47, %c0_48, %c0_49] : memref<2x1x32xf32, #tpu.memory_space<vmem>>, vector<1x1x32xf32>
    %127 = vector.shape_cast %126 : vector<1x1x32xf32> to vector<1x32xf32>
    %cst_50 = arith.constant dense<0.000000e+00> : vector<16xf32>
    %128 = vector.multi_reduction <add>, %123, %cst_50 [1] : vector<16x32xf32> to vector<16xf32>
    %129 = vector.shape_cast %128 : vector<16xf32> to vector<16x1xf32>
    %cst_51 = arith.constant 3.200000e+01 : f32
    %130 = vector.broadcast %cst_51 : f32 to vector<16x1xf32>
    %131 = arith.divf %129, %130 : vector<16x1xf32>
    %132 = vector.broadcast %131 : vector<16x1xf32> to vector<16x32xf32>
    %133 = arith.subf %123, %132 : vector<16x32xf32>
    %134 = arith.mulf %133, %133 : vector<16x32xf32>
    %cst_52 = arith.constant dense<0.000000e+00> : vector<16xf32>
    %135 = vector.multi_reduction <add>, %134, %cst_52 [1] : vector<16x32xf32> to vector<16xf32>
    %136 = vector.shape_cast %135 : vector<16xf32> to vector<16x1xf32>
    %cst_53 = arith.constant 3.200000e+01 : f32
    %137 = vector.broadcast %cst_53 : f32 to vector<16x1xf32>
    %138 = arith.divf %136, %137 : vector<16x1xf32>
    %139 = vector.broadcast %131 : vector<16x1xf32> to vector<16x32xf32>
    %140 = arith.subf %123, %139 : vector<16x32xf32>
    %cst_54 = arith.constant 9.99999993E-9 : f32
    %141 = vector.broadcast %cst_54 : f32 to vector<16x1xf32>
    %142 = arith.addf %138, %141 : vector<16x1xf32>
    %143 = math.rsqrt %142 : vector<16x1xf32>
    %144 = vector.broadcast %143 : vector<16x1xf32> to vector<16x32xf32>
    %145 = arith.mulf %140, %144 : vector<16x32xf32>
    %146 = vector.broadcast %125 : vector<1x32xf32> to vector<16x32xf32>
    %147 = arith.mulf %145, %146 : vector<16x32xf32>
    %148 = vector.broadcast %127 : vector<1x32xf32> to vector<16x32xf32>
    %149 = arith.addf %147, %148 : vector<16x32xf32>
    %150 = arith.truncf %149 : vector<16x32xf32> to vector<16x32xbf16>
    %c0_55 = arith.constant 0 : index
    %c0_56 = arith.constant 0 : index
    %c0_57 = arith.constant 0 : index
    %151 = vector.load %arg11[%c0_55, %c0_56, %c0_57] : memref<2x32x32xbf16, #tpu.memory_space<vmem>>, vector<1x32x32xbf16>
    %152 = vector.shape_cast %151 : vector<1x32x32xbf16> to vector<32x32xbf16>
    %cst_58 = arith.constant dense<0.000000e+00> : vector<16x32xf32>
    %153 = tpu.matmul %150, %152, %cst_58 {dimension_numbers = #tpu.dot_dimension_numbers<[1], [0], [0], [1], [0, 0, 1, 1], [], []>} : vector<16x32xbf16>, vector<32x32xbf16>, vector<16x32xf32> -> vector<16x32xf32>
    %c0_59 = arith.constant 0 : index
    %c0_60 = arith.constant 0 : index
    %c0_61 = arith.constant 0 : index
    %154 = vector.load %arg12[%c0_59, %c0_60, %c0_61] : memref<2x1x32xf32, #tpu.memory_space<vmem>>, vector<1x1x32xf32>
    %155 = vector.shape_cast %154 : vector<1x1x32xf32> to vector<1x32xf32>
    %156 = vector.broadcast %155 : vector<1x32xf32> to vector<16x32xf32>
    %157 = arith.addf %153, %156 : vector<16x32xf32>
    %cst_62 = arith.constant 0.000000e+00 : f32
    %158 = vector.broadcast %cst_62 : f32 to vector<16x32xf32>
    %159 = arith.maximumf %157, %158 : vector<16x32xf32>
    %160 = arith.truncf %159 : vector<16x32xf32> to vector<16x32xbf16>
    %c0_63 = arith.constant 0 : index
    %c0_64 = arith.constant 0 : index
    %c0_65 = arith.constant 0 : index
    %161 = vector.load %arg13[%c0_63, %c0_64, %c0_65] : memref<2x32x32xbf16, #tpu.memory_space<vmem>>, vector<1x32x32xbf16>
    %162 = vector.shape_cast %161 : vector<1x32x32xbf16> to vector<32x32xbf16>
    %cst_66 = arith.constant dense<0.000000e+00> : vector<16x32xf32>
    %163 = tpu.matmul %160, %162, %cst_66 {dimension_numbers = #tpu.dot_dimension_numbers<[1], [0], [0], [1], [0, 0, 1, 1], [], []>} : vector<16x32xbf16>, vector<32x32xbf16>, vector<16x32xf32> -> vector<16x32xf32>
    %c0_67 = arith.constant 0 : index
    %c0_68 = arith.constant 0 : index
    %c0_69 = arith.constant 0 : index
    %164 = vector.load %arg14[%c0_67, %c0_68, %c0_69] : memref<2x1x32xf32, #tpu.memory_space<vmem>>, vector<1x1x32xf32>
    %165 = vector.shape_cast %164 : vector<1x1x32xf32> to vector<1x32xf32>
    %166 = vector.broadcast %165 : vector<1x32xf32> to vector<16x32xf32>
    %167 = arith.addf %163, %166 : vector<16x32xf32>
    %168 = arith.addf %167, %149 : vector<16x32xf32>
    %169 = vector.shape_cast %168 : vector<16x32xf32> to vector<2x8x32xf32>
    %170 = vector.broadcast %1 : vector<2x8x1xf32> to vector<2x8x32xf32>
    %171 = arith.mulf %169, %170 : vector<2x8x32xf32>
    %172 = vector.shape_cast %171 : vector<2x8x32xf32> to vector<16x32xf32>
    %c1 = arith.constant 1 : index
    %c0_70 = arith.constant 0 : index
    %c0_71 = arith.constant 0 : index
    %173 = vector.load %arg3[%c1, %c0_70, %c0_71] : memref<2x1x32xf32, #tpu.memory_space<vmem>>, vector<1x1x32xf32>
    %174 = vector.shape_cast %173 : vector<1x1x32xf32> to vector<1x32xf32>
    %c1_72 = arith.constant 1 : index
    %c0_73 = arith.constant 0 : index
    %c0_74 = arith.constant 0 : index
    %175 = vector.load %arg4[%c1_72, %c0_73, %c0_74] : memref<2x1x32xf32, #tpu.memory_space<vmem>>, vector<1x1x32xf32>
    %176 = vector.shape_cast %175 : vector<1x1x32xf32> to vector<1x32xf32>
    %cst_75 = arith.constant dense<0.000000e+00> : vector<16xf32>
    %177 = vector.multi_reduction <add>, %172, %cst_75 [1] : vector<16x32xf32> to vector<16xf32>
    %178 = vector.shape_cast %177 : vector<16xf32> to vector<16x1xf32>
    %cst_76 = arith.constant 3.200000e+01 : f32
    %179 = vector.broadcast %cst_76 : f32 to vector<16x1xf32>
    %180 = arith.divf %178, %179 : vector<16x1xf32>
    %181 = vector.broadcast %180 : vector<16x1xf32> to vector<16x32xf32>
    %182 = arith.subf %172, %181 : vector<16x32xf32>
    %183 = arith.mulf %182, %182 : vector<16x32xf32>
    %cst_77 = arith.constant dense<0.000000e+00> : vector<16xf32>
    %184 = vector.multi_reduction <add>, %183, %cst_77 [1] : vector<16x32xf32> to vector<16xf32>
    %185 = vector.shape_cast %184 : vector<16xf32> to vector<16x1xf32>
    %cst_78 = arith.constant 3.200000e+01 : f32
    %186 = vector.broadcast %cst_78 : f32 to vector<16x1xf32>
    %187 = arith.divf %185, %186 : vector<16x1xf32>
    %188 = vector.broadcast %180 : vector<16x1xf32> to vector<16x32xf32>
    %189 = arith.subf %172, %188 : vector<16x32xf32>
    %cst_79 = arith.constant 9.99999993E-9 : f32
    %190 = vector.broadcast %cst_79 : f32 to vector<16x1xf32>
    %191 = arith.addf %187, %190 : vector<16x1xf32>
    %192 = math.rsqrt %191 : vector<16x1xf32>
    %193 = vector.broadcast %192 : vector<16x1xf32> to vector<16x32xf32>
    %194 = arith.mulf %189, %193 : vector<16x32xf32>
    %195 = vector.broadcast %174 : vector<1x32xf32> to vector<16x32xf32>
    %196 = arith.mulf %194, %195 : vector<16x32xf32>
    %197 = vector.broadcast %176 : vector<1x32xf32> to vector<16x32xf32>
    %198 = arith.addf %196, %197 : vector<16x32xf32>
    %c1_80 = arith.constant 1 : index
    %c0_81 = arith.constant 0 : index
    %c0_82 = arith.constant 0 : index
    %199 = vector.load %arg5[%c1_80, %c0_81, %c0_82] : memref<2x32x96xbf16, #tpu.memory_space<vmem>>, vector<1x32x96xbf16>
    %200 = vector.shape_cast %199 : vector<1x32x96xbf16> to vector<32x96xbf16>
    %c1_83 = arith.constant 1 : index
    %c0_84 = arith.constant 0 : index
    %c0_85 = arith.constant 0 : index
    %201 = vector.load %arg6[%c1_83, %c0_84, %c0_85] : memref<2x1x96xf32, #tpu.memory_space<vmem>>, vector<1x1x96xf32>
    %202 = vector.shape_cast %201 : vector<1x1x96xf32> to vector<1x96xf32>
    %203 = arith.truncf %198 : vector<16x32xf32> to vector<16x32xbf16>
    %204 = vector.extract_strided_slice %200 {offsets = [0, 0], sizes = [32, 32], strides = [1, 1]} : vector<32x96xbf16> to vector<32x32xbf16>
    %cst_86 = arith.constant dense<0.000000e+00> : vector<16x32xf32>
    %205 = tpu.matmul %203, %204, %cst_86 {dimension_numbers = #tpu.dot_dimension_numbers<[1], [0], [0], [1], [0, 0, 1, 1], [], []>} : vector<16x32xbf16>, vector<32x32xbf16>, vector<16x32xf32> -> vector<16x32xf32>
    %206 = vector.extract_strided_slice %202 {offsets = [0, 0], sizes = [1, 32], strides = [1, 1]} : vector<1x96xf32> to vector<1x32xf32>
    %207 = vector.broadcast %206 : vector<1x32xf32> to vector<16x32xf32>
    %208 = arith.addf %205, %207 : vector<16x32xf32>
    %209 = arith.truncf %172 : vector<16x32xf32> to vector<16x32xbf16>
    %210 = vector.extract_strided_slice %200 {offsets = [0, 32], sizes = [32, 64], strides = [1, 1]} : vector<32x96xbf16> to vector<32x64xbf16>
    %cst_87 = arith.constant dense<0.000000e+00> : vector<16x64xf32>
    %211 = tpu.matmul %209, %210, %cst_87 {dimension_numbers = #tpu.dot_dimension_numbers<[1], [0], [0], [1], [0, 0, 1, 1], [], []>} : vector<16x32xbf16>, vector<32x64xbf16>, vector<16x64xf32> -> vector<16x64xf32>
    %212 = vector.extract_strided_slice %202 {offsets = [0, 32], sizes = [1, 64], strides = [1, 1]} : vector<1x96xf32> to vector<1x64xf32>
    %213 = vector.broadcast %212 : vector<1x64xf32> to vector<16x64xf32>
    %214 = arith.addf %211, %213 : vector<16x64xf32>
    %215 = vector.shape_cast %208 : vector<16x32xf32> to vector<2x8x32xf32>
    %216 = vector.extract_strided_slice %214 {offsets = [0, 0], sizes = [16, 32], strides = [1, 1]} : vector<16x64xf32> to vector<16x32xf32>
    %217 = vector.shape_cast %216 : vector<16x32xf32> to vector<2x8x32xf32>
    %218 = vector.extract_strided_slice %214 {offsets = [0, 32], sizes = [16, 32], strides = [1, 1]} : vector<16x64xf32> to vector<16x32xf32>
    %219 = vector.shape_cast %218 : vector<16x32xf32> to vector<2x8x32xf32>
    %c1_88 = arith.constant 1 : index
    %c0_89 = arith.constant 0 : index
    %c0_90 = arith.constant 0 : index
    %220 = vector.load %arg7[%c1_88, %c0_89, %c0_90] : memref<2x32x32xbf16, #tpu.memory_space<vmem>>, vector<1x32x32xbf16>
    %221 = vector.shape_cast %220 : vector<1x32x32xbf16> to vector<32x32xbf16>
    %cst_91 = arith.constant 0.000000e+00 : f32
    %222 = vector.broadcast %cst_91 : f32 to vector<16x32xf32>
    %223 = vector.extract_strided_slice %215 {offsets = [0, 0, 0], sizes = [2, 8, 16], strides = [1, 1, 1]} : vector<2x8x32xf32> to vector<2x8x16xf32>
    %cst_92 = arith.constant 2.500000e-01 : f32
    %224 = vector.broadcast %cst_92 : f32 to vector<2x8x16xf32>
    %225 = arith.mulf %223, %224 : vector<2x8x16xf32>
    %226 = arith.truncf %225 : vector<2x8x16xf32> to vector<2x8x16xbf16>
    %227 = vector.extract_strided_slice %217 {offsets = [0, 0, 0], sizes = [2, 8, 16], strides = [1, 1, 1]} : vector<2x8x32xf32> to vector<2x8x16xf32>
    %228 = arith.truncf %227 : vector<2x8x16xf32> to vector<2x8x16xbf16>
    %229 = vector.extract_strided_slice %219 {offsets = [0, 0, 0], sizes = [2, 8, 16], strides = [1, 1, 1]} : vector<2x8x32xf32> to vector<2x8x16xf32>
    %230 = arith.truncf %229 : vector<2x8x16xf32> to vector<2x8x16xbf16>
    "tpu.trace_start"() <{level = 10 : i32, message = "bqd,bkd->bqk"}> : () -> ()
    %cst_93 = arith.constant dense<0.000000e+00> : vector<2x8x8xf32>
    %231 = tpu.matmul %226, %228, %cst_93 {dimension_numbers = #tpu.dot_dimension_numbers<[2], [2], [1], [1], [0, 0, 0, 1, 1, 1], [0], [0]>} : vector<2x8x16xbf16>, vector<2x8x16xbf16>, vector<2x8x8xf32> -> vector<2x8x8xf32>
    %cst_94 = arith.constant -1.000000e+30 : f32
    "tpu.trace_stop"() : () -> ()
    %232 = vector.shape_cast %5 : vector<1x8x8xi1> to vector<1x8x8xi1>
    %233 = vector.broadcast %232 : vector<1x8x8xi1> to vector<2x8x8xi1>
    %234 = vector.broadcast %cst_94 : f32 to vector<2x8x8xf32>
    %235 = arith.select %233, %231, %234 : vector<2x8x8xi1>, vector<2x8x8xf32>
    %cst_95 = arith.constant dense<0xFF800000> : vector<2x8xf32>
    %236 = vector.multi_reduction <maximumf>, %235, %cst_95 [2] : vector<2x8x8xf32> to vector<2x8xf32>
    %237 = vector.shape_cast %236 : vector<2x8xf32> to vector<2x8x1xf32>
    %238 = vector.broadcast %237 : vector<2x8x1xf32> to vector<2x8x8xf32>
    %239 = arith.subf %235, %238 : vector<2x8x8xf32>
    %240 = math.exp %239 : vector<2x8x8xf32>
    %cst_96 = arith.constant dense<0.000000e+00> : vector<2x8xf32>
    %241 = vector.multi_reduction <add>, %240, %cst_96 [2] : vector<2x8x8xf32> to vector<2x8xf32>
    %242 = vector.shape_cast %241 : vector<2x8xf32> to vector<2x8x1xf32>
    %243 = tpu.reciprocal %242 {approx = true} : vector<2x8x1xf32> -> vector<2x8x1xf32>
    %244 = vector.broadcast %243 : vector<2x8x1xf32> to vector<2x8x8xf32>
    %245 = arith.mulf %240, %244 : vector<2x8x8xf32>
    %246 = arith.truncf %245 : vector<2x8x8xf32> to vector<2x8x8xbf16>
    "tpu.trace_start"() <{level = 10 : i32, message = "bqk,bkd->bqd"}> : () -> ()
    %cst_97 = arith.constant dense<0.000000e+00> : vector<2x8x16xf32>
    %247 = tpu.matmul %246, %230, %cst_97 {dimension_numbers = #tpu.dot_dimension_numbers<[2], [1], [1], [2], [0, 0, 0, 1, 1, 2], [0], [0]>} : vector<2x8x8xbf16>, vector<2x8x16xbf16>, vector<2x8x16xf32> -> vector<2x8x16xf32>
    "tpu.trace_stop"() : () -> ()
    %248 = vector.shape_cast %247 : vector<2x8x16xf32> to vector<16x16xf32>
    %249 = arith.truncf %248 : vector<16x16xf32> to vector<16x16xbf16>
    %250 = vector.extract_strided_slice %221 {offsets = [0, 0], sizes = [16, 32], strides = [1, 1]} : vector<32x32xbf16> to vector<16x32xbf16>
    %cst_98 = arith.constant dense<0.000000e+00> : vector<16x32xf32>
    %251 = tpu.matmul %249, %250, %cst_98 {dimension_numbers = #tpu.dot_dimension_numbers<[1], [0], [0], [1], [0, 0, 1, 1], [], []>} : vector<16x16xbf16>, vector<16x32xbf16>, vector<16x32xf32> -> vector<16x32xf32>
    %252 = arith.addf %222, %251 : vector<16x32xf32>
    %253 = vector.extract_strided_slice %215 {offsets = [0, 0, 16], sizes = [2, 8, 16], strides = [1, 1, 1]} : vector<2x8x32xf32> to vector<2x8x16xf32>
    %cst_99 = arith.constant 2.500000e-01 : f32
    %254 = vector.broadcast %cst_99 : f32 to vector<2x8x16xf32>
    %255 = arith.mulf %253, %254 : vector<2x8x16xf32>
    %256 = arith.truncf %255 : vector<2x8x16xf32> to vector<2x8x16xbf16>
    %257 = vector.extract_strided_slice %217 {offsets = [0, 0, 16], sizes = [2, 8, 16], strides = [1, 1, 1]} : vector<2x8x32xf32> to vector<2x8x16xf32>
    %258 = arith.truncf %257 : vector<2x8x16xf32> to vector<2x8x16xbf16>
    %259 = vector.extract_strided_slice %219 {offsets = [0, 0, 16], sizes = [2, 8, 16], strides = [1, 1, 1]} : vector<2x8x32xf32> to vector<2x8x16xf32>
    %260 = arith.truncf %259 : vector<2x8x16xf32> to vector<2x8x16xbf16>
    "tpu.trace_start"() <{level = 10 : i32, message = "bqd,bkd->bqk"}> : () -> ()
    %cst_100 = arith.constant dense<0.000000e+00> : vector<2x8x8xf32>
    %261 = tpu.matmul %256, %258, %cst_100 {dimension_numbers = #tpu.dot_dimension_numbers<[2], [2], [1], [1], [0, 0, 0, 1, 1, 1], [0], [0]>} : vector<2x8x16xbf16>, vector<2x8x16xbf16>, vector<2x8x8xf32> -> vector<2x8x8xf32>
    %cst_101 = arith.constant -1.000000e+30 : f32
    "tpu.trace_stop"() : () -> ()
    %262 = vector.shape_cast %5 : vector<1x8x8xi1> to vector<1x8x8xi1>
    %263 = vector.broadcast %262 : vector<1x8x8xi1> to vector<2x8x8xi1>
    %264 = vector.broadcast %cst_101 : f32 to vector<2x8x8xf32>
    %265 = arith.select %263, %261, %264 : vector<2x8x8xi1>, vector<2x8x8xf32>
    %cst_102 = arith.constant dense<0xFF800000> : vector<2x8xf32>
    %266 = vector.multi_reduction <maximumf>, %265, %cst_102 [2] : vector<2x8x8xf32> to vector<2x8xf32>
    %267 = vector.shape_cast %266 : vector<2x8xf32> to vector<2x8x1xf32>
    %268 = vector.broadcast %267 : vector<2x8x1xf32> to vector<2x8x8xf32>
    %269 = arith.subf %265, %268 : vector<2x8x8xf32>
    %270 = math.exp %269 : vector<2x8x8xf32>
    %cst_103 = arith.constant dense<0.000000e+00> : vector<2x8xf32>
    %271 = vector.multi_reduction <add>, %270, %cst_103 [2] : vector<2x8x8xf32> to vector<2x8xf32>
    %272 = vector.shape_cast %271 : vector<2x8xf32> to vector<2x8x1xf32>
    %273 = tpu.reciprocal %272 {approx = true} : vector<2x8x1xf32> -> vector<2x8x1xf32>
    %274 = vector.broadcast %273 : vector<2x8x1xf32> to vector<2x8x8xf32>
    %275 = arith.mulf %270, %274 : vector<2x8x8xf32>
    %276 = arith.truncf %275 : vector<2x8x8xf32> to vector<2x8x8xbf16>
    "tpu.trace_start"() <{level = 10 : i32, message = "bqk,bkd->bqd"}> : () -> ()
    %cst_104 = arith.constant dense<0.000000e+00> : vector<2x8x16xf32>
    %277 = tpu.matmul %276, %260, %cst_104 {dimension_numbers = #tpu.dot_dimension_numbers<[2], [1], [1], [2], [0, 0, 0, 1, 1, 2], [0], [0]>} : vector<2x8x8xbf16>, vector<2x8x16xbf16>, vector<2x8x16xf32> -> vector<2x8x16xf32>
    "tpu.trace_stop"() : () -> ()
    %278 = vector.shape_cast %277 : vector<2x8x16xf32> to vector<16x16xf32>
    %279 = arith.truncf %278 : vector<16x16xf32> to vector<16x16xbf16>
    %280 = vector.extract_strided_slice %221 {offsets = [16, 0], sizes = [16, 32], strides = [1, 1]} : vector<32x32xbf16> to vector<16x32xbf16>
    %cst_105 = arith.constant dense<0.000000e+00> : vector<16x32xf32>
    %281 = tpu.matmul %279, %280, %cst_105 {dimension_numbers = #tpu.dot_dimension_numbers<[1], [0], [0], [1], [0, 0, 1, 1], [], []>} : vector<16x16xbf16>, vector<16x32xbf16>, vector<16x32xf32> -> vector<16x32xf32>
    %282 = arith.addf %252, %281 : vector<16x32xf32>
    %c1_106 = arith.constant 1 : index
    %c0_107 = arith.constant 0 : index
    %c0_108 = arith.constant 0 : index
    %283 = vector.load %arg8[%c1_106, %c0_107, %c0_108] : memref<2x1x32xf32, #tpu.memory_space<vmem>>, vector<1x1x32xf32>
    %284 = vector.shape_cast %283 : vector<1x1x32xf32> to vector<1x32xf32>
    %285 = vector.broadcast %284 : vector<1x32xf32> to vector<16x32xf32>
    %286 = arith.addf %282, %285 : vector<16x32xf32>
    %287 = arith.addf %198, %286 : vector<16x32xf32>
    %c1_109 = arith.constant 1 : index
    %c0_110 = arith.constant 0 : index
    %c0_111 = arith.constant 0 : index
    %288 = vector.load %arg9[%c1_109, %c0_110, %c0_111] : memref<2x1x32xf32, #tpu.memory_space<vmem>>, vector<1x1x32xf32>
    %289 = vector.shape_cast %288 : vector<1x1x32xf32> to vector<1x32xf32>
    %c1_112 = arith.constant 1 : index
    %c0_113 = arith.constant 0 : index
    %c0_114 = arith.constant 0 : index
    %290 = vector.load %arg10[%c1_112, %c0_113, %c0_114] : memref<2x1x32xf32, #tpu.memory_space<vmem>>, vector<1x1x32xf32>
    %291 = vector.shape_cast %290 : vector<1x1x32xf32> to vector<1x32xf32>
    %cst_115 = arith.constant dense<0.000000e+00> : vector<16xf32>
    %292 = vector.multi_reduction <add>, %287, %cst_115 [1] : vector<16x32xf32> to vector<16xf32>
    %293 = vector.shape_cast %292 : vector<16xf32> to vector<16x1xf32>
    %cst_116 = arith.constant 3.200000e+01 : f32
    %294 = vector.broadcast %cst_116 : f32 to vector<16x1xf32>
    %295 = arith.divf %293, %294 : vector<16x1xf32>
    %296 = vector.broadcast %295 : vector<16x1xf32> to vector<16x32xf32>
    %297 = arith.subf %287, %296 : vector<16x32xf32>
    %298 = arith.mulf %297, %297 : vector<16x32xf32>
    %cst_117 = arith.constant dense<0.000000e+00> : vector<16xf32>
    %299 = vector.multi_reduction <add>, %298, %cst_117 [1] : vector<16x32xf32> to vector<16xf32>
    %300 = vector.shape_cast %299 : vector<16xf32> to vector<16x1xf32>
    %cst_118 = arith.constant 3.200000e+01 : f32
    %301 = vector.broadcast %cst_118 : f32 to vector<16x1xf32>
    %302 = arith.divf %300, %301 : vector<16x1xf32>
    %303 = vector.broadcast %295 : vector<16x1xf32> to vector<16x32xf32>
    %304 = arith.subf %287, %303 : vector<16x32xf32>
    %cst_119 = arith.constant 9.99999993E-9 : f32
    %305 = vector.broadcast %cst_119 : f32 to vector<16x1xf32>
    %306 = arith.addf %302, %305 : vector<16x1xf32>
    %307 = math.rsqrt %306 : vector<16x1xf32>
    %308 = vector.broadcast %307 : vector<16x1xf32> to vector<16x32xf32>
    %309 = arith.mulf %304, %308 : vector<16x32xf32>
    %310 = vector.broadcast %289 : vector<1x32xf32> to vector<16x32xf32>
    %311 = arith.mulf %309, %310 : vector<16x32xf32>
    %312 = vector.broadcast %291 : vector<1x32xf32> to vector<16x32xf32>
    %313 = arith.addf %311, %312 : vector<16x32xf32>
    %314 = arith.truncf %313 : vector<16x32xf32> to vector<16x32xbf16>
    %c1_120 = arith.constant 1 : index
    %c0_121 = arith.constant 0 : index
    %c0_122 = arith.constant 0 : index
    %315 = vector.load %arg11[%c1_120, %c0_121, %c0_122] : memref<2x32x32xbf16, #tpu.memory_space<vmem>>, vector<1x32x32xbf16>
    %316 = vector.shape_cast %315 : vector<1x32x32xbf16> to vector<32x32xbf16>
    %cst_123 = arith.constant dense<0.000000e+00> : vector<16x32xf32>
    %317 = tpu.matmul %314, %316, %cst_123 {dimension_numbers = #tpu.dot_dimension_numbers<[1], [0], [0], [1], [0, 0, 1, 1], [], []>} : vector<16x32xbf16>, vector<32x32xbf16>, vector<16x32xf32> -> vector<16x32xf32>
    %c1_124 = arith.constant 1 : index
    %c0_125 = arith.constant 0 : index
    %c0_126 = arith.constant 0 : index
    %318 = vector.load %arg12[%c1_124, %c0_125, %c0_126] : memref<2x1x32xf32, #tpu.memory_space<vmem>>, vector<1x1x32xf32>
    %319 = vector.shape_cast %318 : vector<1x1x32xf32> to vector<1x32xf32>
    %320 = vector.broadcast %319 : vector<1x32xf32> to vector<16x32xf32>
    %321 = arith.addf %317, %320 : vector<16x32xf32>
    %cst_127 = arith.constant 0.000000e+00 : f32
    %322 = vector.broadcast %cst_127 : f32 to vector<16x32xf32>
    %323 = arith.maximumf %321, %322 : vector<16x32xf32>
    %324 = arith.truncf %323 : vector<16x32xf32> to vector<16x32xbf16>
    %c1_128 = arith.constant 1 : index
    %c0_129 = arith.constant 0 : index
    %c0_130 = arith.constant 0 : index
    %325 = vector.load %arg13[%c1_128, %c0_129, %c0_130] : memref<2x32x32xbf16, #tpu.memory_space<vmem>>, vector<1x32x32xbf16>
    %326 = vector.shape_cast %325 : vector<1x32x32xbf16> to vector<32x32xbf16>
    %cst_131 = arith.constant dense<0.000000e+00> : vector<16x32xf32>
    %327 = tpu.matmul %324, %326, %cst_131 {dimension_numbers = #tpu.dot_dimension_numbers<[1], [0], [0], [1], [0, 0, 1, 1], [], []>} : vector<16x32xbf16>, vector<32x32xbf16>, vector<16x32xf32> -> vector<16x32xf32>
    %c1_132 = arith.constant 1 : index
    %c0_133 = arith.constant 0 : index
    %c0_134 = arith.constant 0 : index
    %328 = vector.load %arg14[%c1_132, %c0_133, %c0_134] : memref<2x1x32xf32, #tpu.memory_space<vmem>>, vector<1x1x32xf32>
    %329 = vector.shape_cast %328 : vector<1x1x32xf32> to vector<1x32xf32>
    %330 = vector.broadcast %329 : vector<1x32xf32> to vector<16x32xf32>
    %331 = arith.addf %327, %330 : vector<16x32xf32>
    %332 = arith.addf %331, %313 : vector<16x32xf32>
    %333 = vector.shape_cast %332 : vector<16x32xf32> to vector<2x8x32xf32>
    %334 = vector.broadcast %1 : vector<2x8x1xf32> to vector<2x8x32xf32>
    %335 = arith.mulf %333, %334 : vector<2x8x32xf32>
    %336 = vector.shape_cast %335 : vector<2x8x32xf32> to vector<16x32xf32>
    %337 = vector.shape_cast %336 : vector<16x32xf32> to vector<2x8x32xf32>
    %338 = arith.truncf %337 : vector<2x8x32xf32> to vector<2x8x32xbf16>
    %c0_135 = arith.constant 0 : index
    %c0_136 = arith.constant 0 : index
    %c0_137 = arith.constant 0 : index
    %339 = vector.load %arg15[%c0_135, %c0_136, %c0_137] : memref<2x8x32xbf16, #tpu.memory_space<vmem>>, vector<2x8x32xbf16>
    tpu.vector_store %arg15[%c0_135, %c0_136, %c0_137], %338 {strides = array<i32>} : memref<2x8x32xbf16, #tpu.memory_space<vmem>>, vector<2x8x32xbf16>,
    return
  }
  func.func @transform_0(%arg0: i32) -> (i32, i32, i32) {
    %c0_i32 = arith.constant 0 : i32
    %c0_i32_0 = arith.constant 0 : i32
    %c0_i32_1 = arith.constant 0 : i32
    return %arg0, %c0_i32, %c0_i32_0 : i32, i32, i32
  }
  func.func @transform_1(%arg0: i32) -> (i32, i32, i32) {
    %c0_i32 = arith.constant 0 : i32
    %c0_i32_0 = arith.constant 0 : i32
    %c0_i32_1 = arith.constant 0 : i32
    return %arg0, %c0_i32, %c0_i32_0 : i32, i32, i32
  }
  func.func @transform_2(%arg0: i32) -> (i32, i32, i32) {
    %c0_i32 = arith.constant 0 : i32
    %c0_i32_0 = arith.constant 0 : i32
    %c0_i32_1 = arith.constant 0 : i32
    %c0_i32_2 = arith.constant 0 : i32
    return %c0_i32, %c0_i32_0, %c0_i32_1 : i32, i32, i32
  }
  func.func @transform_3(%arg0: i32) -> (i32, i32, i32) {
    %c0_i32 = arith.constant 0 : i32
    %c0_i32_0 = arith.constant 0 : i32
    %c0_i32_1 = arith.constant 0 : i32
    %c0_i32_2 = arith.constant 0 : i32
    return %c0_i32, %c0_i32_0, %c0_i32_1 : i32, i32, i32
  }
  func.func @transform_4(%arg0: i32) -> (i32, i32, i32) {
    %c0_i32 = arith.constant 0 : i32
    %c0_i32_0 = arith.constant 0 : i32
    %c0_i32_1 = arith.constant 0 : i32
    %c0_i32_2 = arith.constant 0 : i32
    return %c0_i32, %c0_i32_0, %c0_i32_1 : i32, i32, i32
  }
  func.func @transform_5(%arg0: i32) -> (i32, i32, i32) {
    %c0_i32 = arith.constant 0 : i32
    %c0_i32_0 = arith.constant 0 : i32
    %c0_i32_1 = arith.constant 0 : i32
    %c0_i32_2 = arith.constant 0 : i32
    return %c0_i32, %c0_i32_0, %c0_i32_1 : i32, i32, i32
  }
  func.func @transform_6(%arg0: i32) -> (i32, i32, i32) {
    %c0_i32 = arith.constant 0 : i32
    %c0_i32_0 = arith.constant 0 : i32
    %c0_i32_1 = arith.constant 0 : i32
    %c0_i32_2 = arith.constant 0 : i32
    return %c0_i32, %c0_i32_0, %c0_i32_1 : i32, i32, i32
  }
  func.func @transform_7(%arg0: i32) -> (i32, i32, i32) {
    %c0_i32 = arith.constant 0 : i32
    %c0_i32_0 = arith.constant 0 : i32
    %c0_i32_1 = arith.constant 0 : i32
    %c0_i32_2 = arith.constant 0 : i32
    return %c0_i32, %c0_i32_0, %c0_i32_1 : i32, i32, i32
  }
  func.func @transform_8(%arg0: i32) -> (i32, i32, i32) {
    %c0_i32 = arith.constant 0 : i32
    %c0_i32_0 = arith.constant 0 : i32
    %c0_i32_1 = arith.constant 0 : i32
    %c0_i32_2 = arith.constant 0 : i32
    return %c0_i32, %c0_i32_0, %c0_i32_1 : i32, i32, i32
  }
  func.func @transform_9(%arg0: i32) -> (i32, i32, i32) {
    %c0_i32 = arith.constant 0 : i32
    %c0_i32_0 = arith.constant 0 : i32
    %c0_i32_1 = arith.constant 0 : i32
    %c0_i32_2 = arith.constant 0 : i32
    return %c0_i32, %c0_i32_0, %c0_i32_1 : i32, i32, i32
  }
  func.func @transform_10(%arg0: i32) -> (i32, i32, i32) {
    %c0_i32 = arith.constant 0 : i32
    %c0_i32_0 = arith.constant 0 : i32
    %c0_i32_1 = arith.constant 0 : i32
    %c0_i32_2 = arith.constant 0 : i32
    return %c0_i32, %c0_i32_0, %c0_i32_1 : i32, i32, i32
  }
  func.func @transform_11(%arg0: i32) -> (i32, i32, i32) {
    %c0_i32 = arith.constant 0 : i32
    %c0_i32_0 = arith.constant 0 : i32
    %c0_i32_1 = arith.constant 0 : i32
    %c0_i32_2 = arith.constant 0 : i32
    return %c0_i32, %c0_i32_0, %c0_i32_1 : i32, i32, i32
  }
  func.func @transform_12(%arg0: i32) -> (i32, i32, i32) {
    %c0_i32 = arith.constant 0 : i32
    %c0_i32_0 = arith.constant 0 : i32
    %c0_i32_1 = arith.constant 0 : i32
    %c0_i32_2 = arith.constant 0 : i32
    return %c0_i32, %c0_i32_0, %c0_i32_1 : i32, i32, i32
  }
  func.func @transform_13(%arg0: i32) -> (i32, i32, i32) {
    %c0_i32 = arith.constant 0 : i32
    %c0_i32_0 = arith.constant 0 : i32
    %c0_i32_1 = arith.constant 0 : i32
    %c0_i32_2 = arith.constant 0 : i32
    return %c0_i32, %c0_i32_0, %c0_i32_1 : i32, i32, i32
  }
  func.func @transform_14(%arg0: i32) -> (i32, i32, i32) {
    %c0_i32 = arith.constant 0 : i32
    %c0_i32_0 = arith.constant 0 : i32
    %c0_i32_1 = arith.constant 0 : i32
    return %arg0, %c0_i32, %c0_i32_0 : i32, i32, i32
  }
}

</mosaic_0001>

<llo_original>
// kernel: tpu_custom_call.1
$region0: #{tpu_custom_call.1}
  #allocation0 [shape = 'u32[]', space=smem, size = 0x4, offset = 0x4, fixed_abs, tag = 'smem constant byte address 0x4 - core index']
  #allocation1 [shape = 'u32[144,128]{1,0:T(1,128)}', space=vmem, size = 0x12000, scoped, tag = 'internal scratch']
  %s0 = inlined_call_operand.hbm [shape: bf16[2,8,32], index: 0, kind: input, shape index: {}]
  %s1 = inlined_call_operand.hbm [shape: f32[2,1,8], index: 1, kind: input, shape index: {}]
  %s2 = inlined_call_operand.hbm [shape: f32[2,1,32], index: 2, kind: input, shape index: {}]
  %s3 = inlined_call_operand.hbm [shape: f32[2,1,32], index: 3, kind: input, shape index: {}]
  %s4 = inlined_call_operand.hbm [shape: bf16[2,32,96], index: 4, kind: input, shape index: {}]
  %s5 = inlined_call_operand.hbm [shape: f32[2,1,96], index: 5, kind: input, shape index: {}]
  %s6 = inlined_call_operand.hbm [shape: bf16[2,32,32], index: 6, kind: input, shape index: {}]
  %s7 = inlined_call_operand.hbm [shape: f32[2,1,32], index: 7, kind: input, shape index: {}]
  %s8 = inlined_call_operand.hbm [shape: f32[2,1,32], index: 8, kind: input, shape index: {}]
  %s9 = inlined_call_operand.hbm [shape: f32[2,1,32], index: 9, kind: input, shape index: {}]
  %s10 = inlined_call_operand.hbm [shape: bf16[2,32,32], index: 10, kind: input, shape index: {}]
  %s11 = inlined_call_operand.hbm [shape: f32[2,1,32], index: 11, kind: input, shape index: {}]
  %s12 = inlined_call_operand.hbm [shape: bf16[2,32,32], index: 12, kind: input, shape index: {}]
  %s13 = inlined_call_operand.hbm [shape: f32[2,1,32], index: 13, kind: input, shape index: {}]
  %s14 = inlined_call_operand.hbm [shape: bf16[2,8,32], index: 14, kind: output, shape index: {}]
  %s15 = sld [smem:[#allocation0]]
  $region122: #{tpu_custom_call.1} parent=0
    _
  %s17 = ssub.s32 1, %s15
  %s18 = scalar_select 0, %s17, %s15
  $region1: #{tpu_custom_call.1} parent=0
    #allocation2 [shape = 'u8[4096]{0}', space=vmem, size = 0x1000, scoped, tag = 'input window, operand 0, single buffered']
    #allocation3 [shape = 's32[1]{0}', space=sflag, size = 0x4, scoped, tag = 'scoped memory for tpu_custom_call.1']
    #allocation4 [shape = 's32[1]{0}', space=sflag, size = 0x4, scoped, tag = 'scoped memory for tpu_custom_call.1']
    #allocation5 [shape = 'u8[1024]{0}', space=vmem, size = 0x400, scoped, tag = 'input window, operand 1, single buffered']
    #allocation6 [shape = 's32[1]{0}', space=sflag, size = 0x4, scoped, tag = 'scoped memory for tpu_custom_call.1']
    #allocation7 [shape = 'u8[1024]{0}', space=vmem, size = 0x400, scoped, tag = 'input window, operand 2, single buffered']
    #allocation8 [shape = 'u8[1024]{0}', space=vmem, size = 0x400, scoped, tag = 'input window, operand 3, single buffered']
    #allocation9 [shape = 's32[1]{0}', space=sflag, size = 0x4, scoped, tag = 'scoped memory for tpu_custom_call.1']
    #allocation10 [shape = 'u8[16384]{0}', space=vmem, size = 0x4000, scoped, tag = 'input window, operand 4, single buffered']
    #allocation11 [shape = 'u8[1024]{0}', space=vmem, size = 0x400, scoped, tag = 'input window, operand 5, single buffered']
    #allocation12 [shape = 's32[1]{0}', space=sflag, size = 0x4, scoped, tag = 'scoped memory for tpu_custom_call.1']
    #allocation13 [shape = 'u8[16384]{0}', space=vmem, size = 0x4000, scoped, tag = 'input window, operand 6, single buffered']
    #allocation14 [shape = 'u8[1024]{0}', space=vmem, size = 0x400, scoped, tag = 'input window, operand 7, single buffered']
    #allocation15 [shape = 's32[1]{0}', space=sflag, size = 0x4, scoped, tag = 'scoped memory for tpu_custom_call.1']
    #allocation16 [shape = 'u8[1024]{0}', space=vmem, size = 0x400, scoped, tag = 'input window, operand 8, single buffered']
    #allocation17 [shape = 'u8[1024]{0}', space=vmem, size = 0x400, scoped, tag = 'input window, operand 9, single buffered']
    #allocation18 [shape = 's32[1]{0}', space=sflag, size = 0x4, scoped, tag = 'scoped memory for tpu_custom_call.1']
    #allocation19 [shape = 'u8[16384]{0}', space=vmem, size = 0x4000, scoped, tag = 'input window, operand 10, single buffered']
    #allocation20 [shape = 'u8[1024]{0}', space=vmem, size = 0x400, scoped, tag = 'input window, operand 11, single buffered']
    #allocation21 [shape = 's32[1]{0}', space=sflag, size = 0x4, scoped, tag = 'scoped memory for tpu_custom_call.1']
    #allocation22 [shape = 'u8[16384]{0}', space=vmem, size = 0x4000, scoped, tag = 'input window, operand 12, single buffered']
    #allocation23 [shape = 'u8[1024]{0}', space=vmem, size = 0x400, scoped, tag = 'input window, operand 13, single buffered']
    #allocation24 [shape = 's32[1]{0}', space=sflag, size = 0x4, scoped, tag = 'scoped memory for tpu_custom_call.1']
    #allocation25 [shape = 'u8[4096]{0}', space=vmem, size = 0x1000, scoped, tag = 'output window, operand 0, single buffered']
    %19 = vsyncpa [#allocation3], 0
    %20 = vsyncpa [#allocation6], 0
    %21 = vsyncpa [#allocation9], 0
    %22 = vsyncpa [#allocation12], 0
    %23 = vsyncpa [#allocation15], 0
    %24 = vsyncpa [#allocation18], 0
    %25 = vsyncpa [#allocation21], 0
    %26 = vsyncpa [#allocation24], 0
    %27 = vsyncpa [#allocation4], 0
    // Predicated region
    $region2: #{tpu_custom_call.1} parent=1 // pred_check
      _
    $region3: #{tpu_custom_call.1} parent=1 // pred_check_branch
      %29 = sbr.rel (0) target = $region5
    $region4: #{tpu_custom_call.1} parent=1 // pred_region
      %s31 = ssub.s32 128, 128
      %32 = vsyncadd [#allocation3], %s31
      %s33 = sshll.u32 [#allocation2], 4
      %s34 = int_to_ptr.vmem [resolvable:$true] %s33
      %39 = dma.hbm_to_vmem [thread:$0]  %s0, 128, %s34, [#allocation3], 64, 64, 4
    $region5: #{tpu_custom_call.1} parent=1 // pred_fallthru
      _
    // Predicated region
    $region6: #{tpu_custom_call.1} parent=1 // pred_check
      _
    $region7: #{tpu_custom_call.1} parent=1 // pred_check_branch
      %41 = sbr.rel (0) target = $region9
    $region8: #{tpu_custom_call.1} parent=1 // pred_region
      %s43 = ssub.s32 32, 32
      %44 = vsyncadd [#allocation6], %s43
      %s45 = sshll.u32 [#allocation5], 4
      %s46 = int_to_ptr.vmem [resolvable:$true] %s45
      %51 = dma.hbm_to_vmem [thread:$0]  %s1, 32, %s46, [#allocation6], 16, 16, 1
    $region9: #{tpu_custom_call.1} parent=1 // pred_fallthru
      _
    // Predicated region
    $region10: #{tpu_custom_call.1} parent=1 // pred_check
      _
    $region11: #{tpu_custom_call.1} parent=1 // pred_check_branch
      %53 = sbr.rel (0) target = $region13
    $region12: #{tpu_custom_call.1} parent=1 // pred_region
      %s55 = ssub.s32 32, 32
      %56 = vsyncadd [#allocation6], %s55
      %s57 = sshll.u32 [#allocation7], 4
      %s58 = int_to_ptr.vmem [resolvable:$true] %s57
      %63 = dma.hbm_to_vmem [thread:$0]  %s2, 32, %s58, [#allocation6], 16, 16, 1
    $region13: #{tpu_custom_call.1} parent=1 // pred_fallthru
      _
    // Predicated region
    $region14: #{tpu_custom_call.1} parent=1 // pred_check
      _
    $region15: #{tpu_custom_call.1} parent=1 // pred_check_branch
      %65 = sbr.rel (0) target = $region17
    $region16: #{tpu_custom_call.1} parent=1 // pred_region
      %s67 = ssub.s32 32, 32
      %68 = vsyncadd [#allocation9], %s67
      %s69 = sshll.u32 [#allocation8], 4
      %s70 = int_to_ptr.vmem [resolvable:$true] %s69
      %75 = dma.hbm_to_vmem [thread:$0]  %s3, 32, %s70, [#allocation9], 16, 16, 1
    $region17: #{tpu_custom_call.1} parent=1 // pred_fallthru
      _
    // Predicated region
    $region18: #{tpu_custom_call.1} parent=1 // pred_check
      _
    $region19: #{tpu_custom_call.1} parent=1 // pred_check_branch
      %77 = sbr.rel (0) target = $region21
    $region20: #{tpu_custom_call.1} parent=1 // pred_region
      %s79 = ssub.s32 512, 512
      %80 = vsyncadd [#allocation9], %s79
      %s81 = sshll.u32 [#allocation10], 4
      %s82 = int_to_ptr.vmem [resolvable:$true] %s81
      %87 = dma.hbm_to_vmem [thread:$0]  %s4, 512, %s82, [#allocation9], 64, 64, 4
    $region21: #{tpu_custom_call.1} parent=1 // pred_fallthru
      _
    // Predicated region
    $region22: #{tpu_custom_call.1} parent=1 // pred_check
      _
    $region23: #{tpu_custom_call.1} parent=1 // pred_check_branch
      %89 = sbr.rel (0) target = $region25
    $region24: #{tpu_custom_call.1} parent=1 // pred_region
      %s91 = ssub.s32 32, 32
      %92 = vsyncadd [#allocation12], %s91
      %s93 = sshll.u32 [#allocation11], 4
      %s94 = int_to_ptr.vmem [resolvable:$true] %s93
      %99 = dma.hbm_to_vmem [thread:$0]  %s5, 32, %s94, [#allocation12], 16, 16, 1
    $region25: #{tpu_custom_call.1} parent=1 // pred_fallthru
      _
    // Predicated region
    $region26: #{tpu_custom_call.1} parent=1 // pred_check
      _
    $region27: #{tpu_custom_call.1} parent=1 // pred_check_branch
      %101 = sbr.rel (0) target = $region29
    $region28: #{tpu_custom_call.1} parent=1 // pred_region
      %s103 = ssub.s32 512, 512
      %104 = vsyncadd [#allocation12], %s103
      %s105 = sshll.u32 [#allocation13], 4
      %s106 = int_to_ptr.vmem [resolvable:$true] %s105
      %111 = dma.hbm_to_vmem [thread:$0]  %s6, 512, %s106, [#allocation12], 64, 64, 4
    $region29: #{tpu_custom_call.1} parent=1 // pred_fallthru
      _
    // Predicated region
    $region30: #{tpu_custom_call.1} parent=1 // pred_check
      _
    $region31: #{tpu_custom_call.1} parent=1 // pred_check_branch
      %113 = sbr.rel (0) target = $region33
    $region32: #{tpu_custom_call.1} parent=1 // pred_region
      %s115 = ssub.s32 32, 32
      %116 = vsyncadd [#allocation15], %s115
      %s117 = sshll.u32 [#allocation14], 4
      %s118 = int_to_ptr.vmem [resolvable:$true] %s117
      %123 = dma.hbm_to_vmem [thread:$0]  %s7, 32, %s118, [#allocation15], 16, 16, 1
    $region33: #{tpu_custom_call.1} parent=1 // pred_fallthru
      _
    // Predicated region
    $region34: #{tpu_custom_call.1} parent=1 // pred_check
      _
    $region35: #{tpu_custom_call.1} parent=1 // pred_check_branch
      %125 = sbr.rel (0) target = $region37
    $region36: #{tpu_custom_call.1} parent=1 // pred_region
      %s127 = ssub.s32 32, 32
      %128 = vsyncadd [#allocation15], %s127
      %s129 = sshll.u32 [#allocation16], 4
      %s130 = int_to_ptr.vmem [resolvable:$true] %s129
      %135 = dma.hbm_to_vmem [thread:$0]  %s8, 32, %s130, [#allocation15], 16, 16, 1
    $region37: #{tpu_custom_call.1} parent=1 // pred_fallthru
      _
    // Predicated region
    $region38: #{tpu_custom_call.1} parent=1 // pred_check
      _
    $region39: #{tpu_custom_call.1} parent=1 // pred_check_branch
      %137 = sbr.rel (0) target = $region41
    $region40: #{tpu_custom_call.1} parent=1 // pred_region
      %s139 = ssub.s32 32, 32
      %140 = vsyncadd [#allocation18], %s139
      %s141 = sshll.u32 [#allocation17], 4
      %s142 = int_to_ptr.vmem [resolvable:$true] %s141
      %147 = dma.hbm_to_vmem [thread:$0]  %s9, 32, %s142, [#allocation18], 16, 16, 1
    $region41: #{tpu_custom_call.1} parent=1 // pred_fallthru
      _
    // Predicated region
    $region42: #{tpu_custom_call.1} parent=1 // pred_check
      _
    $region43: #{tpu_custom_call.1} parent=1 // pred_check_branch
      %149 = sbr.rel (0) target = $region45
    $region44: #{tpu_custom_call.1} parent=1 // pred_region
      %s151 = ssub.s32 512, 512
      %152 = vsyncadd [#allocation18], %s151
      %s153 = sshll.u32 [#allocation19], 4
      %s154 = int_to_ptr.vmem [resolvable:$true] %s153
      %159 = dma.hbm_to_vmem [thread:$0]  %s10, 512, %s154, [#allocation18], 64, 64, 4
    $region45: #{tpu_custom_call.1} parent=1 // pred_fallthru
      _
    // Predicated region
    $region46: #{tpu_custom_call.1} parent=1 // pred_check
      _
    $region47: #{tpu_custom_call.1} parent=1 // pred_check_branch
      %161 = sbr.rel (0) target = $region49
    $region48: #{tpu_custom_call.1} parent=1 // pred_region
      %s163 = ssub.s32 32, 32
      %164 = vsyncadd [#allocation21], %s163
      %s165 = sshll.u32 [#allocation20], 4
      %s166 = int_to_ptr.vmem [resolvable:$true] %s165
      %171 = dma.hbm_to_vmem [thread:$0]  %s11, 32, %s166, [#allocation21], 16, 16, 1
    $region49: #{tpu_custom_call.1} parent=1 // pred_fallthru
      _
    // Predicated region
    $region50: #{tpu_custom_call.1} parent=1 // pred_check
      _
    $region51: #{tpu_custom_call.1} parent=1 // pred_check_branch
      %173 = sbr.rel (0) target = $region53
    $region52: #{tpu_custom_call.1} parent=1 // pred_region
      %s175 = ssub.s32 512, 512
      %176 = vsyncadd [#allocation21], %s175
      %s177 = sshll.u32 [#allocation22], 4
      %s178 = int_to_ptr.vmem [resolvable:$true] %s177
      %183 = dma.hbm_to_vmem [thread:$0]  %s12, 512, %s178, [#allocation21], 64, 64, 4
    $region53: #{tpu_custom_call.1} parent=1 // pred_fallthru
      _
    // Predicated region
    $region54: #{tpu_custom_call.1} parent=1 // pred_check
      _
    $region55: #{tpu_custom_call.1} parent=1 // pred_check_branch
      %185 = sbr.rel (0) target = $region57
    $region56: #{tpu_custom_call.1} parent=1 // pred_region
      %s187 = ssub.s32 32, 32
      %188 = vsyncadd [#allocation24], %s187
      %s189 = sshll.u32 [#allocation23], 4
      %s190 = int_to_ptr.vmem [resolvable:$true] %s189
      %195 = dma.hbm_to_vmem [thread:$0]  %s13, 32, %s190, [#allocation24], 16, 16, 1
    $region57: #{tpu_custom_call.1} parent=1 // pred_fallthru
      _
    // Predicated region
    $region58: #{tpu_custom_call.1} parent=1 // pred_check
      _
    $region59: #{tpu_custom_call.1} parent=1 // pred_check_branch
      %197 = sbr.rel (0) target = $region61
    $region60: #{tpu_custom_call.1} parent=1 // pred_region
      %198 = dma.done [#allocation3], 128
    $region61: #{tpu_custom_call.1} parent=1 // pred_fallthru
      _
    // Predicated region
    $region62: #{tpu_custom_call.1} parent=1 // pred_check
      _
    $region63: #{tpu_custom_call.1} parent=1 // pred_check_branch
      %200 = sbr.rel (0) target = $region65
    $region64: #{tpu_custom_call.1} parent=1 // pred_region
      %201 = dma.done [#allocation6], 32
    $region65: #{tpu_custom_call.1} parent=1 // pred_fallthru
      _
    // Predicated region
    $region66: #{tpu_custom_call.1} parent=1 // pred_check
      _
    $region67: #{tpu_custom_call.1} parent=1 // pred_check_branch
      %203 = sbr.rel (0) target = $region69
    $region68: #{tpu_custom_call.1} parent=1 // pred_region
      %204 = dma.done [#allocation6], 32
    $region69: #{tpu_custom_call.1} parent=1 // pred_fallthru
      _
    // Predicated region
    $region70: #{tpu_custom_call.1} parent=1 // pred_check
      _
    $region71: #{tpu_custom_call.1} parent=1 // pred_check_branch
      %206 = sbr.rel (0) target = $region73
    $region72: #{tpu_custom_call.1} parent=1 // pred_region
      %207 = dma.done [#allocation9], 32
    $region73: #{tpu_custom_call.1} parent=1 // pred_fallthru
      _
    // Predicated region
    $region74: #{tpu_custom_call.1} parent=1 // pred_check
      _
    $region75: #{tpu_custom_call.1} parent=1 // pred_check_branch
      %209 = sbr.rel (0) target = $region77
    $region76: #{tpu_custom_call.1} parent=1 // pred_region
      %210 = dma.done [#allocation9], 512
    $region77: #{tpu_custom_call.1} parent=1 // pred_fallthru
      _
    // Predicated region
    $region78: #{tpu_custom_call.1} parent=1 // pred_check
      _
    $region79: #{tpu_custom_call.1} parent=1 // pred_check_branch
      %212 = sbr.rel (0) target = $region81
    $region80: #{tpu_custom_call.1} parent=1 // pred_region
      %213 = dma.done [#allocation12], 32
    $region81: #{tpu_custom_call.1} parent=1 // pred_fallthru
      _
    // Predicated region
    $region82: #{tpu_custom_call.1} parent=1 // pred_check
      _
    $region83: #{tpu_custom_call.1} parent=1 // pred_check_branch
      %215 = sbr.rel (0) target = $region85
    $region84: #{tpu_custom_call.1} parent=1 // pred_region
      %216 = dma.done [#allocation12], 512
    $region85: #{tpu_custom_call.1} parent=1 // pred_fallthru
      _
    // Predicated region
    $region86: #{tpu_custom_call.1} parent=1 // pred_check
      _
    $region87: #{tpu_custom_call.1} parent=1 // pred_check_branch
      %218 = sbr.rel (0) target = $region89
    $region88: #{tpu_custom_call.1} parent=1 // pred_region
      %219 = dma.done [#allocation15], 32
    $region89: #{tpu_custom_call.1} parent=1 // pred_fallthru
      _
    // Predicated region
    $region90: #{tpu_custom_call.1} parent=1 // pred_check
      _
    $region91: #{tpu_custom_call.1} parent=1 // pred_check_branch
      %221 = sbr.rel (0) target = $region93
    $region92: #{tpu_custom_call.1} parent=1 // pred_region
      %222 = dma.done [#allocation15], 32
    $region93: #{tpu_custom_call.1} parent=1 // pred_fallthru
      _
    // Predicated region
    $region94: #{tpu_custom_call.1} parent=1 // pred_check
      _
    $region95: #{tpu_custom_call.1} parent=1 // pred_check_branch
      %224 = sbr.rel (0) target = $region97
    $region96: #{tpu_custom_call.1} parent=1 // pred_region
      %225 = dma.done [#allocation18], 32
    $region97: #{tpu_custom_call.1} parent=1 // pred_fallthru
      _
    // Predicated region
    $region98: #{tpu_custom_call.1} parent=1 // pred_check
      _
    $region99: #{tpu_custom_call.1} parent=1 // pred_check_branch
      %227 = sbr.rel (0) target = $region101
    $region100: #{tpu_custom_call.1} parent=1 // pred_region
      %228 = dma.done [#allocation18], 512
    $region101: #{tpu_custom_call.1} parent=1 // pred_fallthru
      _
    // Predicated region
    $region102: #{tpu_custom_call.1} parent=1 // pred_check
      _
    $region103: #{tpu_custom_call.1} parent=1 // pred_check_branch
      %230 = sbr.rel (0) target = $region105
    $region104: #{tpu_custom_call.1} parent=1 // pred_region
      %231 = dma.done [#allocation21], 32
    $region105: #{tpu_custom_call.1} parent=1 // pred_fallthru
      _
    // Predicated region
    $region106: #{tpu_custom_call.1} parent=1 // pred_check
      _
    $region107: #{tpu_custom_call.1} parent=1 // pred_check_branch
      %233 = sbr.rel (0) target = $region109
    $region108: #{tpu_custom_call.1} parent=1 // pred_region
      %234 = dma.done [#allocation21], 512
    $region109: #{tpu_custom_call.1} parent=1 // pred_fallthru
      _
    // Predicated region
    $region110: #{tpu_custom_call.1} parent=1 // pred_check
      _
    $region111: #{tpu_custom_call.1} parent=1 // pred_check_branch
      %236 = sbr.rel (0) target = $region113
    $region112: #{tpu_custom_call.1} parent=1 // pred_region
      %237 = dma.done [#allocation24], 32
    $region113: #{tpu_custom_call.1} parent=1 // pred_fallthru
      _
    %v239 = vld [vmem:[#allocation5] sm:$0x1]
    %v240 = vld [vmem:[#allocation5 + $0x1] sm:$0x1]
    %v241 = vlaneseq
    %v242 = vshrl.u32 %v241, 7
    %v243 = vsub.s32 0, %v242
    %v244 = vrot.slane %v239, %v243
    %246 = vbcast.lane.b32.xlu0 %v244, 256
    %v247 = vpop.permute.xlu0 %246
    %v248 = vlaneseq
    %v249 = vshrl.u32 %v248, 7
    %v250 = vsub.s32 0, %v249
    %v251 = vrot.slane %v240, %v250
    %253 = vbcast.lane.b32.xlu0 %v251, 256
    %v254 = vpop.permute.xlu0 %253
    %v255 = vlaneseq
    %v256 = vshrl.u32 %v255, 7
    %v257 = vlaneseq
    %v258 = vand.u32 %v257, 127
    %vm259 = vcmp.le.s32.totalorder %v258, %v256
    %v260 = vld [vmem:[#allocation2] sm:$0xf]
    %v261 = vld [vmem:[#allocation2 + $0x4] sm:$0xf]
    %v262 = vunpack.c.l.bf16 %v260
    %v263 = vunpack.c.l.bf16 %v261
    %v264 = vld [vmem:[#allocation7] sm:$0x1]
    %v265 = vld [vmem:[#allocation8] sm:$0x1]
    %vm266 = vcmask 261120
    %v267 = vsel %vm266, %v262, 0.0
    %268 = vadd.xlane.f32.xlu0 %v267
    %v269 = vpop.xlane.xlu0 %268
    %v270 = vsel %vm266, %v263, 0.0
    %271 = vadd.xlane.f32.xlu0 %v270
    %v272 = vpop.xlane.xlu0 %271
    %v273 = vrcp.pop 32.0
    %v274 = vmul.f32 %v269, %v273
    %v275 = vmul.f32 %v272, %v273
    %v276 = vsub.f32 %v262, %v274
    %v277 = vsub.f32 %v263, %v275
    %v278 = vmul.f32 %v276, %v276
    %v279 = vmul.f32 %v277, %v277
    %v280 = vsel %vm266, %v278, 0.0
    %281 = vadd.xlane.f32.xlu0 %v280
    %v282 = vpop.xlane.xlu0 %281
    %v283 = vsel %vm266, %v279, 0.0
    %284 = vadd.xlane.f32.xlu0 %v283
    %v285 = vpop.xlane.xlu0 %284
    %v286 = vmul.f32 %v282, %v273
    %v287 = vmul.f32 %v285, %v273
    %v288 = vadd.f32 %v286, 1e-08
    %v289 = vadd.f32 %v287, 1e-08
    %v290 = vrsqrt.pop %v288
    %v291 = vrsqrt.pop %v289
    %v292 = vmul.f32 %v276, %v290
    %v293 = vmul.f32 %v277, %v291
    %v295 = vlaneseq
    %v296 = vshrl.u32 %v295, 7
    %v297 = vsub.s32 0, %v296
    %v298 = vrot.slane %v264, %v297
    %v300 = vmul.f32 %v292, %v298
    %v301 = vmul.f32 %v293, %v298
    %v303 = vlaneseq
    %v304 = vshrl.u32 %v303, 7
    %v305 = vsub.s32 0, %v304
    %v306 = vrot.slane %v265, %v305
    %v308 = vadd.f32 %v300, %v306
    %v309 = vadd.f32 %v301, %v306
    %v310 = vld [vmem:[#allocation10] sm:$0xf]
    %v311 = vld [vmem:[#allocation10 + $0x4] sm:$0xf]
    %v312 = vld [vmem:[#allocation10 + $0x8] sm:$0xf]
    %v313 = vld [vmem:[#allocation10 + $0xc] sm:$0xf]
    %v314 = vld [vmem:[#allocation11] sm:$0x1]
    %v315 = vpack.c.bf16 %v309, %v308
    %v317 = vlaneseq
    %v318 = vshrl.u32 %v317, 7
    %v319 = vsub.s32 0, %v318
    %v320 = vrot.slane %v314, %v319
    %v326 = vunpack.c.l.b16 %v310
    %v327 = vunpack.c.l.b16 %v311
    %v328 = vunpack.c.l.b16 %v312
    %v329 = vunpack.c.l.b16 %v313
    %v330 = vpack.c.b16 %v327, %v326
    %v331 = vpack.c.b16 %v329, %v328
    %v335 = vsel %vm266, %v315, 0
    %337 = vmatprep.subr.bf16.mxu0 0
    %338 = vmatpush1.bf16.msra.mxu0 %v330
    %339 = vmatprep.subr.bf16.mxu0 0
    %340 = vmatpush1.bf16.msra.mxu0 %v331
    %341 = vmatprep.subr.bf16.mxu0 0
    %342 = vmatpush1.bf16.msra.mxu0 0
    %343 = vmatprep.subr.bf16.mxu0 0
    %344 = vmatpush1.bf16.msra.mxu0 0
    %345 = vmatprep.subr.bf16.mxu0 0
    %346 = vmatpush1.bf16.msra.mxu0 0
    %347 = vmatprep.subr.bf16.mxu0 0
    %348 = vmatpush1.bf16.msra.mxu0 0
    %349 = vmatprep.subr.bf16.mxu0 0
    %350 = vmatpush1.bf16.msra.mxu0 0
    %351 = vmatprep.subr.bf16.mxu0 0
    %352 = vmatpush1.bf16.msra.mxu0 0
    %353 = vmatprep.subr.bf16.mxu0 0
    %354 = vmatpush1.bf16.msra.mxu0 0
    %355 = vmatprep.subr.bf16.mxu0 0
    %356 = vmatpush1.bf16.msra.mxu0 0
    %357 = vmatprep.subr.bf16.mxu0 0
    %358 = vmatpush1.bf16.msra.mxu0 0
    %359 = vmatprep.subr.bf16.mxu0 0
    %360 = vmatpush1.bf16.msra.mxu0 0
    %361 = vmatprep.subr.bf16.mxu0 0
    %362 = vmatpush1.bf16.msra.mxu0 0
    %363 = vmatprep.subr.bf16.mxu0 0
    %364 = vmatpush1.bf16.msra.mxu0 0
    %365 = vmatprep.subr.bf16.mxu0 0
    %366 = vmatpush1.bf16.msra.mxu0 0
    %367 = vmatprep.subr.bf16.mxu0 0
    %368 = vmatpush1.bf16.msra.mxu0 0
    %369 = vmatprep.mubr.bf16.mxu0 0
    %370 = vmatmul.mubr.bf16.gmra.mrb[0].mxu0 %v335
    %v371 = vpop.f32.mrb[0].mxu0
    %v372 = vadd.f32 %v320, %v371
    %v373 = vpop.f32.mrb[0].mxu0
    %v374 = vpop.f32.mrb[0].mxu0
    %v375 = vadd.f32 %v320, %v374
    %v376 = vpop.f32.mrb[0].mxu0
    %377 = vdwg.mxu0
    %v378 = vpack.c.bf16 %v263, %v262
    %379 = vrot.lane.b32.xlu0 %v330, 96
    %v380 = vpop.permute.xlu0 %379
    %381 = vrot.lane.b32.xlu0 %v331, 96
    %v382 = vpop.permute.xlu0 %381
    %385 = vrot.lane.b32.xlu0 %v320, 96
    %v386 = vpop.permute.xlu0 %385
    %v389 = vsel %vm266, %v378, 0
    %391 = vmatprep.subr.bf16.mxu0 0
    %392 = vmatpush1.bf16.msra.mxu0 %v380
    %393 = vmatprep.subr.bf16.mxu0 0
    %394 = vmatpush1.bf16.msra.mxu0 %v382
    %395 = vmatprep.subr.bf16.mxu0 0
    %396 = vmatpush1.bf16.msra.mxu0 0
    %397 = vmatprep.subr.bf16.mxu0 0
    %398 = vmatpush1.bf16.msra.mxu0 0
    %399 = vmatprep.subr.bf16.mxu0 0
    %400 = vmatpush1.bf16.msra.mxu0 0
    %401 = vmatprep.subr.bf16.mxu0 0
    %402 = vmatpush1.bf16.msra.mxu0 0
    %403 = vmatprep.subr.bf16.mxu0 0
    %404 = vmatpush1.bf16.msra.mxu0 0
    %405 = vmatprep.subr.bf16.mxu0 0
    %406 = vmatpush1.bf16.msra.mxu0 0
    %407 = vmatprep.subr.bf16.mxu0 0
    %408 = vmatpush1.bf16.msra.mxu0 0
    %409 = vmatprep.subr.bf16.mxu0 0
    %410 = vmatpush1.bf16.msra.mxu0 0
    %411 = vmatprep.subr.bf16.mxu0 0
    %412 = vmatpush1.bf16.msra.mxu0 0
    %413 = vmatprep.subr.bf16.mxu0 0
    %414 = vmatpush1.bf16.msra.mxu0 0
    %415 = vmatprep.subr.bf16.mxu0 0
    %416 = vmatpush1.bf16.msra.mxu0 0
    %417 = vmatprep.subr.bf16.mxu0 0
    %418 = vmatpush1.bf16.msra.mxu0 0
    %419 = vmatprep.subr.bf16.mxu0 0
    %420 = vmatpush1.bf16.msra.mxu0 0
    %421 = vmatprep.subr.bf16.mxu0 0
    %422 = vmatpush1.bf16.msra.mxu0 0
    %423 = vmatprep.mubr.bf16.mxu0 0
    %424 = vmatmul.mubr.bf16.gmra.mrb[0].mxu0 %v389
    %v425 = vpop.f32.mrb[0].mxu0
    %v426 = vadd.f32 %v386, %v425
    %v427 = vpop.f32.mrb[0].mxu0
    %v428 = vpop.f32.mrb[0].mxu0
    %v429 = vadd.f32 %v386, %v428
    %v430 = vpop.f32.mrb[0].mxu0
    %431 = vdwg.mxu0
    %v432 = vld [vmem:[#allocation13] sm:$0xf]
    %v433 = vld [vmem:[#allocation13 + $0x4] sm:$0xf]
    %v434 = vld [vmem:[#allocation13 + $0x8] sm:$0xf]
    %v435 = vld [vmem:[#allocation13 + $0xc] sm:$0xf]
    %v436 = vmul.f32 %v372, 0.25
    %v437 = vmul.f32 %v375, 0.25
    %v438 = vpack.c.bf16 %v436, %v436
    %v439 = vpack.c.bf16 %v437, %v437
    %v440 = vpack.c.bf16 %v426, %v426
    %v441 = vpack.c.bf16 %v429, %v429
    %vm442 = vcmask 130048
    %v444 = vsel %vm442, %v438, 0
    %v447 = vsel %vm442, %v440, 0
    %449 = vmatprep.subr.bf16.mxu0 0
    %450 = vmatpush1.bf16.xpose.msra.mxu0 %v447
    %451 = vmatprep.subr.bf16.mxu0 0
    %452 = vmatpush1.bf16.xpose.msra.mxu0 0
    %453 = vmatprep.subr.bf16.mxu0 0
    %454 = vmatpush1.bf16.xpose.msra.mxu0 0
    %455 = vmatprep.subr.bf16.mxu0 0
    %456 = vmatpush1.bf16.xpose.msra.mxu0 0
    %457 = vmatprep.subr.bf16.mxu0 0
    %458 = vmatpush1.bf16.xpose.msra.mxu0 0
    %459 = vmatprep.subr.bf16.mxu0 0
    %460 = vmatpush1.bf16.xpose.msra.mxu0 0
    %461 = vmatprep.subr.bf16.mxu0 0
    %462 = vmatpush1.bf16.xpose.msra.mxu0 0
    %463 = vmatprep.subr.bf16.mxu0 0
    %464 = vmatpush1.bf16.xpose.msra.mxu0 0
    %465 = vmatprep.subr.bf16.mxu0 0
    %466 = vmatpush1.bf16.xpose.msra.mxu0 0
    %467 = vmatprep.subr.bf16.mxu0 0
    %468 = vmatpush1.bf16.xpose.msra.mxu0 0
    %469 = vmatprep.subr.bf16.mxu0 0
    %470 = vmatpush1.bf16.xpose.msra.mxu0 0
    %471 = vmatprep.subr.bf16.mxu0 0
    %472 = vmatpush1.bf16.xpose.msra.mxu0 0
    %473 = vmatprep.subr.bf16.mxu0 0
    %474 = vmatpush1.bf16.xpose.msra.mxu0 0
    %475 = vmatprep.subr.bf16.mxu0 0
    %476 = vmatpush1.bf16.xpose.msra.mxu0 0
    %477 = vmatprep.subr.bf16.mxu0 0
    %478 = vmatpush1.bf16.xpose.msra.mxu0 0
    %479 = vmatprep.subr.bf16.mxu0 0
    %480 = vmatpush1.bf16.xpose.msra.mxu0 0
    %481 = vmatprep.mubr.bf16.mxu0 0
    %482 = vmatmul.mubr.bf16.gmra.mrb[0].mxu0 %v444
    %v483 = vpop.f32.mrb[0].mxu0
    %v484 = vadd.f32 0.0, %v483
    %v485 = vpop.f32.mrb[0].mxu0
    %v486 = vpop.f32.mrb[0].mxu0
    %v487 = vpop.f32.mrb[0].mxu0
    %488 = vdwg.mxu0
    %v490 = vsel %vm442, %v439, 0
    %v493 = vsel %vm442, %v441, 0
    %495 = vmatprep.subr.bf16.mxu0 0
    %496 = vmatpush1.bf16.xpose.msra.mxu0 %v493
    %497 = vmatprep.subr.bf16.mxu0 0
    %498 = vmatpush1.bf16.xpose.msra.mxu0 0
    %499 = vmatprep.subr.bf16.mxu0 0
    %500 = vmatpush1.bf16.xpose.msra.mxu0 0
    %501 = vmatprep.subr.bf16.mxu0 0
    %502 = vmatpush1.bf16.xpose.msra.mxu0 0
    %503 = vmatprep.subr.bf16.mxu0 0
    %504 = vmatpush1.bf16.xpose.msra.mxu0 0
    %505 = vmatprep.subr.bf16.mxu0 0
    %506 = vmatpush1.bf16.xpose.msra.mxu0 0
    %507 = vmatprep.subr.bf16.mxu0 0
    %508 = vmatpush1.bf16.xpose.msra.mxu0 0
    %509 = vmatprep.subr.bf16.mxu0 0
    %510 = vmatpush1.bf16.xpose.msra.mxu0 0
    %511 = vmatprep.subr.bf16.mxu0 0
    %512 = vmatpush1.bf16.xpose.msra.mxu0 0
    %513 = vmatprep.subr.bf16.mxu0 0
    %514 = vmatpush1.bf16.xpose.msra.mxu0 0
    %515 = vmatprep.subr.bf16.mxu0 0
    %516 = vmatpush1.bf16.xpose.msra.mxu0 0
    %517 = vmatprep.subr.bf16.mxu0 0
    %518 = vmatpush1.bf16.xpose.msra.mxu0 0
    %519 = vmatprep.subr.bf16.mxu0 0
    %520 = vmatpush1.bf16.xpose.msra.mxu0 0
    %521 = vmatprep.subr.bf16.mxu0 0
    %522 = vmatpush1.bf16.xpose.msra.mxu0 0
    %523 = vmatprep.subr.bf16.mxu0 0
    %524 = vmatpush1.bf16.xpose.msra.mxu0 0
    %525 = vmatprep.subr.bf16.mxu0 0
    %526 = vmatpush1.bf16.xpose.msra.mxu0 0
    %527 = vmatprep.mubr.bf16.mxu0 0
    %528 = vmatmul.mubr.bf16.gmra.mrb[0].mxu0 %v490
    %v529 = vpop.f32.mrb[0].mxu0
    %v530 = vadd.f32 0.0, %v529
    %v531 = vpop.f32.mrb[0].mxu0
    %v532 = vpop.f32.mrb[0].mxu0
    %v533 = vpop.f32.mrb[0].mxu0
    %534 = vdwg.mxu0
    %v535 = vsel %vm259, 1, 0
    %vm536 = vcmp.eq.s32.totalorder %v535, 1
    %v537 = vsel %vm536, %v484, -1e+30
    %v538 = vsel %vm536, %v530, -1e+30
    %vm539 = vcmask 64512
    %v540 = vsel %vm539, %v537, -inf
    %541 = vmax.xlane.f32.xlu0 %v540
    %v542 = vpop.xlane.xlu0 %541
    %v543 = vsel %vm539, %v538, -inf
    %544 = vmax.xlane.f32.xlu0 %v543
    %v545 = vpop.xlane.xlu0 %544
    %v546 = vsub.f32 %v537, %v542
    %v547 = vsub.f32 %v538, %v545
    %v548 = vmul.f32 %v546, 1.442695
    %v549 = vpow.pop %v548
    %v550 = vmul.f32 %v547, 1.442695
    %v551 = vpow.pop %v550
    %v552 = vsel %vm539, %v549, 0.0
    %553 = vadd.xlane.f32.xlu0 %v552
    %v554 = vpop.xlane.xlu0 %553
    %v555 = vsel %vm539, %v551, 0.0
    %556 = vadd.xlane.f32.xlu0 %v555
    %v557 = vpop.xlane.xlu0 %556
    %v558 = vrcp.pop %v554
    %v559 = vrcp.pop %v557
    %v560 = vmul.f32 %v549, %v558
    %v561 = vmul.f32 %v551, %v559
    %v562 = vpack.c.bf16 %v560, %v560
    %v563 = vpack.c.bf16 %v561, %v561
    %565 = vrot.lane.b32.xlu0 %v440, 96
    %v566 = vpop.permute.xlu0 %565
    %v568 = vsel %vm539, %v562, 0
    %vm570 = vcmask 1043456
    %v572 = vsel %vm570, %v566, 0
    %574 = vmatprep.subr.bf16.mxu0 0
    %575 = vmatpush1.bf16.msra.mxu0 %v572
    %576 = vmatprep.subr.bf16.mxu0 0
    %577 = vmatpush1.bf16.msra.mxu0 0
    %578 = vmatprep.subr.bf16.mxu0 0
    %579 = vmatpush1.bf16.msra.mxu0 0
    %580 = vmatprep.subr.bf16.mxu0 0
    %581 = vmatpush1.bf16.msra.mxu0 0
    %582 = vmatprep.subr.bf16.mxu0 0
    %583 = vmatpush1.bf16.msra.mxu0 0
    %584 = vmatprep.subr.bf16.mxu0 0
    %585 = vmatpush1.bf16.msra.mxu0 0
    %586 = vmatprep.subr.bf16.mxu0 0
    %587 = vmatpush1.bf16.msra.mxu0 0
    %588 = vmatprep.subr.bf16.mxu0 0
    %589 = vmatpush1.bf16.msra.mxu0 0
    %590 = vmatprep.subr.bf16.mxu0 0
    %591 = vmatpush1.bf16.msra.mxu0 0
    %592 = vmatprep.subr.bf16.mxu0 0
    %593 = vmatpush1.bf16.msra.mxu0 0
    %594 = vmatprep.subr.bf16.mxu0 0
    %595 = vmatpush1.bf16.msra.mxu0 0
    %596 = vmatprep.subr.bf16.mxu0 0
    %597 = vmatpush1.bf16.msra.mxu0 0
    %598 = vmatprep.subr.bf16.mxu0 0
    %599 = vmatpush1.bf16.msra.mxu0 0
    %600 = vmatprep.subr.bf16.mxu0 0
    %601 = vmatpush1.bf16.msra.mxu0 0
    %602 = vmatprep.subr.bf16.mxu0 0
    %603 = vmatpush1.bf16.msra.mxu0 0
    %604 = vmatprep.subr.bf16.mxu0 0
    %605 = vmatpush1.bf16.msra.mxu0 0
    %606 = vmatprep.mubr.bf16.mxu0 0
    %607 = vmatmul.mubr.bf16.gmra.mrb[0].mxu0 %v568
    %v608 = vpop.f32.mrb[0].mxu0
    %v609 = vadd.f32 0.0, %v608
    %v610 = vpop.f32.mrb[0].mxu0
    %v611 = vpop.f32.mrb[0].mxu0
    %v612 = vpop.f32.mrb[0].mxu0
    %613 = vdwg.mxu0
    %615 = vrot.lane.b32.xlu0 %v441, 96
    %v616 = vpop.permute.xlu0 %615
    %v618 = vsel %vm539, %v563, 0
    %v621 = vsel %vm570, %v616, 0
    %623 = vmatprep.subr.bf16.mxu0 0
    %624 = vmatpush1.bf16.msra.mxu0 %v621
    %625 = vmatprep.subr.bf16.mxu0 0
    %626 = vmatpush1.bf16.msra.mxu0 0
    %627 = vmatprep.subr.bf16.mxu0 0
    %628 = vmatpush1.bf16.msra.mxu0 0
    %629 = vmatprep.subr.bf16.mxu0 0
    %630 = vmatpush1.bf16.msra.mxu0 0
    %631 = vmatprep.subr.bf16.mxu0 0
    %632 = vmatpush1.bf16.msra.mxu0 0
    %633 = vmatprep.subr.bf16.mxu0 0
    %634 = vmatpush1.bf16.msra.mxu0 0
    %635 = vmatprep.subr.bf16.mxu0 0
    %636 = vmatpush1.bf16.msra.mxu0 0
    %637 = vmatprep.subr.bf16.mxu0 0
    %638 = vmatpush1.bf16.msra.mxu0 0
    %639 = vmatprep.subr.bf16.mxu0 0
    %640 = vmatpush1.bf16.msra.mxu0 0
    %641 = vmatprep.subr.bf16.mxu0 0
    %642 = vmatpush1.bf16.msra.mxu0 0
    %643 = vmatprep.subr.bf16.mxu0 0
    %644 = vmatpush1.bf16.msra.mxu0 0
    %645 = vmatprep.subr.bf16.mxu0 0
    %646 = vmatpush1.bf16.msra.mxu0 0
    %647 = vmatprep.subr.bf16.mxu0 0
    %648 = vmatpush1.bf16.msra.mxu0 0
    %649 = vmatprep.subr.bf16.mxu0 0
    %650 = vmatpush1.bf16.msra.mxu0 0
    %651 = vmatprep.subr.bf16.mxu0 0
    %652 = vmatpush1.bf16.msra.mxu0 0
    %653 = vmatprep.subr.bf16.mxu0 0
    %654 = vmatpush1.bf16.msra.mxu0 0
    %655 = vmatprep.mubr.bf16.mxu0 0
    %656 = vmatmul.mubr.bf16.gmra.mrb[0].mxu0 %v618
    %v657 = vpop.f32.mrb[0].mxu0
    %v658 = vadd.f32 0.0, %v657
    %v659 = vpop.f32.mrb[0].mxu0
    %v660 = vpop.f32.mrb[0].mxu0
    %v661 = vpop.f32.mrb[0].mxu0
    %662 = vdwg.mxu0
    %v663 = vpack.c.bf16 %v658, %v609
    %665 = vrot.lane.b32.xlu0 %v438, 112
    %v666 = vpop.permute.xlu0 %665
    %667 = vrot.lane.b32.xlu0 %v440, 112
    %v668 = vpop.permute.xlu0 %667
    %v670 = vsel %vm442, %v666, 0
    %v673 = vsel %vm442, %v668, 0
    %675 = vmatprep.subr.bf16.mxu0 0
    %676 = vmatpush1.bf16.xpose.msra.mxu0 %v673
    %677 = vmatprep.subr.bf16.mxu0 0
    %678 = vmatpush1.bf16.xpose.msra.mxu0 0
    %679 = vmatprep.subr.bf16.mxu0 0
    %680 = vmatpush1.bf16.xpose.msra.mxu0 0
    %681 = vmatprep.subr.bf16.mxu0 0
    %682 = vmatpush1.bf16.xpose.msra.mxu0 0
    %683 = vmatprep.subr.bf16.mxu0 0
    %684 = vmatpush1.bf16.xpose.msra.mxu0 0
    %685 = vmatprep.subr.bf16.mxu0 0
    %686 = vmatpush1.bf16.xpose.msra.mxu0 0
    %687 = vmatprep.subr.bf16.mxu0 0
    %688 = vmatpush1.bf16.xpose.msra.mxu0 0
    %689 = vmatprep.subr.bf16.mxu0 0
    %690 = vmatpush1.bf16.xpose.msra.mxu0 0
    %691 = vmatprep.subr.bf16.mxu0 0
    %692 = vmatpush1.bf16.xpose.msra.mxu0 0
    %693 = vmatprep.subr.bf16.mxu0 0
    %694 = vmatpush1.bf16.xpose.msra.mxu0 0
    %695 = vmatprep.subr.bf16.mxu0 0
    %696 = vmatpush1.bf16.xpose.msra.mxu0 0
    %697 = vmatprep.subr.bf16.mxu0 0
    %698 = vmatpush1.bf16.xpose.msra.mxu0 0
    %699 = vmatprep.subr.bf16.mxu0 0
    %700 = vmatpush1.bf16.xpose.msra.mxu0 0
    %701 = vmatprep.subr.bf16.mxu0 0
    %702 = vmatpush1.bf16.xpose.msra.mxu0 0
    %703 = vmatprep.subr.bf16.mxu0 0
    %704 = vmatpush1.bf16.xpose.msra.mxu0 0
    %705 = vmatprep.subr.bf16.mxu0 0
    %706 = vmatpush1.bf16.xpose.msra.mxu0 0
    %707 = vmatprep.mubr.bf16.mxu0 0
    %708 = vmatmul.mubr.bf16.gmra.mrb[0].mxu0 %v670
    %v709 = vpop.f32.mrb[0].mxu0
    %v710 = vadd.f32 0.0, %v709
    %v711 = vpop.f32.mrb[0].mxu0
    %v712 = vpop.f32.mrb[0].mxu0
    %v713 = vpop.f32.mrb[0].mxu0
    %714 = vdwg.mxu0
    %716 = vrot.lane.b32.xlu0 %v439, 112
    %v717 = vpop.permute.xlu0 %716
    %718 = vrot.lane.b32.xlu0 %v441, 112
    %v719 = vpop.permute.xlu0 %718
    %v721 = vsel %vm442, %v717, 0
    %v724 = vsel %vm442, %v719, 0
    %726 = vmatprep.subr.bf16.mxu0 0
    %727 = vmatpush1.bf16.xpose.msra.mxu0 %v724
    %728 = vmatprep.subr.bf16.mxu0 0
    %729 = vmatpush1.bf16.xpose.msra.mxu0 0
    %730 = vmatprep.subr.bf16.mxu0 0
    %731 = vmatpush1.bf16.xpose.msra.mxu0 0
    %732 = vmatprep.subr.bf16.mxu0 0
    %733 = vmatpush1.bf16.xpose.msra.mxu0 0
    %734 = vmatprep.subr.bf16.mxu0 0
    %735 = vmatpush1.bf16.xpose.msra.mxu0 0
    %736 = vmatprep.subr.bf16.mxu0 0
    %737 = vmatpush1.bf16.xpose.msra.mxu0 0
    %738 = vmatprep.subr.bf16.mxu0 0
    %739 = vmatpush1.bf16.xpose.msra.mxu0 0
    %740 = vmatprep.subr.bf16.mxu0 0
    %741 = vmatpush1.bf16.xpose.msra.mxu0 0
    %742 = vmatprep.subr.bf16.mxu0 0
    %743 = vmatpush1.bf16.xpose.msra.mxu0 0
    %744 = vmatprep.subr.bf16.mxu0 0
    %745 = vmatpush1.bf16.xpose.msra.mxu0 0
    %746 = vmatprep.subr.bf16.mxu0 0
    %747 = vmatpush1.bf16.xpose.msra.mxu0 0
    %748 = vmatprep.subr.bf16.mxu0 0
    %749 = vmatpush1.bf16.xpose.msra.mxu0 0
    %750 = vmatprep.subr.bf16.mxu0 0
    %751 = vmatpush1.bf16.xpose.msra.mxu0 0
    %752 = vmatprep.subr.bf16.mxu0 0
    %753 = vmatpush1.bf16.xpose.msra.mxu0 0
    %754 = vmatprep.subr.bf16.mxu0 0
    %755 = vmatpush1.bf16.xpose.msra.mxu0 0
    %756 = vmatprep.subr.bf16.mxu0 0
    %757 = vmatpush1.bf16.xpose.msra.mxu0 0
    %758 = vmatprep.mubr.bf16.mxu0 0
    %759 = vmatmul.mubr.bf16.gmra.mrb[0].mxu0 %v721
    %v760 = vpop.f32.mrb[0].mxu0
    %v761 = vadd.f32 0.0, %v760
    %v762 = vpop.f32.mrb[0].mxu0
    %v763 = vpop.f32.mrb[0].mxu0
    %v764 = vpop.f32.mrb[0].mxu0
    %765 = vdwg.mxu0
    %v766 = vsel %vm536, %v710, -1e+30
    %v767 = vsel %vm536, %v761, -1e+30
    %v768 = vsel %vm539, %v766, -inf
    %769 = vmax.xlane.f32.xlu0 %v768
    %v770 = vpop.xlane.xlu0 %769
    %v771 = vsel %vm539, %v767, -inf
    %772 = vmax.xlane.f32.xlu0 %v771
    %v773 = vpop.xlane.xlu0 %772
    %v774 = vsub.f32 %v766, %v770
    %v775 = vsub.f32 %v767, %v773
    %v776 = vmul.f32 %v774, 1.442695
    %v777 = vpow.pop %v776
    %v778 = vmul.f32 %v775, 1.442695
    %v779 = vpow.pop %v778
    %v780 = vsel %vm539, %v777, 0.0
    %781 = vadd.xlane.f32.xlu0 %v780
    %v782 = vpop.xlane.xlu0 %781
    %v783 = vsel %vm539, %v779, 0.0
    %784 = vadd.xlane.f32.xlu0 %v783
    %v785 = vpop.xlane.xlu0 %784
    %v786 = vrcp.pop %v782
    %v787 = vrcp.pop %v785
    %v788 = vmul.f32 %v777, %v786
    %v789 = vmul.f32 %v779, %v787
    %v790 = vpack.c.bf16 %v788, %v788
    %v791 = vpack.c.bf16 %v789, %v789
    %792 = vrot.lane.b32.xlu0 %v440, 80
    %v793 = vpop.permute.xlu0 %792
    %v795 = vsel %vm539, %v790, 0
    %v798 = vsel %vm570, %v793, 0
    %800 = vmatprep.subr.bf16.mxu0 0
    %801 = vmatpush1.bf16.msra.mxu0 %v798
    %802 = vmatprep.subr.bf16.mxu0 0
    %803 = vmatpush1.bf16.msra.mxu0 0
    %804 = vmatprep.subr.bf16.mxu0 0
    %805 = vmatpush1.bf16.msra.mxu0 0
    %806 = vmatprep.subr.bf16.mxu0 0
    %807 = vmatpush1.bf16.msra.mxu0 0
    %808 = vmatprep.subr.bf16.mxu0 0
    %809 = vmatpush1.bf16.msra.mxu0 0
    %810 = vmatprep.subr.bf16.mxu0 0
    %811 = vmatpush1.bf16.msra.mxu0 0
    %812 = vmatprep.subr.bf16.mxu0 0
    %813 = vmatpush1.bf16.msra.mxu0 0
    %814 = vmatprep.subr.bf16.mxu0 0
    %815 = vmatpush1.bf16.msra.mxu0 0
    %816 = vmatprep.subr.bf16.mxu0 0
    %817 = vmatpush1.bf16.msra.mxu0 0
    %818 = vmatprep.subr.bf16.mxu0 0
    %819 = vmatpush1.bf16.msra.mxu0 0
    %820 = vmatprep.subr.bf16.mxu0 0
    %821 = vmatpush1.bf16.msra.mxu0 0
    %822 = vmatprep.subr.bf16.mxu0 0
    %823 = vmatpush1.bf16.msra.mxu0 0
    %824 = vmatprep.subr.bf16.mxu0 0
    %825 = vmatpush1.bf16.msra.mxu0 0
    %826 = vmatprep.subr.bf16.mxu0 0
    %827 = vmatpush1.bf16.msra.mxu0 0
    %828 = vmatprep.subr.bf16.mxu0 0
    %829 = vmatpush1.bf16.msra.mxu0 0
    %830 = vmatprep.subr.bf16.mxu0 0
    %831 = vmatpush1.bf16.msra.mxu0 0
    %832 = vmatprep.mubr.bf16.mxu0 0
    %833 = vmatmul.mubr.bf16.gmra.mrb[0].mxu0 %v795
    %v834 = vpop.f32.mrb[0].mxu0
    %v835 = vadd.f32 0.0, %v834
    %v836 = vpop.f32.mrb[0].mxu0
    %v837 = vpop.f32.mrb[0].mxu0
    %v838 = vpop.f32.mrb[0].mxu0
    %839 = vdwg.mxu0
    %840 = vrot.lane.b32.xlu0 %v441, 80
    %v841 = vpop.permute.xlu0 %840
    %v843 = vsel %vm539, %v791, 0
    %v846 = vsel %vm570, %v841, 0
    %848 = vmatprep.subr.bf16.mxu0 0
    %849 = vmatpush1.bf16.msra.mxu0 %v846
    %850 = vmatprep.subr.bf16.mxu0 0
    %851 = vmatpush1.bf16.msra.mxu0 0
    %852 = vmatprep.subr.bf16.mxu0 0
    %853 = vmatpush1.bf16.msra.mxu0 0
    %854 = vmatprep.subr.bf16.mxu0 0
    %855 = vmatpush1.bf16.msra.mxu0 0
    %856 = vmatprep.subr.bf16.mxu0 0
    %857 = vmatpush1.bf16.msra.mxu0 0
    %858 = vmatprep.subr.bf16.mxu0 0
    %859 = vmatpush1.bf16.msra.mxu0 0
    %860 = vmatprep.subr.bf16.mxu0 0
    %861 = vmatpush1.bf16.msra.mxu0 0
    %862 = vmatprep.subr.bf16.mxu0 0
    %863 = vmatpush1.bf16.msra.mxu0 0
    %864 = vmatprep.subr.bf16.mxu0 0
    %865 = vmatpush1.bf16.msra.mxu0 0
    %866 = vmatprep.subr.bf16.mxu0 0
    %867 = vmatpush1.bf16.msra.mxu0 0
    %868 = vmatprep.subr.bf16.mxu0 0
    %869 = vmatpush1.bf16.msra.mxu0 0
    %870 = vmatprep.subr.bf16.mxu0 0
    %871 = vmatpush1.bf16.msra.mxu0 0
    %872 = vmatprep.subr.bf16.mxu0 0
    %873 = vmatpush1.bf16.msra.mxu0 0
    %874 = vmatprep.subr.bf16.mxu0 0
    %875 = vmatpush1.bf16.msra.mxu0 0
    %876 = vmatprep.subr.bf16.mxu0 0
    %877 = vmatpush1.bf16.msra.mxu0 0
    %878 = vmatprep.subr.bf16.mxu0 0
    %879 = vmatpush1.bf16.msra.mxu0 0
    %880 = vmatprep.mubr.bf16.mxu0 0
    %881 = vmatmul.mubr.bf16.gmra.mrb[0].mxu0 %v843
    %v882 = vpop.f32.mrb[0].mxu0
    %v883 = vadd.f32 0.0, %v882
    %v884 = vpop.f32.mrb[0].mxu0
    %v885 = vpop.f32.mrb[0].mxu0
    %v886 = vpop.f32.mrb[0].mxu0
    %887 = vdwg.mxu0
    %v888 = vpack.c.bf16 %v883, %v835
    %v891 = vunpack.c.l.b16 %v434
    %v892 = vunpack.c.l.b16 %v435
    %v893 = vpack.c.b16 %v892, %v891
    %v896 = vsel %vm442, %v888, 0
    %898 = vmatprep.subr.bf16.mxu0 0
    %899 = vmatpush1.bf16.msra.mxu0 %v893
    %900 = vmatprep.subr.bf16.mxu0 0
    %901 = vmatpush1.bf16.msra.mxu0 0
    %902 = vmatprep.subr.bf16.mxu0 0
    %903 = vmatpush1.bf16.msra.mxu0 0
    %904 = vmatprep.subr.bf16.mxu0 0
    %905 = vmatpush1.bf16.msra.mxu0 0
    %906 = vmatprep.subr.bf16.mxu0 0
    %907 = vmatpush1.bf16.msra.mxu0 0
    %908 = vmatprep.subr.bf16.mxu0 0
    %909 = vmatpush1.bf16.msra.mxu0 0
    %910 = vmatprep.subr.bf16.mxu0 0
    %911 = vmatpush1.bf16.msra.mxu0 0
    %912 = vmatprep.subr.bf16.mxu0 0
    %913 = vmatpush1.bf16.msra.mxu0 0
    %914 = vmatprep.subr.bf16.mxu0 0
    %915 = vmatpush1.bf16.msra.mxu0 0
    %916 = vmatprep.subr.bf16.mxu0 0
    %917 = vmatpush1.bf16.msra.mxu0 0
    %918 = vmatprep.subr.bf16.mxu0 0
    %919 = vmatpush1.bf16.msra.mxu0 0
    %920 = vmatprep.subr.bf16.mxu0 0
    %921 = vmatpush1.bf16.msra.mxu0 0
    %922 = vmatprep.subr.bf16.mxu0 0
    %923 = vmatpush1.bf16.msra.mxu0 0
    %924 = vmatprep.subr.bf16.mxu0 0
    %925 = vmatpush1.bf16.msra.mxu0 0
    %926 = vmatprep.subr.bf16.mxu0 0
    %927 = vmatpush1.bf16.msra.mxu0 0
    %928 = vmatprep.subr.bf16.mxu0 0
    %929 = vmatpush1.bf16.msra.mxu0 0
    %930 = vmatprep.mubr.bf16.mxu0 0
    %931 = vmatmul.mubr.bf16.gmra.mrb[0].mxu0 %v896
    %v932 = vpop.f32.mrb[0].mxu0
    %v933 = vadd.f32 0.0, %v932
    %v934 = vpop.f32.mrb[0].mxu0
    %v935 = vpop.f32.mrb[0].mxu0
    %v936 = vadd.f32 0.0, %v935
    %v937 = vpop.f32.mrb[0].mxu0
    %938 = vdwg.mxu0
    %v941 = vunpack.c.l.b16 %v432
    %v942 = vunpack.c.l.b16 %v433
    %v943 = vpack.c.b16 %v942, %v941
    %v946 = vsel %vm442, %v663, 0
    %948 = vmatprep.subr.bf16.mxu0 0
    %949 = vmatpush1.bf16.msra.mxu0 %v943
    %950 = vmatprep.subr.bf16.mxu0 0
    %951 = vmatpush1.bf16.msra.mxu0 0
    %952 = vmatprep.subr.bf16.mxu0 0
    %953 = vmatpush1.bf16.msra.mxu0 0
    %954 = vmatprep.subr.bf16.mxu0 0
    %955 = vmatpush1.bf16.msra.mxu0 0
    %956 = vmatprep.subr.bf16.mxu0 0
    %957 = vmatpush1.bf16.msra.mxu0 0
    %958 = vmatprep.subr.bf16.mxu0 0
    %959 = vmatpush1.bf16.msra.mxu0 0
    %960 = vmatprep.subr.bf16.mxu0 0
    %961 = vmatpush1.bf16.msra.mxu0 0
    %962 = vmatprep.subr.bf16.mxu0 0
    %963 = vmatpush1.bf16.msra.mxu0 0
    %964 = vmatprep.subr.bf16.mxu0 0
    %965 = vmatpush1.bf16.msra.mxu0 0
    %966 = vmatprep.subr.bf16.mxu0 0
    %967 = vmatpush1.bf16.msra.mxu0 0
    %968 = vmatprep.subr.bf16.mxu0 0
    %969 = vmatpush1.bf16.msra.mxu0 0
    %970 = vmatprep.subr.bf16.mxu0 0
    %971 = vmatpush1.bf16.msra.mxu0 0
    %972 = vmatprep.subr.bf16.mxu0 0
    %973 = vmatpush1.bf16.msra.mxu0 0
    %974 = vmatprep.subr.bf16.mxu0 0
    %975 = vmatpush1.bf16.msra.mxu0 0
    %976 = vmatprep.subr.bf16.mxu0 0
    %977 = vmatpush1.bf16.msra.mxu0 0
    %978 = vmatprep.subr.bf16.mxu0 0
    %979 = vmatpush1.bf16.msra.mxu0 0
    %980 = vmatprep.mubr.bf16.mxu0 0
    %981 = vmatmul.mubr.bf16.gmra.mrb[0].mxu0 %v946
    %v982 = vpop.f32.mrb[0].mxu0
    %v983 = vadd.f32 %v933, %v982
    %v984 = vpop.f32.mrb[0].mxu0
    %v985 = vpop.f32.mrb[0].mxu0
    %v986 = vadd.f32 %v936, %v985
    %v987 = vpop.f32.mrb[0].mxu0
    %988 = vdwg.mxu0
    %v989 = vld [vmem:[#allocation14] sm:$0x1]
    %v991 = vlaneseq
    %v992 = vshrl.u32 %v991, 7
    %v993 = vsub.s32 0, %v992
    %v994 = vrot.slane %v989, %v993
    %v996 = vadd.f32 %v983, %v994
    %v997 = vadd.f32 %v986, %v994
    %v998 = vadd.f32 %v308, %v996
    %v999 = vadd.f32 %v309, %v997
    %v1000 = vld [vmem:[#allocation16] sm:$0x1]
    %v1001 = vld [vmem:[#allocation17] sm:$0x1]
    %v1002 = vsel %vm266, %v998, 0.0
    %1003 = vadd.xlane.f32.xlu0 %v1002
    %v1004 = vpop.xlane.xlu0 %1003
    %v1005 = vsel %vm266, %v999, 0.0
    %1006 = vadd.xlane.f32.xlu0 %v1005
    %v1007 = vpop.xlane.xlu0 %1006
    %v1008 = vmul.f32 %v1004, %v273
    %v1009 = vmul.f32 %v1007, %v273
    %v1010 = vsub.f32 %v998, %v1008
    %v1011 = vsub.f32 %v999, %v1009
    %v1012 = vmul.f32 %v1010, %v1010
    %v1013 = vmul.f32 %v1011, %v1011
    %v1014 = vsel %vm266, %v1012, 0.0
    %1015 = vadd.xlane.f32.xlu0 %v1014
    %v1016 = vpop.xlane.xlu0 %1015
    %v1017 = vsel %vm266, %v1013, 0.0
    %1018 = vadd.xlane.f32.xlu0 %v1017
    %v1019 = vpop.xlane.xlu0 %1018
    %v1020 = vmul.f32 %v1016, %v273
    %v1021 = vmul.f32 %v1019, %v273
    %v1022 = vadd.f32 %v1020, 1e-08
    %v1023 = vadd.f32 %v1021, 1e-08
    %v1024 = vrsqrt.pop %v1022
    %v1025 = vrsqrt.pop %v1023
    %v1026 = vmul.f32 %v1010, %v1024
    %v1027 = vmul.f32 %v1011, %v1025
    %v1029 = vlaneseq
    %v1030 = vshrl.u32 %v1029, 7
    %v1031 = vsub.s32 0, %v1030
    %v1032 = vrot.slane %v1000, %v1031
    %v1034 = vmul.f32 %v1026, %v1032
    %v1035 = vmul.f32 %v1027, %v1032
    %v1037 = vlaneseq
    %v1038 = vshrl.u32 %v1037, 7
    %v1039 = vsub.s32 0, %v1038
    %v1040 = vrot.slane %v1001, %v1039
    %v1042 = vadd.f32 %v1034, %v1040
    %v1043 = vadd.f32 %v1035, %v1040
    %v1044 = vpack.c.bf16 %v1043, %v1042
    %v1045 = vld [vmem:[#allocation19] sm:$0xf]
    %v1046 = vld [vmem:[#allocation19 + $0x4] sm:$0xf]
    %v1047 = vld [vmem:[#allocation19 + $0x8] sm:$0xf]
    %v1048 = vld [vmem:[#allocation19 + $0xc] sm:$0xf]
    %v1049 = vld [vmem:[#allocation20] sm:$0x1]
    %v1051 = vlaneseq
    %v1052 = vshrl.u32 %v1051, 7
    %v1053 = vsub.s32 0, %v1052
    %v1054 = vrot.slane %v1049, %v1053
    %v1060 = vunpack.c.l.b16 %v1045
    %v1061 = vunpack.c.l.b16 %v1046
    %v1062 = vunpack.c.l.b16 %v1047
    %v1063 = vunpack.c.l.b16 %v1048
    %v1064 = vpack.c.b16 %v1061, %v1060
    %v1065 = vpack.c.b16 %v1063, %v1062
    %v1069 = vsel %vm266, %v1044, 0
    %1071 = vmatprep.subr.bf16.mxu0 0
    %1072 = vmatpush1.bf16.msra.mxu0 %v1064
    %1073 = vmatprep.subr.bf16.mxu0 0
    %1074 = vmatpush1.bf16.msra.mxu0 %v1065
    %1075 = vmatprep.subr.bf16.mxu0 0
    %1076 = vmatpush1.bf16.msra.mxu0 0
    %1077 = vmatprep.subr.bf16.mxu0 0
    %1078 = vmatpush1.bf16.msra.mxu0 0
    %1079 = vmatprep.subr.bf16.mxu0 0
    %1080 = vmatpush1.bf16.msra.mxu0 0
    %1081 = vmatprep.subr.bf16.mxu0 0
    %1082 = vmatpush1.bf16.msra.mxu0 0
    %1083 = vmatprep.subr.bf16.mxu0 0
    %1084 = vmatpush1.bf16.msra.mxu0 0
    %1085 = vmatprep.subr.bf16.mxu0 0
    %1086 = vmatpush1.bf16.msra.mxu0 0
    %1087 = vmatprep.subr.bf16.mxu0 0
    %1088 = vmatpush1.bf16.msra.mxu0 0
    %1089 = vmatprep.subr.bf16.mxu0 0
    %1090 = vmatpush1.bf16.msra.mxu0 0
    %1091 = vmatprep.subr.bf16.mxu0 0
    %1092 = vmatpush1.bf16.msra.mxu0 0
    %1093 = vmatprep.subr.bf16.mxu0 0
    %1094 = vmatpush1.bf16.msra.mxu0 0
    %1095 = vmatprep.subr.bf16.mxu0 0
    %1096 = vmatpush1.bf16.msra.mxu0 0
    %1097 = vmatprep.subr.bf16.mxu0 0
    %1098 = vmatpush1.bf16.msra.mxu0 0
    %1099 = vmatprep.subr.bf16.mxu0 0
    %1100 = vmatpush1.bf16.msra.mxu0 0
    %1101 = vmatprep.subr.bf16.mxu0 0
    %1102 = vmatpush1.bf16.msra.mxu0 0
    %1103 = vmatprep.mubr.bf16.mxu0 0
    %1104 = vmatmul.mubr.bf16.gmra.mrb[0].mxu0 %v1069
    %v1105 = vpop.f32.mrb[0].mxu0
    %v1106 = vadd.f32 %v1054, %v1105
    %v1107 = vpop.f32.mrb[0].mxu0
    %v1108 = vpop.f32.mrb[0].mxu0
    %v1109 = vadd.f32 %v1054, %v1108
    %v1110 = vpop.f32.mrb[0].mxu0
    %1111 = vdwg.mxu0
    %v1112 = vmax.f32 %v1106, 0.0
    %v1113 = vmax.f32 %v1109, 0.0
    %v1114 = vpack.c.bf16 %v1113, %v1112
    %v1115 = vld [vmem:[#allocation22] sm:$0xf]
    %v1116 = vld [vmem:[#allocation22 + $0x4] sm:$0xf]
    %v1117 = vld [vmem:[#allocation22 + $0x8] sm:$0xf]
    %v1118 = vld [vmem:[#allocation22 + $0xc] sm:$0xf]
    %v1119 = vld [vmem:[#allocation23] sm:$0x1]
    %v1121 = vlaneseq
    %v1122 = vshrl.u32 %v1121, 7
    %v1123 = vsub.s32 0, %v1122
    %v1124 = vrot.slane %v1119, %v1123
    %v1130 = vunpack.c.l.b16 %v1115
    %v1131 = vunpack.c.l.b16 %v1116
    %v1132 = vunpack.c.l.b16 %v1117
    %v1133 = vunpack.c.l.b16 %v1118
    %v1134 = vpack.c.b16 %v1131, %v1130
    %v1135 = vpack.c.b16 %v1133, %v1132
    %v1139 = vsel %vm266, %v1114, 0
    %1141 = vmatprep.subr.bf16.mxu0 0
    %1142 = vmatpush1.bf16.msra.mxu0 %v1134
    %1143 = vmatprep.subr.bf16.mxu0 0
    %1144 = vmatpush1.bf16.msra.mxu0 %v1135
    %1145 = vmatprep.subr.bf16.mxu0 0
    %1146 = vmatpush1.bf16.msra.mxu0 0
    %1147 = vmatprep.subr.bf16.mxu0 0
    %1148 = vmatpush1.bf16.msra.mxu0 0
    %1149 = vmatprep.subr.bf16.mxu0 0
    %1150 = vmatpush1.bf16.msra.mxu0 0
    %1151 = vmatprep.subr.bf16.mxu0 0
    %1152 = vmatpush1.bf16.msra.mxu0 0
    %1153 = vmatprep.subr.bf16.mxu0 0
    %1154 = vmatpush1.bf16.msra.mxu0 0
    %1155 = vmatprep.subr.bf16.mxu0 0
    %1156 = vmatpush1.bf16.msra.mxu0 0
    %1157 = vmatprep.subr.bf16.mxu0 0
    %1158 = vmatpush1.bf16.msra.mxu0 0
    %1159 = vmatprep.subr.bf16.mxu0 0
    %1160 = vmatpush1.bf16.msra.mxu0 0
    %1161 = vmatprep.subr.bf16.mxu0 0
    %1162 = vmatpush1.bf16.msra.mxu0 0
    %1163 = vmatprep.subr.bf16.mxu0 0
    %1164 = vmatpush1.bf16.msra.mxu0 0
    %1165 = vmatprep.subr.bf16.mxu0 0
    %1166 = vmatpush1.bf16.msra.mxu0 0
    %1167 = vmatprep.subr.bf16.mxu0 0
    %1168 = vmatpush1.bf16.msra.mxu0 0
    %1169 = vmatprep.subr.bf16.mxu0 0
    %1170 = vmatpush1.bf16.msra.mxu0 0
    %1171 = vmatprep.subr.bf16.mxu0 0
    %1172 = vmatpush1.bf16.msra.mxu0 0
    %1173 = vmatprep.mubr.bf16.mxu0 0
    %1174 = vmatmul.mubr.bf16.gmra.mrb[0].mxu0 %v1139
    %v1175 = vpop.f32.mrb[0].mxu0
    %v1176 = vadd.f32 %v1124, %v1175
    %v1177 = vpop.f32.mrb[0].mxu0
    %v1178 = vpop.f32.mrb[0].mxu0
    %v1179 = vadd.f32 %v1124, %v1178
    %v1180 = vpop.f32.mrb[0].mxu0
    %1181 = vdwg.mxu0
    %v1182 = vadd.f32 %v1176, %v1042
    %v1183 = vadd.f32 %v1179, %v1043
    %v1184 = vmul.f32 %v1182, %v247
    %v1185 = vmul.f32 %v1183, %v254
    %s1186 = scalar_lea.vmem [#allocation7], 1
    %v1187 = vld [vmem:[%s1186] sm:$0x1]
    %s1188 = scalar_lea.vmem [#allocation8], 1
    %v1189 = vld [vmem:[%s1188] sm:$0x1]
    %v1190 = vsel %vm266, %v1184, 0.0
    %1191 = vadd.xlane.f32.xlu0 %v1190
    %v1192 = vpop.xlane.xlu0 %1191
    %v1193 = vsel %vm266, %v1185, 0.0
    %1194 = vadd.xlane.f32.xlu0 %v1193
    %v1195 = vpop.xlane.xlu0 %1194
    %v1196 = vmul.f32 %v1192, %v273
    %v1197 = vmul.f32 %v1195, %v273
    %v1198 = vsub.f32 %v1184, %v1196
    %v1199 = vsub.f32 %v1185, %v1197
    %v1200 = vmul.f32 %v1198, %v1198
    %v1201 = vmul.f32 %v1199, %v1199
    %v1202 = vsel %vm266, %v1200, 0.0
    %1203 = vadd.xlane.f32.xlu0 %v1202
    %v1204 = vpop.xlane.xlu0 %1203
    %v1205 = vsel %vm266, %v1201, 0.0
    %1206 = vadd.xlane.f32.xlu0 %v1205
    %v1207 = vpop.xlane.xlu0 %1206
    %v1208 = vmul.f32 %v1204, %v273
    %v1209 = vmul.f32 %v1207, %v273
    %v1210 = vadd.f32 %v1208, 1e-08
    %v1211 = vadd.f32 %v1209, 1e-08
    %v1212 = vrsqrt.pop %v1210
    %v1213 = vrsqrt.pop %v1211
    %v1214 = vmul.f32 %v1198, %v1212
    %v1215 = vmul.f32 %v1199, %v1213
    %v1217 = vlaneseq
    %v1218 = vshrl.u32 %v1217, 7
    %v1219 = vsub.s32 0, %v1218
    %v1220 = vrot.slane %v1187, %v1219
    %v1222 = vmul.f32 %v1214, %v1220
    %v1223 = vmul.f32 %v1215, %v1220
    %v1225 = vlaneseq
    %v1226 = vshrl.u32 %v1225, 7
    %v1227 = vsub.s32 0, %v1226
    %v1228 = vrot.slane %v1189, %v1227
    %v1230 = vadd.f32 %v1222, %v1228
    %v1231 = vadd.f32 %v1223, %v1228
    %s1232 = scalar_lea.vmem [#allocation10], 16
    %v1233 = vld [vmem:[%s1232] sm:$0xf]
    %v1234 = vld [vmem:[%s1232 + $0x4] sm:$0xf]
    %v1235 = vld [vmem:[%s1232 + $0x8] sm:$0xf]
    %v1236 = vld [vmem:[%s1232 + $0xc] sm:$0xf]
    %s1237 = scalar_lea.vmem [#allocation11], 1
    %v1238 = vld [vmem:[%s1237] sm:$0x1]
    %v1239 = vpack.c.bf16 %v1231, %v1230
    %v1241 = vlaneseq
    %v1242 = vshrl.u32 %v1241, 7
    %v1243 = vsub.s32 0, %v1242
    %v1244 = vrot.slane %v1238, %v1243
    %v1250 = vunpack.c.l.b16 %v1233
    %v1251 = vunpack.c.l.b16 %v1234
    %v1252 = vunpack.c.l.b16 %v1235
    %v1253 = vunpack.c.l.b16 %v1236
    %v1254 = vpack.c.b16 %v1251, %v1250
    %v1255 = vpack.c.b16 %v1253, %v1252
    %v1259 = vsel %vm266, %v1239, 0
    %1261 = vmatprep.subr.bf16.mxu0 0
    %1262 = vmatpush1.bf16.msra.mxu0 %v1254
    %1263 = vmatprep.subr.bf16.mxu0 0
    %1264 = vmatpush1.bf16.msra.mxu0 %v1255
    %1265 = vmatprep.subr.bf16.mxu0 0
    %1266 = vmatpush1.bf16.msra.mxu0 0
    %1267 = vmatprep.subr.bf16.mxu0 0
    %1268 = vmatpush1.bf16.msra.mxu0 0
    %1269 = vmatprep.subr.bf16.mxu0 0
    %1270 = vmatpush1.bf16.msra.mxu0 0
    %1271 = vmatprep.subr.bf16.mxu0 0
    %1272 = vmatpush1.bf16.msra.mxu0 0
    %1273 = vmatprep.subr.bf16.mxu0 0
    %1274 = vmatpush1.bf16.msra.mxu0 0
    %1275 = vmatprep.subr.bf16.mxu0 0
    %1276 = vmatpush1.bf16.msra.mxu0 0
    %1277 = vmatprep.subr.bf16.mxu0 0
    %1278 = vmatpush1.bf16.msra.mxu0 0
    %1279 = vmatprep.subr.bf16.mxu0 0
    %1280 = vmatpush1.bf16.msra.mxu0 0
    %1281 = vmatprep.subr.bf16.mxu0 0
    %1282 = vmatpush1.bf16.msra.mxu0 0
    %1283 = vmatprep.subr.bf16.mxu0 0
    %1284 = vmatpush1.bf16.msra.mxu0 0
    %1285 = vmatprep.subr.bf16.mxu0 0
    %1286 = vmatpush1.bf16.msra.mxu0 0
    %1287 = vmatprep.subr.bf16.mxu0 0
    %1288 = vmatpush1.bf16.msra.mxu0 0
    %1289 = vmatprep.subr.bf16.mxu0 0
    %1290 = vmatpush1.bf16.msra.mxu0 0
    %1291 = vmatprep.subr.bf16.mxu0 0
    %1292 = vmatpush1.bf16.msra.mxu0 0
    %1293 = vmatprep.mubr.bf16.mxu0 0
    %1294 = vmatmul.mubr.bf16.gmra.mrb[0].mxu0 %v1259
    %v1295 = vpop.f32.mrb[0].mxu0
    %v1296 = vadd.f32 %v1244, %v1295
    %v1297 = vpop.f32.mrb[0].mxu0
    %v1298 = vpop.f32.mrb[0].mxu0
    %v1299 = vadd.f32 %v1244, %v1298
    %v1300 = vpop.f32.mrb[0].mxu0
    %1301 = vdwg.mxu0
    %v1302 = vpack.c.bf16 %v1185, %v1184
    %1303 = vrot.lane.b32.xlu0 %v1254, 96
    %v1304 = vpop.permute.xlu0 %1303
    %1305 = vrot.lane.b32.xlu0 %v1255, 96
    %v1306 = vpop.permute.xlu0 %1305
    %1309 = vrot.lane.b32.xlu0 %v1244, 96
    %v1310 = vpop.permute.xlu0 %1309
    %v1313 = vsel %vm266, %v1302, 0
    %1315 = vmatprep.subr.bf16.mxu0 0
    %1316 = vmatpush1.bf16.msra.mxu0 %v1304
    %1317 = vmatprep.subr.bf16.mxu0 0
    %1318 = vmatpush1.bf16.msra.mxu0 %v1306
    %1319 = vmatprep.subr.bf16.mxu0 0
    %1320 = vmatpush1.bf16.msra.mxu0 0
    %1321 = vmatprep.subr.bf16.mxu0 0
    %1322 = vmatpush1.bf16.msra.mxu0 0
    %1323 = vmatprep.subr.bf16.mxu0 0
    %1324 = vmatpush1.bf16.msra.mxu0 0
    %1325 = vmatprep.subr.bf16.mxu0 0
    %1326 = vmatpush1.bf16.msra.mxu0 0
    %1327 = vmatprep.subr.bf16.mxu0 0
    %1328 = vmatpush1.bf16.msra.mxu0 0
    %1329 = vmatprep.subr.bf16.mxu0 0
    %1330 = vmatpush1.bf16.msra.mxu0 0
    %1331 = vmatprep.subr.bf16.mxu0 0
    %1332 = vmatpush1.bf16.msra.mxu0 0
    %1333 = vmatprep.subr.bf16.mxu0 0
    %1334 = vmatpush1.bf16.msra.mxu0 0
    %1335 = vmatprep.subr.bf16.mxu0 0
    %1336 = vmatpush1.bf16.msra.mxu0 0
    %1337 = vmatprep.subr.bf16.mxu0 0
    %1338 = vmatpush1.bf16.msra.mxu0 0
    %1339 = vmatprep.subr.bf16.mxu0 0
    %1340 = vmatpush1.bf16.msra.mxu0 0
    %1341 = vmatprep.subr.bf16.mxu0 0
    %1342 = vmatpush1.bf16.msra.mxu0 0
    %1343 = vmatprep.subr.bf16.mxu0 0
    %1344 = vmatpush1.bf16.msra.mxu0 0
    %1345 = vmatprep.subr.bf16.mxu0 0
    %1346 = vmatpush1.bf16.msra.mxu0 0
    %1347 = vmatprep.mubr.bf16.mxu0 0
    %1348 = vmatmul.mubr.bf16.gmra.mrb[0].mxu0 %v1313
    %v1349 = vpop.f32.mrb[0].mxu0
    %v1350 = vadd.f32 %v1310, %v1349
    %v1351 = vpop.f32.mrb[0].mxu0
    %v1352 = vpop.f32.mrb[0].mxu0
    %v1353 = vadd.f32 %v1310, %v1352
    %v1354 = vpop.f32.mrb[0].mxu0
    %1355 = vdwg.mxu0
    %s1356 = scalar_lea.vmem [#allocation13], 16
    %v1357 = vld [vmem:[%s1356] sm:$0xf]
    %v1358 = vld [vmem:[%s1356 + $0x4] sm:$0xf]
    %v1359 = vld [vmem:[%s1356 + $0x8] sm:$0xf]
    %v1360 = vld [vmem:[%s1356 + $0xc] sm:$0xf]
    %v1361 = vmul.f32 %v1296, 0.25
    %v1362 = vmul.f32 %v1299, 0.25
    %v1363 = vpack.c.bf16 %v1361, %v1361
    %v1364 = vpack.c.bf16 %v1362, %v1362
    %v1365 = vpack.c.bf16 %v1350, %v1350
    %v1366 = vpack.c.bf16 %v1353, %v1353
    %v1368 = vsel %vm442, %v1363, 0
    %v1371 = vsel %vm442, %v1365, 0
    %1373 = vmatprep.subr.bf16.mxu0 0
    %1374 = vmatpush1.bf16.xpose.msra.mxu0 %v1371
    %1375 = vmatprep.subr.bf16.mxu0 0
    %1376 = vmatpush1.bf16.xpose.msra.mxu0 0
    %1377 = vmatprep.subr.bf16.mxu0 0
    %1378 = vmatpush1.bf16.xpose.msra.mxu0 0
    %1379 = vmatprep.subr.bf16.mxu0 0
    %1380 = vmatpush1.bf16.xpose.msra.mxu0 0
    %1381 = vmatprep.subr.bf16.mxu0 0
    %1382 = vmatpush1.bf16.xpose.msra.mxu0 0
    %1383 = vmatprep.subr.bf16.mxu0 0
    %1384 = vmatpush1.bf16.xpose.msra.mxu0 0
    %1385 = vmatprep.subr.bf16.mxu0 0
    %1386 = vmatpush1.bf16.xpose.msra.mxu0 0
    %1387 = vmatprep.subr.bf16.mxu0 0
    %1388 = vmatpush1.bf16.xpose.msra.mxu0 0
    %1389 = vmatprep.subr.bf16.mxu0 0
    %1390 = vmatpush1.bf16.xpose.msra.mxu0 0
    %1391 = vmatprep.subr.bf16.mxu0 0
    %1392 = vmatpush1.bf16.xpose.msra.mxu0 0
    %1393 = vmatprep.subr.bf16.mxu0 0
    %1394 = vmatpush1.bf16.xpose.msra.mxu0 0
    %1395 = vmatprep.subr.bf16.mxu0 0
    %1396 = vmatpush1.bf16.xpose.msra.mxu0 0
    %1397 = vmatprep.subr.bf16.mxu0 0
    %1398 = vmatpush1.bf16.xpose.msra.mxu0 0
    %1399 = vmatprep.subr.bf16.mxu0 0
    %1400 = vmatpush1.bf16.xpose.msra.mxu0 0
    %1401 = vmatprep.subr.bf16.mxu0 0
    %1402 = vmatpush1.bf16.xpose.msra.mxu0 0
    %1403 = vmatprep.subr.bf16.mxu0 0
    %1404 = vmatpush1.bf16.xpose.msra.mxu0 0
    %1405 = vmatprep.mubr.bf16.mxu0 0
    %1406 = vmatmul.mubr.bf16.gmra.mrb[0].mxu0 %v1368
    %v1407 = vpop.f32.mrb[0].mxu0
    %v1408 = vadd.f32 0.0, %v1407
    %v1409 = vpop.f32.mrb[0].mxu0
    %v1410 = vpop.f32.mrb[0].mxu0
    %v1411 = vpop.f32.mrb[0].mxu0
    %1412 = vdwg.mxu0
    %v1414 = vsel %vm442, %v1364, 0
    %v1417 = vsel %vm442, %v1366, 0
    %1419 = vmatprep.subr.bf16.mxu0 0
    %1420 = vmatpush1.bf16.xpose.msra.mxu0 %v1417
    %1421 = vmatprep.subr.bf16.mxu0 0
    %1422 = vmatpush1.bf16.xpose.msra.mxu0 0
    %1423 = vmatprep.subr.bf16.mxu0 0
    %1424 = vmatpush1.bf16.xpose.msra.mxu0 0
    %1425 = vmatprep.subr.bf16.mxu0 0
    %1426 = vmatpush1.bf16.xpose.msra.mxu0 0
    %1427 = vmatprep.subr.bf16.mxu0 0
    %1428 = vmatpush1.bf16.xpose.msra.mxu0 0
    %1429 = vmatprep.subr.bf16.mxu0 0
    %1430 = vmatpush1.bf16.xpose.msra.mxu0 0
    %1431 = vmatprep.subr.bf16.mxu0 0
    %1432 = vmatpush1.bf16.xpose.msra.mxu0 0
    %1433 = vmatprep.subr.bf16.mxu0 0
    %1434 = vmatpush1.bf16.xpose.msra.mxu0 0
    %1435 = vmatprep.subr.bf16.mxu0 0
    %1436 = vmatpush1.bf16.xpose.msra.mxu0 0
    %1437 = vmatprep.subr.bf16.mxu0 0
    %1438 = vmatpush1.bf16.xpose.msra.mxu0 0
    %1439 = vmatprep.subr.bf16.mxu0 0
    %1440 = vmatpush1.bf16.xpose.msra.mxu0 0
    %1441 = vmatprep.subr.bf16.mxu0 0
    %1442 = vmatpush1.bf16.xpose.msra.mxu0 0
    %1443 = vmatprep.subr.bf16.mxu0 0
    %1444 = vmatpush1.bf16.xpose.msra.mxu0 0
    %1445 = vmatprep.subr.bf16.mxu0 0
    %1446 = vmatpush1.bf16.xpose.msra.mxu0 0
    %1447 = vmatprep.subr.bf16.mxu0 0
    %1448 = vmatpush1.bf16.xpose.msra.mxu0 0
    %1449 = vmatprep.subr.bf16.mxu0 0
    %1450 = vmatpush1.bf16.xpose.msra.mxu0 0
    %1451 = vmatprep.mubr.bf16.mxu0 0
    %1452 = vmatmul.mubr.bf16.gmra.mrb[0].mxu0 %v1414
    %v1453 = vpop.f32.mrb[0].mxu0
    %v1454 = vadd.f32 0.0, %v1453
    %v1455 = vpop.f32.mrb[0].mxu0
    %v1456 = vpop.f32.mrb[0].mxu0
    %v1457 = vpop.f32.mrb[0].mxu0
    %1458 = vdwg.mxu0
    %v1459 = vsel %vm536, %v1408, -1e+30
    %v1460 = vsel %vm536, %v1454, -1e+30
    %v1461 = vsel %vm539, %v1459, -inf
    %1462 = vmax.xlane.f32.xlu0 %v1461
    %v1463 = vpop.xlane.xlu0 %1462
    %v1464 = vsel %vm539, %v1460, -inf
    %1465 = vmax.xlane.f32.xlu0 %v1464
    %v1466 = vpop.xlane.xlu0 %1465
    %v1467 = vsub.f32 %v1459, %v1463
    %v1468 = vsub.f32 %v1460, %v1466
    %v1469 = vmul.f32 %v1467, 1.442695
    %v1470 = vpow.pop %v1469
    %v1471 = vmul.f32 %v1468, 1.442695
    %v1472 = vpow.pop %v1471
    %v1473 = vsel %vm539, %v1470, 0.0
    %1474 = vadd.xlane.f32.xlu0 %v1473
    %v1475 = vpop.xlane.xlu0 %1474
    %v1476 = vsel %vm539, %v1472, 0.0
    %1477 = vadd.xlane.f32.xlu0 %v1476
    %v1478 = vpop.xlane.xlu0 %1477
    %v1479 = vrcp.pop %v1475
    %v1480 = vrcp.pop %v1478
    %v1481 = vmul.f32 %v1470, %v1479
    %v1482 = vmul.f32 %v1472, %v1480
    %v1483 = vpack.c.bf16 %v1481, %v1481
    %v1484 = vpack.c.bf16 %v1482, %v1482
    %1486 = vrot.lane.b32.xlu0 %v1365, 96
    %v1487 = vpop.permute.xlu0 %1486
    %v1489 = vsel %vm539, %v1483, 0
    %v1492 = vsel %vm570, %v1487, 0
    %1494 = vmatprep.subr.bf16.mxu0 0
    %1495 = vmatpush1.bf16.msra.mxu0 %v1492
    %1496 = vmatprep.subr.bf16.mxu0 0
    %1497 = vmatpush1.bf16.msra.mxu0 0
    %1498 = vmatprep.subr.bf16.mxu0 0
    %1499 = vmatpush1.bf16.msra.mxu0 0
    %1500 = vmatprep.subr.bf16.mxu0 0
    %1501 = vmatpush1.bf16.msra.mxu0 0
    %1502 = vmatprep.subr.bf16.mxu0 0
    %1503 = vmatpush1.bf16.msra.mxu0 0
    %1504 = vmatprep.subr.bf16.mxu0 0
    %1505 = vmatpush1.bf16.msra.mxu0 0
    %1506 = vmatprep.subr.bf16.mxu0 0
    %1507 = vmatpush1.bf16.msra.mxu0 0
    %1508 = vmatprep.subr.bf16.mxu0 0
    %1509 = vmatpush1.bf16.msra.mxu0 0
    %1510 = vmatprep.subr.bf16.mxu0 0
    %1511 = vmatpush1.bf16.msra.mxu0 0
    %1512 = vmatprep.subr.bf16.mxu0 0
    %1513 = vmatpush1.bf16.msra.mxu0 0
    %1514 = vmatprep.subr.bf16.mxu0 0
    %1515 = vmatpush1.bf16.msra.mxu0 0
    %1516 = vmatprep.subr.bf16.mxu0 0
    %1517 = vmatpush1.bf16.msra.mxu0 0
    %1518 = vmatprep.subr.bf16.mxu0 0
    %1519 = vmatpush1.bf16.msra.mxu0 0
    %1520 = vmatprep.subr.bf16.mxu0 0
    %1521 = vmatpush1.bf16.msra.mxu0 0
    %1522 = vmatprep.subr.bf16.mxu0 0
    %1523 = vmatpush1.bf16.msra.mxu0 0
    %1524 = vmatprep.subr.bf16.mxu0 0
    %1525 = vmatpush1.bf16.msra.mxu0 0
    %1526 = vmatprep.mubr.bf16.mxu0 0
    %1527 = vmatmul.mubr.bf16.gmra.mrb[0].mxu0 %v1489
    %v1528 = vpop.f32.mrb[0].mxu0
    %v1529 = vadd.f32 0.0, %v1528
    %v1530 = vpop.f32.mrb[0].mxu0
    %v1531 = vpop.f32.mrb[0].mxu0
    %v1532 = vpop.f32.mrb[0].mxu0
    %1533 = vdwg.mxu0
    %1535 = vrot.lane.b32.xlu0 %v1366, 96
    %v1536 = vpop.permute.xlu0 %1535
    %v1538 = vsel %vm539, %v1484, 0
    %v1541 = vsel %vm570, %v1536, 0
    %1543 = vmatprep.subr.bf16.mxu0 0
    %1544 = vmatpush1.bf16.msra.mxu0 %v1541
    %1545 = vmatprep.subr.bf16.mxu0 0
    %1546 = vmatpush1.bf16.msra.mxu0 0
    %1547 = vmatprep.subr.bf16.mxu0 0
    %1548 = vmatpush1.bf16.msra.mxu0 0
    %1549 = vmatprep.subr.bf16.mxu0 0
    %1550 = vmatpush1.bf16.msra.mxu0 0
    %1551 = vmatprep.subr.bf16.mxu0 0
    %1552 = vmatpush1.bf16.msra.mxu0 0
    %1553 = vmatprep.subr.bf16.mxu0 0
    %1554 = vmatpush1.bf16.msra.mxu0 0
    %1555 = vmatprep.subr.bf16.mxu0 0
    %1556 = vmatpush1.bf16.msra.mxu0 0
    %1557 = vmatprep.subr.bf16.mxu0 0
    %1558 = vmatpush1.bf16.msra.mxu0 0
    %1559 = vmatprep.subr.bf16.mxu0 0
    %1560 = vmatpush1.bf16.msra.mxu0 0
    %1561 = vmatprep.subr.bf16.mxu0 0
    %1562 = vmatpush1.bf16.msra.mxu0 0
    %1563 = vmatprep.subr.bf16.mxu0 0
    %1564 = vmatpush1.bf16.msra.mxu0 0
    %1565 = vmatprep.subr.bf16.mxu0 0
    %1566 = vmatpush1.bf16.msra.mxu0 0
    %1567 = vmatprep.subr.bf16.mxu0 0
    %1568 = vmatpush1.bf16.msra.mxu0 0
    %1569 = vmatprep.subr.bf16.mxu0 0
    %1570 = vmatpush1.bf16.msra.mxu0 0
    %1571 = vmatprep.subr.bf16.mxu0 0
    %1572 = vmatpush1.bf16.msra.mxu0 0
    %1573 = vmatprep.subr.bf16.mxu0 0
    %1574 = vmatpush1.bf16.msra.mxu0 0
    %1575 = vmatprep.mubr.bf16.mxu0 0
    %1576 = vmatmul.mubr.bf16.gmra.mrb[0].mxu0 %v1538
    %v1577 = vpop.f32.mrb[0].mxu0
    %v1578 = vadd.f32 0.0, %v1577
    %v1579 = vpop.f32.mrb[0].mxu0
    %v1580 = vpop.f32.mrb[0].mxu0
    %v1581 = vpop.f32.mrb[0].mxu0
    %1582 = vdwg.mxu0
    %v1583 = vpack.c.bf16 %v1578, %v1529
    %1585 = vrot.lane.b32.xlu0 %v1363, 112
    %v1586 = vpop.permute.xlu0 %1585
    %1587 = vrot.lane.b32.xlu0 %v1365, 112
    %v1588 = vpop.permute.xlu0 %1587
    %v1590 = vsel %vm442, %v1586, 0
    %v1593 = vsel %vm442, %v1588, 0
    %1595 = vmatprep.subr.bf16.mxu0 0
    %1596 = vmatpush1.bf16.xpose.msra.mxu0 %v1593
    %1597 = vmatprep.subr.bf16.mxu0 0
    %1598 = vmatpush1.bf16.xpose.msra.mxu0 0
    %1599 = vmatprep.subr.bf16.mxu0 0
    %1600 = vmatpush1.bf16.xpose.msra.mxu0 0
    %1601 = vmatprep.subr.bf16.mxu0 0
    %1602 = vmatpush1.bf16.xpose.msra.mxu0 0
    %1603 = vmatprep.subr.bf16.mxu0 0
    %1604 = vmatpush1.bf16.xpose.msra.mxu0 0
    %1605 = vmatprep.subr.bf16.mxu0 0
    %1606 = vmatpush1.bf16.xpose.msra.mxu0 0
    %1607 = vmatprep.subr.bf16.mxu0 0
    %1608 = vmatpush1.bf16.xpose.msra.mxu0 0
    %1609 = vmatprep.subr.bf16.mxu0 0
    %1610 = vmatpush1.bf16.xpose.msra.mxu0 0
    %1611 = vmatprep.subr.bf16.mxu0 0
    %1612 = vmatpush1.bf16.xpose.msra.mxu0 0
    %1613 = vmatprep.subr.bf16.mxu0 0
    %1614 = vmatpush1.bf16.xpose.msra.mxu0 0
    %1615 = vmatprep.subr.bf16.mxu0 0
    %1616 = vmatpush1.bf16.xpose.msra.mxu0 0
    %1617 = vmatprep.subr.bf16.mxu0 0
    %1618 = vmatpush1.bf16.xpose.msra.mxu0 0
    %1619 = vmatprep.subr.bf16.mxu0 0
    %1620 = vmatpush1.bf16.xpose.msra.mxu0 0
    %1621 = vmatprep.subr.bf16.mxu0 0
    %1622 = vmatpush1.bf16.xpose.msra.mxu0 0
    %1623 = vmatprep.subr.bf16.mxu0 0
    %1624 = vmatpush1.bf16.xpose.msra.mxu0 0
    %1625 = vmatprep.subr.bf16.mxu0 0
    %1626 = vmatpush1.bf16.xpose.msra.mxu0 0
    %1627 = vmatprep.mubr.bf16.mxu0 0
    %1628 = vmatmul.mubr.bf16.gmra.mrb[0].mxu0 %v1590
    %v1629 = vpop.f32.mrb[0].mxu0
    %v1630 = vadd.f32 0.0, %v1629
    %v1631 = vpop.f32.mrb[0].mxu0
    %v1632 = vpop.f32.mrb[0].mxu0
    %v1633 = vpop.f32.mrb[0].mxu0
    %1634 = vdwg.mxu0
    %1636 = vrot.lane.b32.xlu0 %v1364, 112
    %v1637 = vpop.permute.xlu0 %1636
    %1638 = vrot.lane.b32.xlu0 %v1366, 112
    %v1639 = vpop.permute.xlu0 %1638
    %v1641 = vsel %vm442, %v1637, 0
    %v1644 = vsel %vm442, %v1639, 0
    %1646 = vmatprep.subr.bf16.mxu0 0
    %1647 = vmatpush1.bf16.xpose.msra.mxu0 %v1644
    %1648 = vmatprep.subr.bf16.mxu0 0
    %1649 = vmatpush1.bf16.xpose.msra.mxu0 0
    %1650 = vmatprep.subr.bf16.mxu0 0
    %1651 = vmatpush1.bf16.xpose.msra.mxu0 0
    %1652 = vmatprep.subr.bf16.mxu0 0
    %1653 = vmatpush1.bf16.xpose.msra.mxu0 0
    %1654 = vmatprep.subr.bf16.mxu0 0
    %1655 = vmatpush1.bf16.xpose.msra.mxu0 0
    %1656 = vmatprep.subr.bf16.mxu0 0
    %1657 = vmatpush1.bf16.xpose.msra.mxu0 0
    %1658 = vmatprep.subr.bf16.mxu0 0
    %1659 = vmatpush1.bf16.xpose.msra.mxu0 0
    %1660 = vmatprep.subr.bf16.mxu0 0
    %1661 = vmatpush1.bf16.xpose.msra.mxu0 0
    %1662 = vmatprep.subr.bf16.mxu0 0
    %1663 = vmatpush1.bf16.xpose.msra.mxu0 0
    %1664 = vmatprep.subr.bf16.mxu0 0
    %1665 = vmatpush1.bf16.xpose.msra.mxu0 0
    %1666 = vmatprep.subr.bf16.mxu0 0
    %1667 = vmatpush1.bf16.xpose.msra.mxu0 0
    %1668 = vmatprep.subr.bf16.mxu0 0
    %1669 = vmatpush1.bf16.xpose.msra.mxu0 0
    %1670 = vmatprep.subr.bf16.mxu0 0
    %1671 = vmatpush1.bf16.xpose.msra.mxu0 0
    %1672 = vmatprep.subr.bf16.mxu0 0
    %1673 = vmatpush1.bf16.xpose.msra.mxu0 0
    %1674 = vmatprep.subr.bf16.mxu0 0
    %1675 = vmatpush1.bf16.xpose.msra.mxu0 0
    %1676 = vmatprep.subr.bf16.mxu0 0
    %1677 = vmatpush1.bf16.xpose.msra.mxu0 0
    %1678 = vmatprep.mubr.bf16.mxu0 0
    %1679 = vmatmul.mubr.bf16.gmra.mrb[0].mxu0 %v1641
    %v1680 = vpop.f32.mrb[0].mxu0
    %v1681 = vadd.f32 0.0, %v1680
    %v1682 = vpop.f32.mrb[0].mxu0
    %v1683 = vpop.f32.mrb[0].mxu0
    %v1684 = vpop.f32.mrb[0].mxu0
    %1685 = vdwg.mxu0
    %v1686 = vsel %vm536, %v1630, -1e+30
    %v1687 = vsel %vm536, %v1681, -1e+30
    %v1688 = vsel %vm539, %v1686, -inf
    %1689 = vmax.xlane.f32.xlu0 %v1688
    %v1690 = vpop.xlane.xlu0 %1689
    %v1691 = vsel %vm539, %v1687, -inf
    %1692 = vmax.xlane.f32.xlu0 %v1691
    %v1693 = vpop.xlane.xlu0 %1692
    %v1694 = vsub.f32 %v1686, %v1690
    %v1695 = vsub.f32 %v1687, %v1693
    %v1696 = vmul.f32 %v1694, 1.442695
    %v1697 = vpow.pop %v1696
    %v1698 = vmul.f32 %v1695, 1.442695
    %v1699 = vpow.pop %v1698
    %v1700 = vsel %vm539, %v1697, 0.0
    %1701 = vadd.xlane.f32.xlu0 %v1700
    %v1702 = vpop.xlane.xlu0 %1701
    %v1703 = vsel %vm539, %v1699, 0.0
    %1704 = vadd.xlane.f32.xlu0 %v1703
    %v1705 = vpop.xlane.xlu0 %1704
    %v1706 = vrcp.pop %v1702
    %v1707 = vrcp.pop %v1705
    %v1708 = vmul.f32 %v1697, %v1706
    %v1709 = vmul.f32 %v1699, %v1707
    %v1710 = vpack.c.bf16 %v1708, %v1708
    %v1711 = vpack.c.bf16 %v1709, %v1709
    %1712 = vrot.lane.b32.xlu0 %v1365, 80
    %v1713 = vpop.permute.xlu0 %1712
    %v1715 = vsel %vm539, %v1710, 0
    %v1718 = vsel %vm570, %v1713, 0
    %1720 = vmatprep.subr.bf16.mxu0 0
    %1721 = vmatpush1.bf16.msra.mxu0 %v1718
    %1722 = vmatprep.subr.bf16.mxu0 0
    %1723 = vmatpush1.bf16.msra.mxu0 0
    %1724 = vmatprep.subr.bf16.mxu0 0
    %1725 = vmatpush1.bf16.msra.mxu0 0
    %1726 = vmatprep.subr.bf16.mxu0 0
    %1727 = vmatpush1.bf16.msra.mxu0 0
    %1728 = vmatprep.subr.bf16.mxu0 0
    %1729 = vmatpush1.bf16.msra.mxu0 0
    %1730 = vmatprep.subr.bf16.mxu0 0
    %1731 = vmatpush1.bf16.msra.mxu0 0
    %1732 = vmatprep.subr.bf16.mxu0 0
    %1733 = vmatpush1.bf16.msra.mxu0 0
    %1734 = vmatprep.subr.bf16.mxu0 0
    %1735 = vmatpush1.bf16.msra.mxu0 0
    %1736 = vmatprep.subr.bf16.mxu0 0
    %1737 = vmatpush1.bf16.msra.mxu0 0
    %1738 = vmatprep.subr.bf16.mxu0 0
    %1739 = vmatpush1.bf16.msra.mxu0 0
    %1740 = vmatprep.subr.bf16.mxu0 0
    %1741 = vmatpush1.bf16.msra.mxu0 0
    %1742 = vmatprep.subr.bf16.mxu0 0
    %1743 = vmatpush1.bf16.msra.mxu0 0
    %1744 = vmatprep.subr.bf16.mxu0 0
    %1745 = vmatpush1.bf16.msra.mxu0 0
    %1746 = vmatprep.subr.bf16.mxu0 0
    %1747 = vmatpush1.bf16.msra.mxu0 0
    %1748 = vmatprep.subr.bf16.mxu0 0
    %1749 = vmatpush1.bf16.msra.mxu0 0
    %1750 = vmatprep.subr.bf16.mxu0 0
    %1751 = vmatpush1.bf16.msra.mxu0 0
    %1752 = vmatprep.mubr.bf16.mxu0 0
    %1753 = vmatmul.mubr.bf16.gmra.mrb[0].mxu0 %v1715
    %v1754 = vpop.f32.mrb[0].mxu0
    %v1755 = vadd.f32 0.0, %v1754
    %v1756 = vpop.f32.mrb[0].mxu0
    %v1757 = vpop.f32.mrb[0].mxu0
    %v1758 = vpop.f32.mrb[0].mxu0
    %1759 = vdwg.mxu0
    %1760 = vrot.lane.b32.xlu0 %v1366, 80
    %v1761 = vpop.permute.xlu0 %1760
    %v1763 = vsel %vm539, %v1711, 0
    %v1766 = vsel %vm570, %v1761, 0
    %1768 = vmatprep.subr.bf16.mxu0 0
    %1769 = vmatpush1.bf16.msra.mxu0 %v1766
    %1770 = vmatprep.subr.bf16.mxu0 0
    %1771 = vmatpush1.bf16.msra.mxu0 0
    %1772 = vmatprep.subr.bf16.mxu0 0
    %1773 = vmatpush1.bf16.msra.mxu0 0
    %1774 = vmatprep.subr.bf16.mxu0 0
    %1775 = vmatpush1.bf16.msra.mxu0 0
    %1776 = vmatprep.subr.bf16.mxu0 0
    %1777 = vmatpush1.bf16.msra.mxu0 0
    %1778 = vmatprep.subr.bf16.mxu0 0
    %1779 = vmatpush1.bf16.msra.mxu0 0
    %1780 = vmatprep.subr.bf16.mxu0 0
    %1781 = vmatpush1.bf16.msra.mxu0 0
    %1782 = vmatprep.subr.bf16.mxu0 0
    %1783 = vmatpush1.bf16.msra.mxu0 0
    %1784 = vmatprep.subr.bf16.mxu0 0
    %1785 = vmatpush1.bf16.msra.mxu0 0
    %1786 = vmatprep.subr.bf16.mxu0 0
    %1787 = vmatpush1.bf16.msra.mxu0 0
    %1788 = vmatprep.subr.bf16.mxu0 0
    %1789 = vmatpush1.bf16.msra.mxu0 0
    %1790 = vmatprep.subr.bf16.mxu0 0
    %1791 = vmatpush1.bf16.msra.mxu0 0
    %1792 = vmatprep.subr.bf16.mxu0 0
    %1793 = vmatpush1.bf16.msra.mxu0 0
    %1794 = vmatprep.subr.bf16.mxu0 0
    %1795 = vmatpush1.bf16.msra.mxu0 0
    %1796 = vmatprep.subr.bf16.mxu0 0
    %1797 = vmatpush1.bf16.msra.mxu0 0
    %1798 = vmatprep.subr.bf16.mxu0 0
    %1799 = vmatpush1.bf16.msra.mxu0 0
    %1800 = vmatprep.mubr.bf16.mxu0 0
    %1801 = vmatmul.mubr.bf16.gmra.mrb[0].mxu0 %v1763
    %v1802 = vpop.f32.mrb[0].mxu0
    %v1803 = vadd.f32 0.0, %v1802
    %v1804 = vpop.f32.mrb[0].mxu0
    %v1805 = vpop.f32.mrb[0].mxu0
    %v1806 = vpop.f32.mrb[0].mxu0
    %1807 = vdwg.mxu0
    %v1808 = vpack.c.bf16 %v1803, %v1755
    %v1811 = vunpack.c.l.b16 %v1359
    %v1812 = vunpack.c.l.b16 %v1360
    %v1813 = vpack.c.b16 %v1812, %v1811
    %v1816 = vsel %vm442, %v1808, 0
    %1818 = vmatprep.subr.bf16.mxu0 0
    %1819 = vmatpush1.bf16.msra.mxu0 %v1813
    %1820 = vmatprep.subr.bf16.mxu0 0
    %1821 = vmatpush1.bf16.msra.mxu0 0
    %1822 = vmatprep.subr.bf16.mxu0 0
    %1823 = vmatpush1.bf16.msra.mxu0 0
    %1824 = vmatprep.subr.bf16.mxu0 0
    %1825 = vmatpush1.bf16.msra.mxu0 0
    %1826 = vmatprep.subr.bf16.mxu0 0
    %1827 = vmatpush1.bf16.msra.mxu0 0
    %1828 = vmatprep.subr.bf16.mxu0 0
    %1829 = vmatpush1.bf16.msra.mxu0 0
    %1830 = vmatprep.subr.bf16.mxu0 0
    %1831 = vmatpush1.bf16.msra.mxu0 0
    %1832 = vmatprep.subr.bf16.mxu0 0
    %1833 = vmatpush1.bf16.msra.mxu0 0
    %1834 = vmatprep.subr.bf16.mxu0 0
    %1835 = vmatpush1.bf16.msra.mxu0 0
    %1836 = vmatprep.subr.bf16.mxu0 0
    %1837 = vmatpush1.bf16.msra.mxu0 0
    %1838 = vmatprep.subr.bf16.mxu0 0
    %1839 = vmatpush1.bf16.msra.mxu0 0
    %1840 = vmatprep.subr.bf16.mxu0 0
    %1841 = vmatpush1.bf16.msra.mxu0 0
    %1842 = vmatprep.subr.bf16.mxu0 0
    %1843 = vmatpush1.bf16.msra.mxu0 0
    %1844 = vmatprep.subr.bf16.mxu0 0
    %1845 = vmatpush1.bf16.msra.mxu0 0
    %1846 = vmatprep.subr.bf16.mxu0 0
    %1847 = vmatpush1.bf16.msra.mxu0 0
    %1848 = vmatprep.subr.bf16.mxu0 0
    %1849 = vmatpush1.bf16.msra.mxu0 0
    %1850 = vmatprep.mubr.bf16.mxu0 0
    %1851 = vmatmul.mubr.bf16.gmra.mrb[0].mxu0 %v1816
    %v1852 = vpop.f32.mrb[0].mxu0
    %v1853 = vadd.f32 0.0, %v1852
    %v1854 = vpop.f32.mrb[0].mxu0
    %v1855 = vpop.f32.mrb[0].mxu0
    %v1856 = vadd.f32 0.0, %v1855
    %v1857 = vpop.f32.mrb[0].mxu0
    %1858 = vdwg.mxu0
    %v1861 = vunpack.c.l.b16 %v1357
    %v1862 = vunpack.c.l.b16 %v1358
    %v1863 = vpack.c.b16 %v1862, %v1861
    %v1866 = vsel %vm442, %v1583, 0
    %1868 = vmatprep.subr.bf16.mxu0 0
    %1869 = vmatpush1.bf16.msra.mxu0 %v1863
    %1870 = vmatprep.subr.bf16.mxu0 0
    %1871 = vmatpush1.bf16.msra.mxu0 0
    %1872 = vmatprep.subr.bf16.mxu0 0
    %1873 = vmatpush1.bf16.msra.mxu0 0
    %1874 = vmatprep.subr.bf16.mxu0 0
    %1875 = vmatpush1.bf16.msra.mxu0 0
    %1876 = vmatprep.subr.bf16.mxu0 0
    %1877 = vmatpush1.bf16.msra.mxu0 0
    %1878 = vmatprep.subr.bf16.mxu0 0
    %1879 = vmatpush1.bf16.msra.mxu0 0
    %1880 = vmatprep.subr.bf16.mxu0 0
    %1881 = vmatpush1.bf16.msra.mxu0 0
    %1882 = vmatprep.subr.bf16.mxu0 0
    %1883 = vmatpush1.bf16.msra.mxu0 0
    %1884 = vmatprep.subr.bf16.mxu0 0
    %1885 = vmatpush1.bf16.msra.mxu0 0
    %1886 = vmatprep.subr.bf16.mxu0 0
    %1887 = vmatpush1.bf16.msra.mxu0 0
    %1888 = vmatprep.subr.bf16.mxu0 0
    %1889 = vmatpush1.bf16.msra.mxu0 0
    %1890 = vmatprep.subr.bf16.mxu0 0
    %1891 = vmatpush1.bf16.msra.mxu0 0
    %1892 = vmatprep.subr.bf16.mxu0 0
    %1893 = vmatpush1.bf16.msra.mxu0 0
    %1894 = vmatprep.subr.bf16.mxu0 0
    %1895 = vmatpush1.bf16.msra.mxu0 0
    %1896 = vmatprep.subr.bf16.mxu0 0
    %1897 = vmatpush1.bf16.msra.mxu0 0
    %1898 = vmatprep.subr.bf16.mxu0 0
    %1899 = vmatpush1.bf16.msra.mxu0 0
    %1900 = vmatprep.mubr.bf16.mxu0 0
    %1901 = vmatmul.mubr.bf16.gmra.mrb[0].mxu0 %v1866
    %v1902 = vpop.f32.mrb[0].mxu0
    %v1903 = vadd.f32 %v1853, %v1902
    %v1904 = vpop.f32.mrb[0].mxu0
    %v1905 = vpop.f32.mrb[0].mxu0
    %v1906 = vadd.f32 %v1856, %v1905
    %v1907 = vpop.f32.mrb[0].mxu0
    %1908 = vdwg.mxu0
    %s1909 = scalar_lea.vmem [#allocation14], 1
    %v1910 = vld [vmem:[%s1909] sm:$0x1]
    %v1912 = vlaneseq
    %v1913 = vshrl.u32 %v1912, 7
    %v1914 = vsub.s32 0, %v1913
    %v1915 = vrot.slane %v1910, %v1914
    %v1917 = vadd.f32 %v1903, %v1915
    %v1918 = vadd.f32 %v1906, %v1915
    %v1919 = vadd.f32 %v1230, %v1917
    %v1920 = vadd.f32 %v1231, %v1918
    %s1921 = scalar_lea.vmem [#allocation16], 1
    %v1922 = vld [vmem:[%s1921] sm:$0x1]
    %s1923 = scalar_lea.vmem [#allocation17], 1
    %v1924 = vld [vmem:[%s1923] sm:$0x1]
    %v1925 = vsel %vm266, %v1919, 0.0
    %1926 = vadd.xlane.f32.xlu0 %v1925
    %v1927 = vpop.xlane.xlu0 %1926
    %v1928 = vsel %vm266, %v1920, 0.0
    %1929 = vadd.xlane.f32.xlu0 %v1928
    %v1930 = vpop.xlane.xlu0 %1929
    %v1931 = vmul.f32 %v1927, %v273
    %v1932 = vmul.f32 %v1930, %v273
    %v1933 = vsub.f32 %v1919, %v1931
    %v1934 = vsub.f32 %v1920, %v1932
    %v1935 = vmul.f32 %v1933, %v1933
    %v1936 = vmul.f32 %v1934, %v1934
    %v1937 = vsel %vm266, %v1935, 0.0
    %1938 = vadd.xlane.f32.xlu0 %v1937
    %v1939 = vpop.xlane.xlu0 %1938
    %v1940 = vsel %vm266, %v1936, 0.0
    %1941 = vadd.xlane.f32.xlu0 %v1940
    %v1942 = vpop.xlane.xlu0 %1941
    %v1943 = vmul.f32 %v1939, %v273
    %v1944 = vmul.f32 %v1942, %v273
    %v1945 = vadd.f32 %v1943, 1e-08
    %v1946 = vadd.f32 %v1944, 1e-08
    %v1947 = vrsqrt.pop %v1945
    %v1948 = vrsqrt.pop %v1946
    %v1949 = vmul.f32 %v1933, %v1947
    %v1950 = vmul.f32 %v1934, %v1948
    %v1952 = vlaneseq
    %v1953 = vshrl.u32 %v1952, 7
    %v1954 = vsub.s32 0, %v1953
    %v1955 = vrot.slane %v1922, %v1954
    %v1957 = vmul.f32 %v1949, %v1955
    %v1958 = vmul.f32 %v1950, %v1955
    %v1960 = vlaneseq
    %v1961 = vshrl.u32 %v1960, 7
    %v1962 = vsub.s32 0, %v1961
    %v1963 = vrot.slane %v1924, %v1962
    %v1965 = vadd.f32 %v1957, %v1963
    %v1966 = vadd.f32 %v1958, %v1963
    %v1967 = vpack.c.bf16 %v1966, %v1965
    %s1968 = scalar_lea.vmem [#allocation19], 16
    %v1969 = vld [vmem:[%s1968] sm:$0xf]
    %v1970 = vld [vmem:[%s1968 + $0x4] sm:$0xf]
    %v1971 = vld [vmem:[%s1968 + $0x8] sm:$0xf]
    %v1972 = vld [vmem:[%s1968 + $0xc] sm:$0xf]
    %s1973 = scalar_lea.vmem [#allocation20], 1
    %v1974 = vld [vmem:[%s1973] sm:$0x1]
    %v1976 = vlaneseq
    %v1977 = vshrl.u32 %v1976, 7
    %v1978 = vsub.s32 0, %v1977
    %v1979 = vrot.slane %v1974, %v1978
    %v1985 = vunpack.c.l.b16 %v1969
    %v1986 = vunpack.c.l.b16 %v1970
    %v1987 = vunpack.c.l.b16 %v1971
    %v1988 = vunpack.c.l.b16 %v1972
    %v1989 = vpack.c.b16 %v1986, %v1985
    %v1990 = vpack.c.b16 %v1988, %v1987
    %v1994 = vsel %vm266, %v1967, 0
    %1996 = vmatprep.subr.bf16.mxu0 0
    %1997 = vmatpush1.bf16.msra.mxu0 %v1989
    %1998 = vmatprep.subr.bf16.mxu0 0
    %1999 = vmatpush1.bf16.msra.mxu0 %v1990
    %2000 = vmatprep.subr.bf16.mxu0 0
    %2001 = vmatpush1.bf16.msra.mxu0 0
    %2002 = vmatprep.subr.bf16.mxu0 0
    %2003 = vmatpush1.bf16.msra.mxu0 0
    %2004 = vmatprep.subr.bf16.mxu0 0
    %2005 = vmatpush1.bf16.msra.mxu0 0
    %2006 = vmatprep.subr.bf16.mxu0 0
    %2007 = vmatpush1.bf16.msra.mxu0 0
    %2008 = vmatprep.subr.bf16.mxu0 0
    %2009 = vmatpush1.bf16.msra.mxu0 0
    %2010 = vmatprep.subr.bf16.mxu0 0
    %2011 = vmatpush1.bf16.msra.mxu0 0
    %2012 = vmatprep.subr.bf16.mxu0 0
    %2013 = vmatpush1.bf16.msra.mxu0 0
    %2014 = vmatprep.subr.bf16.mxu0 0
    %2015 = vmatpush1.bf16.msra.mxu0 0
    %2016 = vmatprep.subr.bf16.mxu0 0
    %2017 = vmatpush1.bf16.msra.mxu0 0
    %2018 = vmatprep.subr.bf16.mxu0 0
    %2019 = vmatpush1.bf16.msra.mxu0 0
    %2020 = vmatprep.subr.bf16.mxu0 0
    %2021 = vmatpush1.bf16.msra.mxu0 0
    %2022 = vmatprep.subr.bf16.mxu0 0
    %2023 = vmatpush1.bf16.msra.mxu0 0
    %2024 = vmatprep.subr.bf16.mxu0 0
    %2025 = vmatpush1.bf16.msra.mxu0 0
    %2026 = vmatprep.subr.bf16.mxu0 0
    %2027 = vmatpush1.bf16.msra.mxu0 0
    %2028 = vmatprep.mubr.bf16.mxu0 0
    %2029 = vmatmul.mubr.bf16.gmra.mrb[0].mxu0 %v1994
    %v2030 = vpop.f32.mrb[0].mxu0
    %v2031 = vadd.f32 %v1979, %v2030
    %v2032 = vpop.f32.mrb[0].mxu0
    %v2033 = vpop.f32.mrb[0].mxu0
    %v2034 = vadd.f32 %v1979, %v2033
    %v2035 = vpop.f32.mrb[0].mxu0
    %2036 = vdwg.mxu0
    %v2037 = vmax.f32 %v2031, 0.0
    %v2038 = vmax.f32 %v2034, 0.0
    %v2039 = vpack.c.bf16 %v2038, %v2037
    %s2040 = scalar_lea.vmem [#allocation22], 16
    %v2041 = vld [vmem:[%s2040] sm:$0xf]
    %v2042 = vld [vmem:[%s2040 + $0x4] sm:$0xf]
    %v2043 = vld [vmem:[%s2040 + $0x8] sm:$0xf]
    %v2044 = vld [vmem:[%s2040 + $0xc] sm:$0xf]
    %s2045 = scalar_lea.vmem [#allocation23], 1
    %v2046 = vld [vmem:[%s2045] sm:$0x1]
    %v2048 = vlaneseq
    %v2049 = vshrl.u32 %v2048, 7
    %v2050 = vsub.s32 0, %v2049
    %v2051 = vrot.slane %v2046, %v2050
    %v2057 = vunpack.c.l.b16 %v2041
    %v2058 = vunpack.c.l.b16 %v2042
    %v2059 = vunpack.c.l.b16 %v2043
    %v2060 = vunpack.c.l.b16 %v2044
    %v2061 = vpack.c.b16 %v2058, %v2057
    %v2062 = vpack.c.b16 %v2060, %v2059
    %v2066 = vsel %vm266, %v2039, 0
    %2068 = vmatprep.subr.bf16.mxu0 0
    %2069 = vmatpush1.bf16.msra.mxu0 %v2061
    %2070 = vmatprep.subr.bf16.mxu0 0
    %2071 = vmatpush1.bf16.msra.mxu0 %v2062
    %2072 = vmatprep.subr.bf16.mxu0 0
    %2073 = vmatpush1.bf16.msra.mxu0 0
    %2074 = vmatprep.subr.bf16.mxu0 0
    %2075 = vmatpush1.bf16.msra.mxu0 0
    %2076 = vmatprep.subr.bf16.mxu0 0
    %2077 = vmatpush1.bf16.msra.mxu0 0
    %2078 = vmatprep.subr.bf16.mxu0 0
    %2079 = vmatpush1.bf16.msra.mxu0 0
    %2080 = vmatprep.subr.bf16.mxu0 0
    %2081 = vmatpush1.bf16.msra.mxu0 0
    %2082 = vmatprep.subr.bf16.mxu0 0
    %2083 = vmatpush1.bf16.msra.mxu0 0
    %2084 = vmatprep.subr.bf16.mxu0 0
    %2085 = vmatpush1.bf16.msra.mxu0 0
    %2086 = vmatprep.subr.bf16.mxu0 0
    %2087 = vmatpush1.bf16.msra.mxu0 0
    %2088 = vmatprep.subr.bf16.mxu0 0
    %2089 = vmatpush1.bf16.msra.mxu0 0
    %2090 = vmatprep.subr.bf16.mxu0 0
    %2091 = vmatpush1.bf16.msra.mxu0 0
    %2092 = vmatprep.subr.bf16.mxu0 0
    %2093 = vmatpush1.bf16.msra.mxu0 0
    %2094 = vmatprep.subr.bf16.mxu0 0
    %2095 = vmatpush1.bf16.msra.mxu0 0
    %2096 = vmatprep.subr.bf16.mxu0 0
    %2097 = vmatpush1.bf16.msra.mxu0 0
    %2098 = vmatprep.subr.bf16.mxu0 0
    %2099 = vmatpush1.bf16.msra.mxu0 0
    %2100 = vmatprep.mubr.bf16.mxu0 0
    %2101 = vmatmul.mubr.bf16.gmra.mrb[0].mxu0 %v2066
    %v2102 = vpop.f32.mrb[0].mxu0
    %v2103 = vadd.f32 %v2051, %v2102
    %v2104 = vpop.f32.mrb[0].mxu0
    %v2105 = vpop.f32.mrb[0].mxu0
    %v2106 = vadd.f32 %v2051, %v2105
    %v2107 = vpop.f32.mrb[0].mxu0
    %2108 = vdwg.mxu0
    %v2109 = vadd.f32 %v2103, %v1965
    %v2110 = vadd.f32 %v2106, %v1966
    %v2111 = vmul.f32 %v2109, %v247
    %v2112 = vmul.f32 %v2110, %v254
    %v2113 = vpack.c.bf16 %v2111, %v2111
    %v2114 = vpack.c.bf16 %v2112, %v2112
    %vm2115 = vcmask 257024
    %2116 = vst.msk [vmem:[#allocation25] sm:$0xf] %vm2115, %v2113
    %2117 = vst.msk [vmem:[#allocation25 + $0x4] sm:$0xf] %vm2115, %v2114
    // Predicated region
    $region114: #{tpu_custom_call.1} parent=1 // pred_check
      _
    $region115: #{tpu_custom_call.1} parent=1 // pred_check_branch
      %2119 = sbr.rel (0) target = $region117
    $region116: #{tpu_custom_call.1} parent=1 // pred_region
      %s2121 = ssub.s32 128, 128
      %2122 = vsyncadd [#allocation4], %s2121
      %s2123 = sshll.u32 [#allocation25], 4
      %s2124 = int_to_ptr.vmem [resolvable:$true] %s2123
      %2129 = dma.vmem_to_hbm [thread:$0]  %s2124, 128, %s14, [#allocation4], 64, 64, 4
    $region117: #{tpu_custom_call.1} parent=1 // pred_fallthru
      _
    // Predicated region
    $region118: #{tpu_custom_call.1} parent=1 // pred_check
      _
    $region119: #{tpu_custom_call.1} parent=1 // pred_check_branch
      %2131 = sbr.rel (0) target = $region121
    $region120: #{tpu_custom_call.1} parent=1 // pred_region
      %2132 = dma.done [#allocation4], 128
    $region121: #{tpu_custom_call.1} parent=1 // pred_fallthru
      _
    %2133 = vsyncpa [#allocation3], 1
    %2134 = vsyncpa [#allocation6], 1
    %2135 = vsyncpa [#allocation9], 1
    %2136 = vsyncpa [#allocation12], 1
    %2137 = vsyncpa [#allocation15], 1
    %2138 = vsyncpa [#allocation18], 1
    %2139 = vsyncpa [#allocation21], 1
    %2140 = vsyncpa [#allocation24], 1
    %2141 = vsyncpa [#allocation4], 1

</llo_original>
